<compile_context>
chip_gen: v7x
topology: tpu7x:2x2x1
jax: 0.10.0
libtpu: 0.0.40
codegen_flags: <defaults>
</compile_context>

<pallas_src>
import jax
import jax.numpy as jnp
from jax.experimental import pallas as pl
from jax.experimental.pallas import tpu as pltpu


def _round_up(x, m):
    return ((x + m - 1) // m) * m


def _select_tile_rows(n_rows):
    """Batch-tile height: 1 grid step on single-TC v5e/v6e, >=2 on dual-TC v7x."""
    try:
        kind = jax.devices()[0].device_kind.lower()
    except Exception:
        kind = ""
    dual_tc = ("v7" in kind) or ("7x" in kind)
    n_tiles = 2 if dual_tc else 1
    tm = _round_up(pl.cdiv(n_rows, n_tiles), 8)
    # Cap so intermediates stay a few MiB even for very large batches.
    return max(8, min(tm, 1024))


# ---------------------------------------------------------------------------
# Kernel
# ---------------------------------------------------------------------------
def mlp_kernel(x_ref,
               w1_ref, b1_ref,
               w2_ref, b2_ref,
               w3_ref, b3_ref,
               w4_ref, b4_ref,
               o_ref):
    def dense(h, w_ref, b_ref):
        # bf16 inputs to the MXU, f32 accumulation, f32 bias epilogue.
        return jnp.dot(h, w_ref[...], preferred_element_type=jnp.float32) + b_ref[...]

    # Hidden activations are re-narrowed to the weight dtype (bf16) right
    # after the f32 ReLU: identical numerics to casting at the next dot, but
    # halves the live-value footprint of the (tm, 512)/(tm, 384) tiles.
    h = jnp.maximum(dense(x_ref[...], w1_ref, b1_ref), 0.0).astype(w2_ref.dtype)
    h = jnp.maximum(dense(h, w2_ref, b2_ref), 0.0).astype(w3_ref.dtype)      # BN1 folded
    h = jnp.maximum(dense(h, w3_ref, b3_ref), 0.0).astype(w4_ref.dtype)      # BN2 folded
    o_ref[...] = dense(h, w4_ref, b4_ref).astype(o_ref.dtype)                # BN3 folded


# ---------------------------------------------------------------------------
# Wrapper
# ---------------------------------------------------------------------------
def fully_connected_net(x, folded_params, n_output, *, tm=None,
                        weight_dtype=jnp.bfloat16):
    w1, b1, w2, b2, w3, b3, w4, b4 = folded_params
    N = x.shape[0]
    n_feat_pad = w1.shape[0]      # padded input features (multiple of 128)
    n_out_pad = w4.shape[1]       # padded output lanes   (multiple of 128)

    # bf16 weights + bf16 x on the host: halves HBM->VMEM bytes, native MXU
    # rate.  Biases stay f32 (f32 epilogue).
    ws = tuple(w.astype(weight_dtype) for w in (w1, w2, w3, w4))
    bs = (b1, b2, b3, b4)
    x = x.astype(weight_dtype)

    # Lane-pad the input features to match the padded w1 rows (exact).
    if x.shape[1] != n_feat_pad:
        x = jnp.pad(x, ((0, 0), (0, n_feat_pad - x.shape[1])))

    # Generation-aware batch tiling; pad batch rows to a multiple of the tile.
    if tm is None:
        tm = _select_tile_rows(N)
    n_rows = _round_up(N, tm)
    if n_rows != N:
        x = jnp.pad(x, ((0, n_rows - N), (0, 0)))
    grid = (n_rows // tm,)

    def resident(shape):
        # Constant index_map: fetched once, stays VMEM-resident across steps.
        return pl.BlockSpec(shape, lambda i: (0, 0))

    operands = (x, ws[0], bs[0], ws[1], bs[1], ws[2], bs[2], ws[3], bs[3])
    in_specs = [pl.BlockSpec((tm, n_feat_pad), lambda i: (i, 0))]
    in_specs += [resident(op.shape) for op in operands[1:]]

    # Cost estimate for XLA scheduling around the custom call.
    flops = 2 * n_rows * (n_feat_pad * ws[0].shape[1]
                          + ws[1].shape[0] * ws[1].shape[1]
                          + ws[2].shape[0] * ws[2].shape[1]
                          + ws[3].shape[0] * ws[3].shape[1])
    bytes_accessed = (int(x.size) * x.dtype.itemsize
                      + sum(int(o.size) * o.dtype.itemsize for o in operands[1:])
                      + n_rows * n_out_pad * 4)

    # Tight-but-safe VMEM budget: double-buffered x/out tiles + resident
    # (double-buffered) weights/biases + f32 and bf16 intermediates, x2
    # headroom for compiler scratch.
    tile_io = 2 * (tm * n_feat_pad * x.dtype.itemsize + tm * n_out_pad * 4)
    param_bytes = 2 * sum(int(o.size) * o.dtype.itemsize for o in operands[1:])
    inter_bytes = tm * (ws[0].shape[1] + ws[1].shape[1] + ws[2].shape[1]) * (4 + 2)
    vmem_limit = int(min(48 << 20, max(8 << 20,
                                       2 * (tile_io + param_bytes + inter_bytes))))

    out = pl.pallas_call(
        mlp_kernel,
        out_shape=jax.ShapeDtypeStruct((n_rows, n_out_pad), jnp.float32),
        grid_spec=pltpu.PrefetchScalarGridSpec(
            num_scalar_prefetch=0,
            grid=grid,
            in_specs=in_specs,
            out_specs=pl.BlockSpec((tm, n_out_pad), lambda i: (i, 0)),
        ),
        compiler_params=pltpu.CompilerParams(
            dimension_semantics=("parallel",),
            vmem_limit_bytes=vmem_limit,
        ),
        cost_estimate=pl.CostEstimate(
            flops=flops, transcendentals=0, bytes_accessed=bytes_accessed),
    )(*operands)

    # Slice padded batch rows and padded output lanes back to logical shape.
    return out[:N, :n_output]


# ---------------------------------------------------------------------------
# Parameters (PyTorch-like init), BN folding and padding
# ---------------------------------------------------------------------------
def make_params(key, n_feature, n_output):
    h1, h2, h3 = 512, 320, 128
    eps = 1e-5
    keys = jax.random.split(key, 20)

    def linear(kw, kb, fan_in, fan_out):
        lim = 1.0 / jnp.sqrt(fan_in)
        w = jax.random.uniform(kw, (fan_in, fan_out), jnp.float32, -lim, lim)
        b = jax.random.uniform(kb, (1, fan_out), jnp.float32, -lim, lim)
        return w, b

    def bn(kg, kb, km, kv, dim):
        gamma = 1.0 + 0.1 * jax.random.normal(kg, (1, dim), jnp.float32)
        beta = 0.1 * jax.random.normal(kb, (1, dim), jnp.float32)
        mean = 0.1 * jax.random.normal(km, (1, dim), jnp.float32)
        var = jnp.abs(jax.random.normal(kv, (1, dim), jnp.float32)) + 0.5
        scale = gamma / jnp.sqrt(var + eps)
        shift = beta - mean * scale
        return scale, shift

    w1, b1 = linear(keys[0], keys[1], n_feature, h1)
    s1, t1 = bn(keys[2], keys[3], keys[4], keys[5], h1)
    w2, b2 = linear(keys[6], keys[7], h1, h2)
    s2, t2 = bn(keys[8], keys[9], keys[10], keys[11], h2)
    w3, b3 = linear(keys[12], keys[13], h2, h3)
    s3, t3 = bn(keys[14], keys[15], keys[16], keys[17], h3)
    w4, b4 = linear(keys[18], keys[19], h3, n_output)

    return (w1, b1, s1, t1, w2, b2, s2, t2, w3, b3, s3, t3, w4, b4)


def fold_and_pad(params):
    """Fold eval-mode BN into the following Linear and zero-pad to 128 lanes."""
    (w1, b1, s1, t1, w2, b2, s2, t2, w3, b3, s3, t3, w4, b4) = params

    # (h*s + t) @ W + b  ==  h @ (s^T * W) + (t @ W + b)   (exact)
    w2f = s1.T * w2
    b2f = b2 + t1 @ w2
    w3f = s2.T * w3
    b3f = b3 + t2 @ w3
    w4f = s3.T * w4
    b4f = b4 + t3 @ w4

    # Pad input features (64 -> 128): lane-dense x tile, full L1 MXU depth.
    f_in = w1.shape[0]
    f_in_p = _round_up(f_in, 128)
    w1p = jnp.pad(w1, ((0, f_in_p - f_in), (0, 0)))

    # Pad hidden_2 (320 -> 384) and output lanes (n_output -> 128) with zeros.
    h2 = w2f.shape[1]
    h2p = _round_up(h2, 128)
    n_out = w4f.shape[1]
    n_out_p = max(128, _round_up(n_out, 128))

    w2f = jnp.pad(w2f, ((0, 0), (0, h2p - h2)))
    b2f = jnp.pad(b2f, ((0, 0), (0, h2p - h2)))
    w3f = jnp.pad(w3f, ((0, h2p - h2), (0, 0)))
    w4f = jnp.pad(w4f, ((0, 0), (0, n_out_p - n_out)))
    b4f = jnp.pad(b4f, ((0, 0), (0, n_out_p - n_out)))

    return (w1p, b1, w2f, b2f, w3f, b3f, w4f, b4f), n_out


# ---------------------------------------------------------------------------
# Pure-JAX references
# ---------------------------------------------------------------------------
def reference_original(x, params):
    (w1, b1, s1, t1, w2, b2, s2, t2, w3, b3, s3, t3, w4, b4) = params
    h = jnp.maximum(x @ w1 + b1, 0.0) * s1 + t1
    h = jnp.maximum(h @ w2 + b2, 0.0) * s2 + t2
    h = jnp.maximum(h @ w3 + b3, 0.0) * s3 + t3
    return h @ w4 + b4


def reference_folded(x, folded_params, n_output, mm_dtype=jnp.float32):
    w1, b1, w2, b2, w3, b3, w4, b4 = folded_params
    f_in_p = w1.shape[0]
    if x.shape[1] != f_in_p:
        x = jnp.pad(x, ((0, 0), (0, f_in_p - x.shape[1])))

    def dense(h, w, b):
        return jnp.dot(h.astype(mm_dtype), w.astype(mm_dtype),
                       preferred_element_type=jnp.float32) + b

    h = jnp.maximum(dense(x, w1, b1), 0.0)
    h = jnp.maximum(dense(h, w2, b2), 0.0)
    h = jnp.maximum(dense(h, w3, b3), 0.0)
    return dense(h, w4, b4)[:, :n_output]


# ---------------------------------------------------------------------------
if __name__ == "__main__":
    key = jax.random.PRNGKey(0)
    k_x, k_p = jax.random.split(key)

    N, n_feature, n_output = 512, 64, 10
    x = jax.random.normal(k_x, (N, n_feature), jnp.float32)

    raw_params = make_params(k_p, n_feature, n_output)
    folded_params, _ = fold_and_pad(raw_params)

    out = jax.block_until_ready(fully_connected_net(x, folded_params, n_output))
    assert out.shape == (N, n_output)

    # 1) BN folding + zero padding is exact (checked in f32).
    ref_orig = reference_original(x, raw_params)
    ref_fold_f32 = reference_folded(x, folded_params, n_output, jnp.float32)
    assert jnp.allclose(ref_fold_f32, ref_orig, atol=1e-4, rtol=1e-4)

    # 2) Pallas kernel matches the same bf16-weight / f32-accumulate math.
    ref_fold_bf16 = reference_folded(x, folded_params, n_output, jnp.bfloat16)
    assert jnp.allclose(out, ref_fold_bf16, atol=1e-2, rtol=1e-2)

    # 3) End-to-end vs original f32 eval-mode semantics (bf16-level tolerance).
    assert jnp.allclose(out, ref_orig, atol=1e-1, rtol=1e-1)

    print("KERNEL_OK")
</pallas_src>

<mosaic_0001>
module attributes {stable_mosaic.version = 11 : i64} {
  func.func @mlp_kernel(%arg0: i32, %arg1: memref<512x128xbf16, #tpu.memory_space<vmem>>, %arg2: memref<128x512xbf16, #tpu.memory_space<vmem>>, %arg3: memref<1x512xf32, #tpu.memory_space<vmem>>, %arg4: memref<512x384xbf16, #tpu.memory_space<vmem>>, %arg5: memref<1x384xf32, #tpu.memory_space<vmem>>, %arg6: memref<384x128xbf16, #tpu.memory_space<vmem>>, %arg7: memref<1x128xf32, #tpu.memory_space<vmem>>, %arg8: memref<128x128xbf16, #tpu.memory_space<vmem>>, %arg9: memref<1x128xf32, #tpu.memory_space<vmem>>, %arg10: memref<512x128xf32, #tpu.memory_space<vmem>>) attributes {dimension_semantics = [#tpu.dimension_semantics<parallel>], iteration_bounds = array<i64: 1>, scalar_prefetch = 0 : i64, scratch_operands = 0 : i64, tpu.core_type = #tpu.core_type<tc>, window_params = [{transform_indices = @transform_0, window_bounds = array<i64: 512, 128>}, {pipeline_mode = #tpu.pipeline_mode<synchronous>, transform_indices = @transform_1, window_bounds = array<i64: 128, 512>}, {pipeline_mode = #tpu.pipeline_mode<synchronous>, transform_indices = @transform_2, window_bounds = array<i64: 1, 512>}, {pipeline_mode = #tpu.pipeline_mode<synchronous>, transform_indices = @transform_3, window_bounds = array<i64: 512, 384>}, {pipeline_mode = #tpu.pipeline_mode<synchronous>, transform_indices = @transform_4, window_bounds = array<i64: 1, 384>}, {pipeline_mode = #tpu.pipeline_mode<synchronous>, transform_indices = @transform_5, window_bounds = array<i64: 384, 128>}, {pipeline_mode = #tpu.pipeline_mode<synchronous>, transform_indices = @transform_6, window_bounds = array<i64: 1, 128>}, {pipeline_mode = #tpu.pipeline_mode<synchronous>, transform_indices = @transform_7, window_bounds = array<i64: 128, 128>}, {pipeline_mode = #tpu.pipeline_mode<synchronous>, transform_indices = @transform_8, window_bounds = array<i64: 1, 128>}, {transform_indices = @transform_9, window_bounds = array<i64: 512, 128>}]} {
    %c0 = arith.constant 0 : index
    %c0_0 = arith.constant 0 : index
    %0 = vector.load %arg1[%c0, %c0_0] : memref<512x128xbf16, #tpu.memory_space<vmem>>, vector<512x128xbf16>
    %c0_1 = arith.constant 0 : index
    %c0_2 = arith.constant 0 : index
    %1 = vector.load %arg2[%c0_1, %c0_2] : memref<128x512xbf16, #tpu.memory_space<vmem>>, vector<128x512xbf16>
    %cst = arith.constant dense<0.000000e+00> : vector<512x512xf32>
    %2 = tpu.matmul %0, %1, %cst {dimension_numbers = #tpu.dot_dimension_numbers<[1], [0], [0], [1], [0, 0, 1, 1], [], []>} : vector<512x128xbf16>, vector<128x512xbf16>, vector<512x512xf32> -> vector<512x512xf32>
    %c0_3 = arith.constant 0 : index
    %c0_4 = arith.constant 0 : index
    %3 = vector.load %arg3[%c0_3, %c0_4] : memref<1x512xf32, #tpu.memory_space<vmem>>, vector<1x512xf32>
    %4 = vector.broadcast %3 : vector<1x512xf32> to vector<512x512xf32>
    %5 = arith.addf %2, %4 : vector<512x512xf32>
    %cst_5 = arith.constant 0.000000e+00 : f32
    %6 = vector.broadcast %cst_5 : f32 to vector<512x512xf32>
    %7 = arith.maximumf %5, %6 : vector<512x512xf32>
    %8 = arith.truncf %7 : vector<512x512xf32> to vector<512x512xbf16>
    %c0_6 = arith.constant 0 : index
    %c0_7 = arith.constant 0 : index
    %9 = vector.load %arg4[%c0_6, %c0_7] : memref<512x384xbf16, #tpu.memory_space<vmem>>, vector<512x384xbf16>
    %cst_8 = arith.constant dense<0.000000e+00> : vector<512x384xf32>
    %10 = tpu.matmul %8, %9, %cst_8 {dimension_numbers = #tpu.dot_dimension_numbers<[1], [0], [0], [1], [0, 0, 1, 1], [], []>} : vector<512x512xbf16>, vector<512x384xbf16>, vector<512x384xf32> -> vector<512x384xf32>
    %c0_9 = arith.constant 0 : index
    %c0_10 = arith.constant 0 : index
    %11 = vector.load %arg5[%c0_9, %c0_10] : memref<1x384xf32, #tpu.memory_space<vmem>>, vector<1x384xf32>
    %12 = vector.broadcast %11 : vector<1x384xf32> to vector<512x384xf32>
    %13 = arith.addf %10, %12 : vector<512x384xf32>
    %cst_11 = arith.constant 0.000000e+00 : f32
    %14 = vector.broadcast %cst_11 : f32 to vector<512x384xf32>
    %15 = arith.maximumf %13, %14 : vector<512x384xf32>
    %16 = arith.truncf %15 : vector<512x384xf32> to vector<512x384xbf16>
    %c0_12 = arith.constant 0 : index
    %c0_13 = arith.constant 0 : index
    %17 = vector.load %arg6[%c0_12, %c0_13] : memref<384x128xbf16, #tpu.memory_space<vmem>>, vector<384x128xbf16>
    %cst_14 = arith.constant dense<0.000000e+00> : vector<512x128xf32>
    %18 = tpu.matmul %16, %17, %cst_14 {dimension_numbers = #tpu.dot_dimension_numbers<[1], [0], [0], [1], [0, 0, 1, 1], [], []>} : vector<512x384xbf16>, vector<384x128xbf16>, vector<512x128xf32> -> vector<512x128xf32>
    %c0_15 = arith.constant 0 : index
    %c0_16 = arith.constant 0 : index
    %19 = vector.load %arg7[%c0_15, %c0_16] : memref<1x128xf32, #tpu.memory_space<vmem>>, vector<1x128xf32>
    %20 = vector.broadcast %19 : vector<1x128xf32> to vector<512x128xf32>
    %21 = arith.addf %18, %20 : vector<512x128xf32>
    %cst_17 = arith.constant 0.000000e+00 : f32
    %22 = vector.broadcast %cst_17 : f32 to vector<512x128xf32>
    %23 = arith.maximumf %21, %22 : vector<512x128xf32>
    %24 = arith.truncf %23 : vector<512x128xf32> to vector<512x128xbf16>
    %c0_18 = arith.constant 0 : index
    %c0_19 = arith.constant 0 : index
    %25 = vector.load %arg8[%c0_18, %c0_19] : memref<128x128xbf16, #tpu.memory_space<vmem>>, vector<128x128xbf16>
    %cst_20 = arith.constant dense<0.000000e+00> : vector<512x128xf32>
    %26 = tpu.matmul %24, %25, %cst_20 {dimension_numbers = #tpu.dot_dimension_numbers<[1], [0], [0], [1], [0, 0, 1, 1], [], []>} : vector<512x128xbf16>, vector<128x128xbf16>, vector<512x128xf32> -> vector<512x128xf32>
    %c0_21 = arith.constant 0 : index
    %c0_22 = arith.constant 0 : index
    %27 = vector.load %arg9[%c0_21, %c0_22] : memref<1x128xf32, #tpu.memory_space<vmem>>, vector<1x128xf32>
    %28 = vector.broadcast %27 : vector<1x128xf32> to vector<512x128xf32>
    %29 = arith.addf %26, %28 : vector<512x128xf32>
    %c0_23 = arith.constant 0 : index
    %c0_24 = arith.constant 0 : index
    %30 = vector.load %arg10[%c0_23, %c0_24] : memref<512x128xf32, #tpu.memory_space<vmem>>, vector<512x128xf32>
    tpu.vector_store %arg10[%c0_23, %c0_24], %29 {strides = array<i32>} : memref<512x128xf32, #tpu.memory_space<vmem>>, vector<512x128xf32>,
    return
  }
  func.func @transform_0(%arg0: i32) -> (i32, i32) {
    %c0_i32 = arith.constant 0 : i32
    %c0_i32_0 = arith.constant 0 : i32
    return %arg0, %c0_i32 : i32, i32
  }
  func.func @transform_1(%arg0: i32) -> (i32, i32) {
    %c0_i32 = arith.constant 0 : i32
    %c0_i32_0 = arith.constant 0 : i32
    %c0_i32_1 = arith.constant 0 : i32
    return %c0_i32, %c0_i32_0 : i32, i32
  }
  func.func @transform_2(%arg0: i32) -> (i32, i32) {
    %c0_i32 = arith.constant 0 : i32
    %c0_i32_0 = arith.constant 0 : i32
    %c0_i32_1 = arith.constant 0 : i32
    return %c0_i32, %c0_i32_0 : i32, i32
  }
  func.func @transform_3(%arg0: i32) -> (i32, i32) {
    %c0_i32 = arith.constant 0 : i32
    %c0_i32_0 = arith.constant 0 : i32
    %c0_i32_1 = arith.constant 0 : i32
    return %c0_i32, %c0_i32_0 : i32, i32
  }
  func.func @transform_4(%arg0: i32) -> (i32, i32) {
    %c0_i32 = arith.constant 0 : i32
    %c0_i32_0 = arith.constant 0 : i32
    %c0_i32_1 = arith.constant 0 : i32
    return %c0_i32, %c0_i32_0 : i32, i32
  }
  func.func @transform_5(%arg0: i32) -> (i32, i32) {
    %c0_i32 = arith.constant 0 : i32
    %c0_i32_0 = arith.constant 0 : i32
    %c0_i32_1 = arith.constant 0 : i32
    return %c0_i32, %c0_i32_0 : i32, i32
  }
  func.func @transform_6(%arg0: i32) -> (i32, i32) {
    %c0_i32 = arith.constant 0 : i32
    %c0_i32_0 = arith.constant 0 : i32
    %c0_i32_1 = arith.constant 0 : i32
    return %c0_i32, %c0_i32_0 : i32, i32
  }
  func.func @transform_7(%arg0: i32) -> (i32, i32) {
    %c0_i32 = arith.constant 0 : i32
    %c0_i32_0 = arith.constant 0 : i32
    %c0_i32_1 = arith.constant 0 : i32
    return %c0_i32, %c0_i32_0 : i32, i32
  }
  func.func @transform_8(%arg0: i32) -> (i32, i32) {
    %c0_i32 = arith.constant 0 : i32
    %c0_i32_0 = arith.constant 0 : i32
    %c0_i32_1 = arith.constant 0 : i32
    return %c0_i32, %c0_i32_0 : i32, i32
  }
  func.func @transform_9(%arg0: i32) -> (i32, i32) {
    %c0_i32 = arith.constant 0 : i32
    %c0_i32_0 = arith.constant 0 : i32
    return %arg0, %c0_i32 : i32, i32
  }
}

</mosaic_0001>

<llo_original>
// kernel: tpu_custom_call.1
$region0: #{tpu_custom_call.1}
  #allocation0 [shape = 'u32[]', space=smem, size = 0x4, offset = 0x4, fixed_abs, tag = 'smem constant byte address 0x4 - core index']
  #allocation1 [shape = 'u32[144,128]{1,0:T(1,128)}', space=vmem, size = 0x12000, scoped, tag = 'internal scratch']
  %s0 = inlined_call_operand.hbm [shape: bf16[512,128], index: 0, kind: input, shape index: {}]
  %s1 = inlined_call_operand.hbm [shape: bf16[128,512], index: 1, kind: input, shape index: {}]
  %s2 = inlined_call_operand.vmem [shape: f32[1,512], index: 2, kind: input, shape index: {}]
  %s3 = inlined_call_operand.hbm [shape: bf16[512,384], index: 3, kind: input, shape index: {}]
  %s4 = inlined_call_operand.vmem [shape: f32[1,384], index: 4, kind: input, shape index: {}]
  %s5 = inlined_call_operand.hbm [shape: bf16[384,128], index: 5, kind: input, shape index: {}]
  %s6 = inlined_call_operand.vmem [shape: f32[1,128], index: 6, kind: input, shape index: {}]
  %s7 = inlined_call_operand.hbm [shape: bf16[128,128], index: 7, kind: input, shape index: {}]
  %s8 = inlined_call_operand.vmem [shape: f32[1,128], index: 8, kind: input, shape index: {}]
  %s9 = inlined_call_operand.hbm [shape: f32[512,128], index: 9, kind: output, shape index: {}]
  %s10 = sld [smem:[#allocation0]]
  $region66: #{tpu_custom_call.1} parent=0
    _
  %s12 = ssub.s32 1, %s10
  %s13 = scalar_select 0, %s12, %s10
  $region1: #{tpu_custom_call.1} parent=0
    #allocation2 [shape = 'u8[131072]{0}', space=vmem, size = 0x20000, scoped, tag = 'input window, operand 0, single buffered']
    #allocation3 [shape = 's32[1]{0}', space=sflag, size = 0x4, scoped, tag = 'scoped memory for tpu_custom_call.1']
    #allocation4 [shape = 's32[1]{0}', space=sflag, size = 0x4, scoped, tag = 'scoped memory for tpu_custom_call.1']
    #allocation5 [shape = 'u8[131072]{0}', space=vmem, size = 0x20000, scoped, tag = 'input window, operand 1, single buffered']
    #allocation6 [shape = 's32[1]{0}', space=sflag, size = 0x4, scoped, tag = 'scoped memory for tpu_custom_call.1']
    #allocation7 [shape = 'u8[393216]{0}', space=vmem, size = 0x60000, scoped, tag = 'input window, operand 3, single buffered']
    #allocation8 [shape = 'u8[98304]{0}', space=vmem, size = 0x18000, scoped, tag = 'input window, operand 5, single buffered']
    #allocation9 [shape = 's32[1]{0}', space=sflag, size = 0x4, scoped, tag = 'scoped memory for tpu_custom_call.1']
    #allocation10 [shape = 'u8[32768]{0}', space=vmem, size = 0x8000, scoped, tag = 'input window, operand 7, single buffered']
    #allocation11 [shape = 'u8[262144]{0}', space=vmem, size = 0x40000, scoped, tag = 'output window, operand 0, single buffered']
    %14 = vsyncpa [#allocation3], 0
    %15 = vsyncpa [#allocation6], 0
    %16 = vsyncpa [#allocation9], 0
    %17 = vsyncpa [#allocation4], 0
    // Predicated region
    $region2: #{tpu_custom_call.1} parent=1 // pred_check
      _
    $region3: #{tpu_custom_call.1} parent=1 // pred_check_branch
      %19 = sbr.rel (0) target = $region5
    $region4: #{tpu_custom_call.1} parent=1 // pred_region
      %s21 = ssub.s32 4096, 4096
      %22 = vsyncadd [#allocation3], %s21
      %s23 = sshll.u32 [#allocation2], 4
      %s24 = int_to_ptr.vmem [resolvable:$true] %s23
      %29 = dma.hbm_to_vmem [thread:$0]  %s0, 4096, %s24, [#allocation3], 64, 64, 4
    $region5: #{tpu_custom_call.1} parent=1 // pred_fallthru
      _
    // Predicated region
    $region6: #{tpu_custom_call.1} parent=1 // pred_check
      _
    $region7: #{tpu_custom_call.1} parent=1 // pred_check_branch
      %31 = sbr.rel (0) target = $region9
    $region8: #{tpu_custom_call.1} parent=1 // pred_region
      %s33 = ssub.s32 4096, 4096
      %34 = vsyncadd [#allocation6], %s33
      %s35 = sshll.u32 [#allocation5], 4
      %s36 = int_to_ptr.vmem [resolvable:$true] %s35
      %41 = dma.hbm_to_vmem [thread:$0]  %s1, 4096, %s36, [#allocation6], 256, 256, 16
    $region9: #{tpu_custom_call.1} parent=1 // pred_fallthru
      _
    // Predicated region
    $region10: #{tpu_custom_call.1} parent=1 // pred_check
      _
    $region11: #{tpu_custom_call.1} parent=1 // pred_check_branch
      %43 = sbr.rel (0) target = $region13
    $region12: #{tpu_custom_call.1} parent=1 // pred_region
      _
    $region13: #{tpu_custom_call.1} parent=1 // pred_fallthru
      _
    // Predicated region
    $region14: #{tpu_custom_call.1} parent=1 // pred_check
      _
    $region15: #{tpu_custom_call.1} parent=1 // pred_check_branch
      %45 = sbr.rel (0) target = $region17
    $region16: #{tpu_custom_call.1} parent=1 // pred_region
      %s47 = ssub.s32 12288, 12288
      %48 = vsyncadd [#allocation6], %s47
      %s49 = sshll.u32 [#allocation7], 4
      %s50 = int_to_ptr.vmem [resolvable:$true] %s49
      %55 = dma.hbm_to_vmem [thread:$0]  %s3, 12288, %s50, [#allocation6], 192, 192, 12
    $region17: #{tpu_custom_call.1} parent=1 // pred_fallthru
      _
    // Predicated region
    $region18: #{tpu_custom_call.1} parent=1 // pred_check
      _
    $region19: #{tpu_custom_call.1} parent=1 // pred_check_branch
      %57 = sbr.rel (0) target = $region21
    $region20: #{tpu_custom_call.1} parent=1 // pred_region
      _
    $region21: #{tpu_custom_call.1} parent=1 // pred_fallthru
      _
    // Predicated region
    $region22: #{tpu_custom_call.1} parent=1 // pred_check
      _
    $region23: #{tpu_custom_call.1} parent=1 // pred_check_branch
      %59 = sbr.rel (0) target = $region25
    $region24: #{tpu_custom_call.1} parent=1 // pred_region
      %s61 = ssub.s32 3072, 3072
      %62 = vsyncadd [#allocation9], %s61
      %s63 = sshll.u32 [#allocation8], 4
      %s64 = int_to_ptr.vmem [resolvable:$true] %s63
      %69 = dma.hbm_to_vmem [thread:$0]  %s5, 3072, %s64, [#allocation9], 64, 64, 4
    $region25: #{tpu_custom_call.1} parent=1 // pred_fallthru
      _
    // Predicated region
    $region26: #{tpu_custom_call.1} parent=1 // pred_check
      _
    $region27: #{tpu_custom_call.1} parent=1 // pred_check_branch
      %71 = sbr.rel (0) target = $region29
    $region28: #{tpu_custom_call.1} parent=1 // pred_region
      _
    $region29: #{tpu_custom_call.1} parent=1 // pred_fallthru
      _
    // Predicated region
    $region30: #{tpu_custom_call.1} parent=1 // pred_check
      _
    $region31: #{tpu_custom_call.1} parent=1 // pred_check_branch
      %73 = sbr.rel (0) target = $region33
    $region32: #{tpu_custom_call.1} parent=1 // pred_region
      %s75 = ssub.s32 1024, 1024
      %76 = vsyncadd [#allocation9], %s75
      %s77 = sshll.u32 [#allocation10], 4
      %s78 = int_to_ptr.vmem [resolvable:$true] %s77
      %83 = dma.hbm_to_vmem [thread:$0]  %s7, 1024, %s78, [#allocation9], 64, 64, 4
    $region33: #{tpu_custom_call.1} parent=1 // pred_fallthru
      _
    // Predicated region
    $region34: #{tpu_custom_call.1} parent=1 // pred_check
      _
    $region35: #{tpu_custom_call.1} parent=1 // pred_check_branch
      %85 = sbr.rel (0) target = $region37
    $region36: #{tpu_custom_call.1} parent=1 // pred_region
      _
    $region37: #{tpu_custom_call.1} parent=1 // pred_fallthru
      _
    // Predicated region
    $region38: #{tpu_custom_call.1} parent=1 // pred_check
      _
    $region39: #{tpu_custom_call.1} parent=1 // pred_check_branch
      %87 = sbr.rel (0) target = $region41
    $region40: #{tpu_custom_call.1} parent=1 // pred_region
      %88 = dma.done [#allocation3], 4096
    $region41: #{tpu_custom_call.1} parent=1 // pred_fallthru
      _
    // Predicated region
    $region42: #{tpu_custom_call.1} parent=1 // pred_check
      _
    $region43: #{tpu_custom_call.1} parent=1 // pred_check_branch
      %90 = sbr.rel (0) target = $region45
    $region44: #{tpu_custom_call.1} parent=1 // pred_region
      %91 = dma.done [#allocation6], 4096
    $region45: #{tpu_custom_call.1} parent=1 // pred_fallthru
      _
    // Predicated region
    $region46: #{tpu_custom_call.1} parent=1 // pred_check
      _
    $region47: #{tpu_custom_call.1} parent=1 // pred_check_branch
      %93 = sbr.rel (0) target = $region49
    $region48: #{tpu_custom_call.1} parent=1 // pred_region
      %94 = dma.done [#allocation6], 12288
    $region49: #{tpu_custom_call.1} parent=1 // pred_fallthru
      _
    // Predicated region
    $region50: #{tpu_custom_call.1} parent=1 // pred_check
      _
    $region51: #{tpu_custom_call.1} parent=1 // pred_check_branch
      %96 = sbr.rel (0) target = $region53
    $region52: #{tpu_custom_call.1} parent=1 // pred_region
      %97 = dma.done [#allocation9], 3072
    $region53: #{tpu_custom_call.1} parent=1 // pred_fallthru
      _
    // Predicated region
    $region54: #{tpu_custom_call.1} parent=1 // pred_check
      _
    $region55: #{tpu_custom_call.1} parent=1 // pred_check_branch
      %99 = sbr.rel (0) target = $region57
    $region56: #{tpu_custom_call.1} parent=1 // pred_region
      %100 = dma.done [#allocation9], 1024
    $region57: #{tpu_custom_call.1} parent=1 // pred_fallthru
      _
    %v102 = vld [vmem:[#allocation2] sm:$0xf]
    %v103 = vld [vmem:[#allocation2 + $0x4] sm:$0xf]
    %v104 = vld [vmem:[#allocation2 + $0x8] sm:$0xf]
    %v105 = vld [vmem:[#allocation2 + $0xc] sm:$0xf]
    %v106 = vld [vmem:[#allocation2 + $0x10] sm:$0xf]
    %v107 = vld [vmem:[#allocation2 + $0x14] sm:$0xf]
    %v108 = vld [vmem:[#allocation2 + $0x18] sm:$0xf]
    %v109 = vld [vmem:[#allocation2 + $0x1c] sm:$0xf]
    %v110 = vld [vmem:[#allocation2 + $0x20] sm:$0xf]
    %v111 = vld [vmem:[#allocation2 + $0x24] sm:$0xf]
    %v112 = vld [vmem:[#allocation2 + $0x28] sm:$0xf]
    %v113 = vld [vmem:[#allocation2 + $0x2c] sm:$0xf]
    %v114 = vld [vmem:[#allocation2 + $0x30] sm:$0xf]
    %v115 = vld [vmem:[#allocation2 + $0x34] sm:$0xf]
    %v116 = vld [vmem:[#allocation2 + $0x38] sm:$0xf]
    %v117 = vld [vmem:[#allocation2 + $0x3c] sm:$0xf]
    %v118 = vld [vmem:[#allocation2 + $0x40] sm:$0xf]
    %v119 = vld [vmem:[#allocation2 + $0x44] sm:$0xf]
    %v120 = vld [vmem:[#allocation2 + $0x48] sm:$0xf]
    %v121 = vld [vmem:[#allocation2 + $0x4c] sm:$0xf]
    %v122 = vld [vmem:[#allocation2 + $0x50] sm:$0xf]
    %v123 = vld [vmem:[#allocation2 + $0x54] sm:$0xf]
    %v124 = vld [vmem:[#allocation2 + $0x58] sm:$0xf]
    %v125 = vld [vmem:[#allocation2 + $0x5c] sm:$0xf]
    %v126 = vld [vmem:[#allocation2 + $0x60] sm:$0xf]
    %v127 = vld [vmem:[#allocation2 + $0x64] sm:$0xf]
    %v128 = vld [vmem:[#allocation2 + $0x68] sm:$0xf]
    %v129 = vld [vmem:[#allocation2 + $0x6c] sm:$0xf]
    %v130 = vld [vmem:[#allocation2 + $0x70] sm:$0xf]
    %v131 = vld [vmem:[#allocation2 + $0x74] sm:$0xf]
    %v132 = vld [vmem:[#allocation2 + $0x78] sm:$0xf]
    %v133 = vld [vmem:[#allocation2 + $0x7c] sm:$0xf]
    %v134 = vld [vmem:[#allocation2 + $0x80] sm:$0xf]
    %v135 = vld [vmem:[#allocation2 + $0x84] sm:$0xf]
    %v136 = vld [vmem:[#allocation2 + $0x88] sm:$0xf]
    %v137 = vld [vmem:[#allocation2 + $0x8c] sm:$0xf]
    %v138 = vld [vmem:[#allocation2 + $0x90] sm:$0xf]
    %v139 = vld [vmem:[#allocation2 + $0x94] sm:$0xf]
    %v140 = vld [vmem:[#allocation2 + $0x98] sm:$0xf]
    %v141 = vld [vmem:[#allocation2 + $0x9c] sm:$0xf]
    %v142 = vld [vmem:[#allocation2 + $0xa0] sm:$0xf]
    %v143 = vld [vmem:[#allocation2 + $0xa4] sm:$0xf]
    %v144 = vld [vmem:[#allocation2 + $0xa8] sm:$0xf]
    %v145 = vld [vmem:[#allocation2 + $0xac] sm:$0xf]
    %v146 = vld [vmem:[#allocation2 + $0xb0] sm:$0xf]
    %v147 = vld [vmem:[#allocation2 + $0xb4] sm:$0xf]
    %v148 = vld [vmem:[#allocation2 + $0xb8] sm:$0xf]
    %v149 = vld [vmem:[#allocation2 + $0xbc] sm:$0xf]
    %v150 = vld [vmem:[#allocation2 + $0xc0] sm:$0xf]
    %v151 = vld [vmem:[#allocation2 + $0xc4] sm:$0xf]
    %v152 = vld [vmem:[#allocation2 + $0xc8] sm:$0xf]
    %v153 = vld [vmem:[#allocation2 + $0xcc] sm:$0xf]
    %v154 = vld [vmem:[#allocation2 + $0xd0] sm:$0xf]
    %v155 = vld [vmem:[#allocation2 + $0xd4] sm:$0xf]
    %v156 = vld [vmem:[#allocation2 + $0xd8] sm:$0xf]
    %v157 = vld [vmem:[#allocation2 + $0xdc] sm:$0xf]
    %v158 = vld [vmem:[#allocation2 + $0xe0] sm:$0xf]
    %v159 = vld [vmem:[#allocation2 + $0xe4] sm:$0xf]
    %v160 = vld [vmem:[#allocation2 + $0xe8] sm:$0xf]
    %v161 = vld [vmem:[#allocation2 + $0xec] sm:$0xf]
    %v162 = vld [vmem:[#allocation2 + $0xf0] sm:$0xf]
    %v163 = vld [vmem:[#allocation2 + $0xf4] sm:$0xf]
    %v164 = vld [vmem:[#allocation2 + $0xf8] sm:$0xf]
    %v165 = vld [vmem:[#allocation2 + $0xfc] sm:$0xf]
    %v166 = vld [vmem:[#allocation5] sm:$0xff]
    %v167 = vld [vmem:[#allocation5 + $0x8] sm:$0xff]
    %v168 = vld [vmem:[#allocation5 + $0x10] sm:$0xff]
    %v169 = vld [vmem:[#allocation5 + $0x18] sm:$0xff]
    %v170 = vld [vmem:[#allocation5 + $0x20] sm:$0xff]
    %v171 = vld [vmem:[#allocation5 + $0x28] sm:$0xff]
    %v172 = vld [vmem:[#allocation5 + $0x30] sm:$0xff]
    %v173 = vld [vmem:[#allocation5 + $0x38] sm:$0xff]
    %v174 = vld [vmem:[#allocation5 + $0x40] sm:$0xff]
    %v175 = vld [vmem:[#allocation5 + $0x48] sm:$0xff]
    %v176 = vld [vmem:[#allocation5 + $0x50] sm:$0xff]
    %v177 = vld [vmem:[#allocation5 + $0x58] sm:$0xff]
    %v178 = vld [vmem:[#allocation5 + $0x60] sm:$0xff]
    %v179 = vld [vmem:[#allocation5 + $0x68] sm:$0xff]
    %v180 = vld [vmem:[#allocation5 + $0x70] sm:$0xff]
    %v181 = vld [vmem:[#allocation5 + $0x78] sm:$0xff]
    %v182 = vld [vmem:[#allocation5 + $0x80] sm:$0xff]
    %v183 = vld [vmem:[#allocation5 + $0x88] sm:$0xff]
    %v184 = vld [vmem:[#allocation5 + $0x90] sm:$0xff]
    %v185 = vld [vmem:[#allocation5 + $0x98] sm:$0xff]
    %v186 = vld [vmem:[#allocation5 + $0xa0] sm:$0xff]
    %v187 = vld [vmem:[#allocation5 + $0xa8] sm:$0xff]
    %v188 = vld [vmem:[#allocation5 + $0xb0] sm:$0xff]
    %v189 = vld [vmem:[#allocation5 + $0xb8] sm:$0xff]
    %v190 = vld [vmem:[#allocation5 + $0xc0] sm:$0xff]
    %v191 = vld [vmem:[#allocation5 + $0xc8] sm:$0xff]
    %v192 = vld [vmem:[#allocation5 + $0xd0] sm:$0xff]
    %v193 = vld [vmem:[#allocation5 + $0xd8] sm:$0xff]
    %v194 = vld [vmem:[#allocation5 + $0xe0] sm:$0xff]
    %v195 = vld [vmem:[#allocation5 + $0xe8] sm:$0xff]
    %v196 = vld [vmem:[#allocation5 + $0xf0] sm:$0xff]
    %v197 = vld [vmem:[#allocation5 + $0xf8] sm:$0xff]
    %v198 = vld [vmem:[%s2] sm:$0xf]
    %v200 = vlaneseq
    %v201 = vshrl.u32 %v200, 7
    %v202 = vsub.s32 0, %v201
    %v203 = vrot.slane %v198, %v202
    %v204 = vlaneseq
    %v205 = vshrl.u32 %v204, 7
    %v206 = vsub.s32 1, %v205
    %v207 = vrot.slane %v198, %v206
    %v208 = vlaneseq
    %v209 = vshrl.u32 %v208, 7
    %v210 = vsub.s32 2, %v209
    %v211 = vrot.slane %v198, %v210
    %v212 = vlaneseq
    %v213 = vshrl.u32 %v212, 7
    %v214 = vsub.s32 3, %v213
    %v215 = vrot.slane %v198, %v214
    %v284 = vunpack.c.l.b16 %v102
    %v285 = vunpack.c.l.b16 %v103
    %v286 = vunpack.c.l.b16 %v104
    %v287 = vunpack.c.l.b16 %v105
    %v288 = vunpack.c.l.b16 %v106
    %v289 = vunpack.c.l.b16 %v107
    %v290 = vunpack.c.l.b16 %v108
    %v291 = vunpack.c.l.b16 %v109
    %v292 = vunpack.c.l.b16 %v110
    %v293 = vunpack.c.l.b16 %v111
    %v294 = vunpack.c.l.b16 %v112
    %v295 = vunpack.c.l.b16 %v113
    %v296 = vunpack.c.l.b16 %v114
    %v297 = vunpack.c.l.b16 %v115
    %v298 = vunpack.c.l.b16 %v116
    %v299 = vunpack.c.l.b16 %v117
    %v300 = vunpack.c.l.b16 %v118
    %v301 = vunpack.c.l.b16 %v119
    %v302 = vunpack.c.l.b16 %v120
    %v303 = vunpack.c.l.b16 %v121
    %v304 = vunpack.c.l.b16 %v122
    %v305 = vunpack.c.l.b16 %v123
    %v306 = vunpack.c.l.b16 %v124
    %v307 = vunpack.c.l.b16 %v125
    %v308 = vunpack.c.l.b16 %v126
    %v309 = vunpack.c.l.b16 %v127
    %v310 = vunpack.c.l.b16 %v128
    %v311 = vunpack.c.l.b16 %v129
    %v312 = vunpack.c.l.b16 %v130
    %v313 = vunpack.c.l.b16 %v131
    %v314 = vunpack.c.l.b16 %v132
    %v315 = vunpack.c.l.b16 %v133
    %v316 = vunpack.c.l.b16 %v134
    %v317 = vunpack.c.l.b16 %v135
    %v318 = vunpack.c.l.b16 %v136
    %v319 = vunpack.c.l.b16 %v137
    %v320 = vunpack.c.l.b16 %v138
    %v321 = vunpack.c.l.b16 %v139
    %v322 = vunpack.c.l.b16 %v140
    %v323 = vunpack.c.l.b16 %v141
    %v324 = vunpack.c.l.b16 %v142
    %v325 = vunpack.c.l.b16 %v143
    %v326 = vunpack.c.l.b16 %v144
    %v327 = vunpack.c.l.b16 %v145
    %v328 = vunpack.c.l.b16 %v146
    %v329 = vunpack.c.l.b16 %v147
    %v330 = vunpack.c.l.b16 %v148
    %v331 = vunpack.c.l.b16 %v149
    %v332 = vunpack.c.l.b16 %v150
    %v333 = vunpack.c.l.b16 %v151
    %v334 = vunpack.c.l.b16 %v152
    %v335 = vunpack.c.l.b16 %v153
    %v336 = vunpack.c.l.b16 %v154
    %v337 = vunpack.c.l.b16 %v155
    %v338 = vunpack.c.l.b16 %v156
    %v339 = vunpack.c.l.b16 %v157
    %v340 = vunpack.c.l.b16 %v158
    %v341 = vunpack.c.l.b16 %v159
    %v342 = vunpack.c.l.b16 %v160
    %v343 = vunpack.c.l.b16 %v161
    %v344 = vunpack.c.l.b16 %v162
    %v345 = vunpack.c.l.b16 %v163
    %v346 = vunpack.c.l.b16 %v164
    %v347 = vunpack.c.l.b16 %v165
    %v348 = vpack.c.b16 %v285, %v284
    %v349 = vpack.c.b16 %v287, %v286
    %v350 = vpack.c.b16 %v289, %v288
    %v351 = vpack.c.b16 %v291, %v290
    %v352 = vpack.c.b16 %v293, %v292
    %v353 = vpack.c.b16 %v295, %v294
    %v354 = vpack.c.b16 %v297, %v296
    %v355 = vpack.c.b16 %v299, %v298
    %v356 = vpack.c.b16 %v301, %v300
    %v357 = vpack.c.b16 %v303, %v302
    %v358 = vpack.c.b16 %v305, %v304
    %v359 = vpack.c.b16 %v307, %v306
    %v360 = vpack.c.b16 %v309, %v308
    %v361 = vpack.c.b16 %v311, %v310
    %v362 = vpack.c.b16 %v313, %v312
    %v363 = vpack.c.b16 %v315, %v314
    %v364 = vpack.c.b16 %v317, %v316
    %v365 = vpack.c.b16 %v319, %v318
    %v366 = vpack.c.b16 %v321, %v320
    %v367 = vpack.c.b16 %v323, %v322
    %v368 = vpack.c.b16 %v325, %v324
    %v369 = vpack.c.b16 %v327, %v326
    %v370 = vpack.c.b16 %v329, %v328
    %v371 = vpack.c.b16 %v331, %v330
    %v372 = vpack.c.b16 %v333, %v332
    %v373 = vpack.c.b16 %v335, %v334
    %v374 = vpack.c.b16 %v337, %v336
    %v375 = vpack.c.b16 %v339, %v338
    %v376 = vpack.c.b16 %v341, %v340
    %v377 = vpack.c.b16 %v343, %v342
    %v378 = vpack.c.b16 %v345, %v344
    %v379 = vpack.c.b16 %v347, %v346
    %v444 = vunpack.c.l.b16 %v166
    %v445 = vunpack.c.h.b16 %v166
    %v446 = vunpack.c.l.b16 %v167
    %v447 = vunpack.c.h.b16 %v167
    %v448 = vunpack.c.l.b16 %v168
    %v449 = vunpack.c.h.b16 %v168
    %v450 = vunpack.c.l.b16 %v169
    %v451 = vunpack.c.h.b16 %v169
    %v452 = vunpack.c.l.b16 %v170
    %v453 = vunpack.c.h.b16 %v170
    %v454 = vunpack.c.l.b16 %v171
    %v455 = vunpack.c.h.b16 %v171
    %v456 = vunpack.c.l.b16 %v172
    %v457 = vunpack.c.h.b16 %v172
    %v458 = vunpack.c.l.b16 %v173
    %v459 = vunpack.c.h.b16 %v173
    %v460 = vunpack.c.l.b16 %v174
    %v461 = vunpack.c.h.b16 %v174
    %v462 = vunpack.c.l.b16 %v175
    %v463 = vunpack.c.h.b16 %v175
    %v464 = vunpack.c.l.b16 %v176
    %v465 = vunpack.c.h.b16 %v176
    %v466 = vunpack.c.l.b16 %v177
    %v467 = vunpack.c.h.b16 %v177
    %v468 = vunpack.c.l.b16 %v178
    %v469 = vunpack.c.h.b16 %v178
    %v470 = vunpack.c.l.b16 %v179
    %v471 = vunpack.c.h.b16 %v179
    %v472 = vunpack.c.l.b16 %v180
    %v473 = vunpack.c.h.b16 %v180
    %v474 = vunpack.c.l.b16 %v181
    %v475 = vunpack.c.h.b16 %v181
    %v476 = vunpack.c.l.b16 %v182
    %v477 = vunpack.c.h.b16 %v182
    %v478 = vunpack.c.l.b16 %v183
    %v479 = vunpack.c.h.b16 %v183
    %v480 = vunpack.c.l.b16 %v184
    %v481 = vunpack.c.h.b16 %v184
    %v482 = vunpack.c.l.b16 %v185
    %v483 = vunpack.c.h.b16 %v185
    %v484 = vunpack.c.l.b16 %v186
    %v485 = vunpack.c.h.b16 %v186
    %v486 = vunpack.c.l.b16 %v187
    %v487 = vunpack.c.h.b16 %v187
    %v488 = vunpack.c.l.b16 %v188
    %v489 = vunpack.c.h.b16 %v188
    %v490 = vunpack.c.l.b16 %v189
    %v491 = vunpack.c.h.b16 %v189
    %v492 = vunpack.c.l.b16 %v190
    %v493 = vunpack.c.h.b16 %v190
    %v494 = vunpack.c.l.b16 %v191
    %v495 = vunpack.c.h.b16 %v191
    %v496 = vunpack.c.l.b16 %v192
    %v497 = vunpack.c.h.b16 %v192
    %v498 = vunpack.c.l.b16 %v193
    %v499 = vunpack.c.h.b16 %v193
    %v500 = vunpack.c.l.b16 %v194
    %v501 = vunpack.c.h.b16 %v194
    %v502 = vunpack.c.l.b16 %v195
    %v503 = vunpack.c.h.b16 %v195
    %v504 = vunpack.c.l.b16 %v196
    %v505 = vunpack.c.h.b16 %v196
    %v506 = vunpack.c.l.b16 %v197
    %v507 = vunpack.c.h.b16 %v197
    %v508 = vpack.c.b16 %v448, %v444
    %v509 = vpack.c.b16 %v449, %v445
    %v510 = vpack.c.b16 %v450, %v446
    %v511 = vpack.c.b16 %v451, %v447
    %v512 = vpack.c.b16 %v456, %v452
    %v513 = vpack.c.b16 %v457, %v453
    %v514 = vpack.c.b16 %v458, %v454
    %v515 = vpack.c.b16 %v459, %v455
    %v516 = vpack.c.b16 %v464, %v460
    %v517 = vpack.c.b16 %v465, %v461
    %v518 = vpack.c.b16 %v466, %v462
    %v519 = vpack.c.b16 %v467, %v463
    %v520 = vpack.c.b16 %v472, %v468
    %v521 = vpack.c.b16 %v473, %v469
    %v522 = vpack.c.b16 %v474, %v470
    %v523 = vpack.c.b16 %v475, %v471
    %v524 = vpack.c.b16 %v480, %v476
    %v525 = vpack.c.b16 %v481, %v477
    %v526 = vpack.c.b16 %v482, %v478
    %v527 = vpack.c.b16 %v483, %v479
    %v528 = vpack.c.b16 %v488, %v484
    %v529 = vpack.c.b16 %v489, %v485
    %v530 = vpack.c.b16 %v490, %v486
    %v531 = vpack.c.b16 %v491, %v487
    %v532 = vpack.c.b16 %v496, %v492
    %v533 = vpack.c.b16 %v497, %v493
    %v534 = vpack.c.b16 %v498, %v494
    %v535 = vpack.c.b16 %v499, %v495
    %v536 = vpack.c.b16 %v504, %v500
    %v537 = vpack.c.b16 %v505, %v501
    %v538 = vpack.c.b16 %v506, %v502
    %v539 = vpack.c.b16 %v507, %v503
    %572 = vmatprep.subr.bf16.mxu0 %v509
    %573 = vmatpush1.bf16.msra.mxu0 %v508
    %574 = vmatprep.subr.bf16.mxu0 %v513
    %575 = vmatpush1.bf16.msra.mxu0 %v512
    %576 = vmatprep.subr.bf16.mxu0 %v517
    %577 = vmatpush1.bf16.msra.mxu0 %v516
    %578 = vmatprep.subr.bf16.mxu0 %v521
    %579 = vmatpush1.bf16.msra.mxu0 %v520
    %580 = vmatprep.subr.bf16.mxu0 %v525
    %581 = vmatpush1.bf16.msra.mxu0 %v524
    %582 = vmatprep.subr.bf16.mxu0 %v529
    %583 = vmatpush1.bf16.msra.mxu0 %v528
    %584 = vmatprep.subr.bf16.mxu0 %v533
    %585 = vmatpush1.bf16.msra.mxu0 %v532
    %586 = vmatprep.subr.bf16.mxu0 %v537
    %587 = vmatpush1.bf16.msra.mxu0 %v536
    %588 = vmatprep.subr.bf16.mxu0 0
    %589 = vmatpush1.bf16.msra.mxu0 0
    %590 = vmatprep.subr.bf16.mxu0 0
    %591 = vmatpush1.bf16.msra.mxu0 0
    %592 = vmatprep.subr.bf16.mxu0 0
    %593 = vmatpush1.bf16.msra.mxu0 0
    %594 = vmatprep.subr.bf16.mxu0 0
    %595 = vmatpush1.bf16.msra.mxu0 0
    %596 = vmatprep.subr.bf16.mxu0 0
    %597 = vmatpush1.bf16.msra.mxu0 0
    %598 = vmatprep.subr.bf16.mxu0 0
    %599 = vmatpush1.bf16.msra.mxu0 0
    %600 = vmatprep.subr.bf16.mxu0 0
    %601 = vmatpush1.bf16.msra.mxu0 0
    %602 = vmatprep.subr.bf16.mxu0 0
    %603 = vmatpush1.bf16.msra.mxu0 0
    %604 = vmatprep.mubr.bf16.mxu0 0
    %605 = vmatmul.mubr.bf16.gmra.mrb[0].mxu0 %v348
    %v606 = vpop.f32.mrb[0].mxu0
    %v607 = vadd.f32 %v203, %v606
    %v608 = vpop.f32.mrb[0].mxu0
    %v609 = vadd.f32 %v207, %v608
    %v610 = vpop.f32.mrb[0].mxu0
    %v611 = vadd.f32 %v203, %v610
    %v612 = vpop.f32.mrb[0].mxu0
    %v613 = vadd.f32 %v207, %v612
    %614 = vmatprep.mubr.bf16.mxu0 0
    %615 = vmatmul.mubr.bf16.gmra.mrb[0].mxu0 %v349
    %v616 = vpop.f32.mrb[0].mxu0
    %v617 = vadd.f32 %v203, %v616
    %v618 = vpop.f32.mrb[0].mxu0
    %v619 = vadd.f32 %v207, %v618
    %v620 = vpop.f32.mrb[0].mxu0
    %v621 = vadd.f32 %v203, %v620
    %v622 = vpop.f32.mrb[0].mxu0
    %v623 = vadd.f32 %v207, %v622
    %624 = vmatprep.mubr.bf16.mxu0 0
    %625 = vmatmul.mubr.bf16.gmra.mrb[0].mxu0 %v350
    %v626 = vpop.f32.mrb[0].mxu0
    %v627 = vadd.f32 %v203, %v626
    %v628 = vpop.f32.mrb[0].mxu0
    %v629 = vadd.f32 %v207, %v628
    %v630 = vpop.f32.mrb[0].mxu0
    %v631 = vadd.f32 %v203, %v630
    %v632 = vpop.f32.mrb[0].mxu0
    %v633 = vadd.f32 %v207, %v632
    %634 = vmatprep.mubr.bf16.mxu0 0
    %635 = vmatmul.mubr.bf16.gmra.mrb[0].mxu0 %v351
    %v636 = vpop.f32.mrb[0].mxu0
    %v637 = vadd.f32 %v203, %v636
    %v638 = vpop.f32.mrb[0].mxu0
    %v639 = vadd.f32 %v207, %v638
    %v640 = vpop.f32.mrb[0].mxu0
    %v641 = vadd.f32 %v203, %v640
    %v642 = vpop.f32.mrb[0].mxu0
    %v643 = vadd.f32 %v207, %v642
    %644 = vmatprep.mubr.bf16.mxu0 0
    %645 = vmatmul.mubr.bf16.gmra.mrb[0].mxu0 %v352
    %v646 = vpop.f32.mrb[0].mxu0
    %v647 = vadd.f32 %v203, %v646
    %v648 = vpop.f32.mrb[0].mxu0
    %v649 = vadd.f32 %v207, %v648
    %v650 = vpop.f32.mrb[0].mxu0
    %v651 = vadd.f32 %v203, %v650
    %v652 = vpop.f32.mrb[0].mxu0
    %v653 = vadd.f32 %v207, %v652
    %654 = vmatprep.mubr.bf16.mxu0 0
    %655 = vmatmul.mubr.bf16.gmra.mrb[0].mxu0 %v353
    %v656 = vpop.f32.mrb[0].mxu0
    %v657 = vadd.f32 %v203, %v656
    %v658 = vpop.f32.mrb[0].mxu0
    %v659 = vadd.f32 %v207, %v658
    %v660 = vpop.f32.mrb[0].mxu0
    %v661 = vadd.f32 %v203, %v660
    %v662 = vpop.f32.mrb[0].mxu0
    %v663 = vadd.f32 %v207, %v662
    %664 = vmatprep.mubr.bf16.mxu0 0
    %665 = vmatmul.mubr.bf16.gmra.mrb[0].mxu0 %v354
    %v666 = vpop.f32.mrb[0].mxu0
    %v667 = vadd.f32 %v203, %v666
    %v668 = vpop.f32.mrb[0].mxu0
    %v669 = vadd.f32 %v207, %v668
    %v670 = vpop.f32.mrb[0].mxu0
    %v671 = vadd.f32 %v203, %v670
    %v672 = vpop.f32.mrb[0].mxu0
    %v673 = vadd.f32 %v207, %v672
    %674 = vmatprep.mubr.bf16.mxu0 0
    %675 = vmatmul.mubr.bf16.gmra.mrb[0].mxu0 %v355
    %v676 = vpop.f32.mrb[0].mxu0
    %v677 = vadd.f32 %v203, %v676
    %v678 = vpop.f32.mrb[0].mxu0
    %v679 = vadd.f32 %v207, %v678
    %v680 = vpop.f32.mrb[0].mxu0
    %v681 = vadd.f32 %v203, %v680
    %v682 = vpop.f32.mrb[0].mxu0
    %v683 = vadd.f32 %v207, %v682
    %684 = vmatprep.mubr.bf16.mxu0 0
    %685 = vmatmul.mubr.bf16.gmra.mrb[0].mxu0 %v356
    %v686 = vpop.f32.mrb[0].mxu0
    %v687 = vadd.f32 %v203, %v686
    %v688 = vpop.f32.mrb[0].mxu0
    %v689 = vadd.f32 %v207, %v688
    %v690 = vpop.f32.mrb[0].mxu0
    %v691 = vadd.f32 %v203, %v690
    %v692 = vpop.f32.mrb[0].mxu0
    %v693 = vadd.f32 %v207, %v692
    %694 = vmatprep.mubr.bf16.mxu0 0
    %695 = vmatmul.mubr.bf16.gmra.mrb[0].mxu0 %v357
    %v696 = vpop.f32.mrb[0].mxu0
    %v697 = vadd.f32 %v203, %v696
    %v698 = vpop.f32.mrb[0].mxu0
    %v699 = vadd.f32 %v207, %v698
    %v700 = vpop.f32.mrb[0].mxu0
    %v701 = vadd.f32 %v203, %v700
    %v702 = vpop.f32.mrb[0].mxu0
    %v703 = vadd.f32 %v207, %v702
    %704 = vmatprep.mubr.bf16.mxu0 0
    %705 = vmatmul.mubr.bf16.gmra.mrb[0].mxu0 %v358
    %v706 = vpop.f32.mrb[0].mxu0
    %v707 = vadd.f32 %v203, %v706
    %v708 = vpop.f32.mrb[0].mxu0
    %v709 = vadd.f32 %v207, %v708
    %v710 = vpop.f32.mrb[0].mxu0
    %v711 = vadd.f32 %v203, %v710
    %v712 = vpop.f32.mrb[0].mxu0
    %v713 = vadd.f32 %v207, %v712
    %714 = vmatprep.mubr.bf16.mxu0 0
    %715 = vmatmul.mubr.bf16.gmra.mrb[0].mxu0 %v359
    %v716 = vpop.f32.mrb[0].mxu0
    %v717 = vadd.f32 %v203, %v716
    %v718 = vpop.f32.mrb[0].mxu0
    %v719 = vadd.f32 %v207, %v718
    %v720 = vpop.f32.mrb[0].mxu0
    %v721 = vadd.f32 %v203, %v720
    %v722 = vpop.f32.mrb[0].mxu0
    %v723 = vadd.f32 %v207, %v722
    %724 = vmatprep.mubr.bf16.mxu0 0
    %725 = vmatmul.mubr.bf16.gmra.mrb[0].mxu0 %v360
    %v726 = vpop.f32.mrb[0].mxu0
    %v727 = vadd.f32 %v203, %v726
    %v728 = vpop.f32.mrb[0].mxu0
    %v729 = vadd.f32 %v207, %v728
    %v730 = vpop.f32.mrb[0].mxu0
    %v731 = vadd.f32 %v203, %v730
    %v732 = vpop.f32.mrb[0].mxu0
    %v733 = vadd.f32 %v207, %v732
    %734 = vmatprep.mubr.bf16.mxu0 0
    %735 = vmatmul.mubr.bf16.gmra.mrb[0].mxu0 %v361
    %v736 = vpop.f32.mrb[0].mxu0
    %v737 = vadd.f32 %v203, %v736
    %v738 = vpop.f32.mrb[0].mxu0
    %v739 = vadd.f32 %v207, %v738
    %v740 = vpop.f32.mrb[0].mxu0
    %v741 = vadd.f32 %v203, %v740
    %v742 = vpop.f32.mrb[0].mxu0
    %v743 = vadd.f32 %v207, %v742
    %744 = vmatprep.mubr.bf16.mxu0 0
    %745 = vmatmul.mubr.bf16.gmra.mrb[0].mxu0 %v362
    %v746 = vpop.f32.mrb[0].mxu0
    %v747 = vadd.f32 %v203, %v746
    %v748 = vpop.f32.mrb[0].mxu0
    %v749 = vadd.f32 %v207, %v748
    %v750 = vpop.f32.mrb[0].mxu0
    %v751 = vadd.f32 %v203, %v750
    %v752 = vpop.f32.mrb[0].mxu0
    %v753 = vadd.f32 %v207, %v752
    %754 = vmatprep.mubr.bf16.mxu0 0
    %755 = vmatmul.mubr.bf16.gmra.mrb[0].mxu0 %v363
    %v756 = vpop.f32.mrb[0].mxu0
    %v757 = vadd.f32 %v203, %v756
    %v758 = vpop.f32.mrb[0].mxu0
    %v759 = vadd.f32 %v207, %v758
    %v760 = vpop.f32.mrb[0].mxu0
    %v761 = vadd.f32 %v203, %v760
    %v762 = vpop.f32.mrb[0].mxu0
    %v763 = vadd.f32 %v207, %v762
    %764 = vmatprep.mubr.bf16.mxu0 0
    %765 = vmatmul.mubr.bf16.gmra.mrb[0].mxu0 %v364
    %v766 = vpop.f32.mrb[0].mxu0
    %v767 = vadd.f32 %v203, %v766
    %v768 = vpop.f32.mrb[0].mxu0
    %v769 = vadd.f32 %v207, %v768
    %v770 = vpop.f32.mrb[0].mxu0
    %v771 = vadd.f32 %v203, %v770
    %v772 = vpop.f32.mrb[0].mxu0
    %v773 = vadd.f32 %v207, %v772
    %774 = vmatprep.mubr.bf16.mxu0 0
    %775 = vmatmul.mubr.bf16.gmra.mrb[0].mxu0 %v365
    %v776 = vpop.f32.mrb[0].mxu0
    %v777 = vadd.f32 %v203, %v776
    %v778 = vpop.f32.mrb[0].mxu0
    %v779 = vadd.f32 %v207, %v778
    %v780 = vpop.f32.mrb[0].mxu0
    %v781 = vadd.f32 %v203, %v780
    %v782 = vpop.f32.mrb[0].mxu0
    %v783 = vadd.f32 %v207, %v782
    %784 = vmatprep.mubr.bf16.mxu0 0
    %785 = vmatmul.mubr.bf16.gmra.mrb[0].mxu0 %v366
    %v786 = vpop.f32.mrb[0].mxu0
    %v787 = vadd.f32 %v203, %v786
    %v788 = vpop.f32.mrb[0].mxu0
    %v789 = vadd.f32 %v207, %v788
    %v790 = vpop.f32.mrb[0].mxu0
    %v791 = vadd.f32 %v203, %v790
    %v792 = vpop.f32.mrb[0].mxu0
    %v793 = vadd.f32 %v207, %v792
    %794 = vmatprep.mubr.bf16.mxu0 0
    %795 = vmatmul.mubr.bf16.gmra.mrb[0].mxu0 %v367
    %v796 = vpop.f32.mrb[0].mxu0
    %v797 = vadd.f32 %v203, %v796
    %v798 = vpop.f32.mrb[0].mxu0
    %v799 = vadd.f32 %v207, %v798
    %v800 = vpop.f32.mrb[0].mxu0
    %v801 = vadd.f32 %v203, %v800
    %v802 = vpop.f32.mrb[0].mxu0
    %v803 = vadd.f32 %v207, %v802
    %804 = vmatprep.mubr.bf16.mxu0 0
    %805 = vmatmul.mubr.bf16.gmra.mrb[0].mxu0 %v368
    %v806 = vpop.f32.mrb[0].mxu0
    %v807 = vadd.f32 %v203, %v806
    %v808 = vpop.f32.mrb[0].mxu0
    %v809 = vadd.f32 %v207, %v808
    %v810 = vpop.f32.mrb[0].mxu0
    %v811 = vadd.f32 %v203, %v810
    %v812 = vpop.f32.mrb[0].mxu0
    %v813 = vadd.f32 %v207, %v812
    %814 = vmatprep.mubr.bf16.mxu0 0
    %815 = vmatmul.mubr.bf16.gmra.mrb[0].mxu0 %v369
    %v816 = vpop.f32.mrb[0].mxu0
    %v817 = vadd.f32 %v203, %v816
    %v818 = vpop.f32.mrb[0].mxu0
    %v819 = vadd.f32 %v207, %v818
    %v820 = vpop.f32.mrb[0].mxu0
    %v821 = vadd.f32 %v203, %v820
    %v822 = vpop.f32.mrb[0].mxu0
    %v823 = vadd.f32 %v207, %v822
    %824 = vmatprep.mubr.bf16.mxu0 0
    %825 = vmatmul.mubr.bf16.gmra.mrb[0].mxu0 %v370
    %v826 = vpop.f32.mrb[0].mxu0
    %v827 = vadd.f32 %v203, %v826
    %v828 = vpop.f32.mrb[0].mxu0
    %v829 = vadd.f32 %v207, %v828
    %v830 = vpop.f32.mrb[0].mxu0
    %v831 = vadd.f32 %v203, %v830
    %v832 = vpop.f32.mrb[0].mxu0
    %v833 = vadd.f32 %v207, %v832
    %834 = vmatprep.mubr.bf16.mxu0 0
    %835 = vmatmul.mubr.bf16.gmra.mrb[0].mxu0 %v371
    %v836 = vpop.f32.mrb[0].mxu0
    %v837 = vadd.f32 %v203, %v836
    %v838 = vpop.f32.mrb[0].mxu0
    %v839 = vadd.f32 %v207, %v838
    %v840 = vpop.f32.mrb[0].mxu0
    %v841 = vadd.f32 %v203, %v840
    %v842 = vpop.f32.mrb[0].mxu0
    %v843 = vadd.f32 %v207, %v842
    %844 = vmatprep.mubr.bf16.mxu0 0
    %845 = vmatmul.mubr.bf16.gmra.mrb[0].mxu0 %v372
    %v846 = vpop.f32.mrb[0].mxu0
    %v847 = vadd.f32 %v203, %v846
    %v848 = vpop.f32.mrb[0].mxu0
    %v849 = vadd.f32 %v207, %v848
    %v850 = vpop.f32.mrb[0].mxu0
    %v851 = vadd.f32 %v203, %v850
    %v852 = vpop.f32.mrb[0].mxu0
    %v853 = vadd.f32 %v207, %v852
    %854 = vmatprep.mubr.bf16.mxu0 0
    %855 = vmatmul.mubr.bf16.gmra.mrb[0].mxu0 %v373
    %v856 = vpop.f32.mrb[0].mxu0
    %v857 = vadd.f32 %v203, %v856
    %v858 = vpop.f32.mrb[0].mxu0
    %v859 = vadd.f32 %v207, %v858
    %v860 = vpop.f32.mrb[0].mxu0
    %v861 = vadd.f32 %v203, %v860
    %v862 = vpop.f32.mrb[0].mxu0
    %v863 = vadd.f32 %v207, %v862
    %864 = vmatprep.mubr.bf16.mxu0 0
    %865 = vmatmul.mubr.bf16.gmra.mrb[0].mxu0 %v374
    %v866 = vpop.f32.mrb[0].mxu0
    %v867 = vadd.f32 %v203, %v866
    %v868 = vpop.f32.mrb[0].mxu0
    %v869 = vadd.f32 %v207, %v868
    %v870 = vpop.f32.mrb[0].mxu0
    %v871 = vadd.f32 %v203, %v870
    %v872 = vpop.f32.mrb[0].mxu0
    %v873 = vadd.f32 %v207, %v872
    %874 = vmatprep.mubr.bf16.mxu0 0
    %875 = vmatmul.mubr.bf16.gmra.mrb[0].mxu0 %v375
    %v876 = vpop.f32.mrb[0].mxu0
    %v877 = vadd.f32 %v203, %v876
    %v878 = vpop.f32.mrb[0].mxu0
    %v879 = vadd.f32 %v207, %v878
    %v880 = vpop.f32.mrb[0].mxu0
    %v881 = vadd.f32 %v203, %v880
    %v882 = vpop.f32.mrb[0].mxu0
    %v883 = vadd.f32 %v207, %v882
    %884 = vmatprep.mubr.bf16.mxu0 0
    %885 = vmatmul.mubr.bf16.gmra.mrb[0].mxu0 %v376
    %v886 = vpop.f32.mrb[0].mxu0
    %v887 = vadd.f32 %v203, %v886
    %v888 = vpop.f32.mrb[0].mxu0
    %v889 = vadd.f32 %v207, %v888
    %v890 = vpop.f32.mrb[0].mxu0
    %v891 = vadd.f32 %v203, %v890
    %v892 = vpop.f32.mrb[0].mxu0
    %v893 = vadd.f32 %v207, %v892
    %894 = vmatprep.mubr.bf16.mxu0 0
    %895 = vmatmul.mubr.bf16.gmra.mrb[0].mxu0 %v377
    %v896 = vpop.f32.mrb[0].mxu0
    %v897 = vadd.f32 %v203, %v896
    %v898 = vpop.f32.mrb[0].mxu0
    %v899 = vadd.f32 %v207, %v898
    %v900 = vpop.f32.mrb[0].mxu0
    %v901 = vadd.f32 %v203, %v900
    %v902 = vpop.f32.mrb[0].mxu0
    %v903 = vadd.f32 %v207, %v902
    %904 = vmatprep.mubr.bf16.mxu0 0
    %905 = vmatmul.mubr.bf16.gmra.mrb[0].mxu0 %v378
    %v906 = vpop.f32.mrb[0].mxu0
    %v907 = vadd.f32 %v203, %v906
    %v908 = vpop.f32.mrb[0].mxu0
    %v909 = vadd.f32 %v207, %v908
    %v910 = vpop.f32.mrb[0].mxu0
    %v911 = vadd.f32 %v203, %v910
    %v912 = vpop.f32.mrb[0].mxu0
    %v913 = vadd.f32 %v207, %v912
    %914 = vmatprep.mubr.bf16.mxu0 0
    %915 = vmatmul.mubr.bf16.gmra.mrb[0].mxu0 %v379
    %v916 = vpop.f32.mrb[0].mxu0
    %v917 = vadd.f32 %v203, %v916
    %v918 = vpop.f32.mrb[0].mxu0
    %v919 = vadd.f32 %v207, %v918
    %v920 = vpop.f32.mrb[0].mxu0
    %v921 = vadd.f32 %v203, %v920
    %v922 = vpop.f32.mrb[0].mxu0
    %v923 = vadd.f32 %v207, %v922
    %924 = vdwg.mxu0
    %925 = vmatprep.subr.bf16.mxu0 %v511
    %926 = vmatpush1.bf16.msra.mxu0 %v510
    %927 = vmatprep.subr.bf16.mxu0 %v515
    %928 = vmatpush1.bf16.msra.mxu0 %v514
    %929 = vmatprep.subr.bf16.mxu0 %v519
    %930 = vmatpush1.bf16.msra.mxu0 %v518
    %931 = vmatprep.subr.bf16.mxu0 %v523
    %932 = vmatpush1.bf16.msra.mxu0 %v522
    %933 = vmatprep.subr.bf16.mxu0 %v527
    %934 = vmatpush1.bf16.msra.mxu0 %v526
    %935 = vmatprep.subr.bf16.mxu0 %v531
    %936 = vmatpush1.bf16.msra.mxu0 %v530
    %937 = vmatprep.subr.bf16.mxu0 %v535
    %938 = vmatpush1.bf16.msra.mxu0 %v534
    %939 = vmatprep.subr.bf16.mxu0 %v539
    %940 = vmatpush1.bf16.msra.mxu0 %v538
    %941 = vmatprep.subr.bf16.mxu0 0
    %942 = vmatpush1.bf16.msra.mxu0 0
    %943 = vmatprep.subr.bf16.mxu0 0
    %944 = vmatpush1.bf16.msra.mxu0 0
    %945 = vmatprep.subr.bf16.mxu0 0
    %946 = vmatpush1.bf16.msra.mxu0 0
    %947 = vmatprep.subr.bf16.mxu0 0
    %948 = vmatpush1.bf16.msra.mxu0 0
    %949 = vmatprep.subr.bf16.mxu0 0
    %950 = vmatpush1.bf16.msra.mxu0 0
    %951 = vmatprep.subr.bf16.mxu0 0
    %952 = vmatpush1.bf16.msra.mxu0 0
    %953 = vmatprep.subr.bf16.mxu0 0
    %954 = vmatpush1.bf16.msra.mxu0 0
    %955 = vmatprep.subr.bf16.mxu0 0
    %956 = vmatpush1.bf16.msra.mxu0 0
    %957 = vmatprep.mubr.bf16.mxu0 0
    %958 = vmatmul.mubr.bf16.gmra.mrb[0].mxu0 %v348
    %v959 = vpop.f32.mrb[0].mxu0
    %v960 = vadd.f32 %v211, %v959
    %v961 = vpop.f32.mrb[0].mxu0
    %v962 = vadd.f32 %v215, %v961
    %v963 = vpop.f32.mrb[0].mxu0
    %v964 = vadd.f32 %v211, %v963
    %v965 = vpop.f32.mrb[0].mxu0
    %v966 = vadd.f32 %v215, %v965
    %967 = vmatprep.mubr.bf16.mxu0 0
    %968 = vmatmul.mubr.bf16.gmra.mrb[0].mxu0 %v349
    %v969 = vpop.f32.mrb[0].mxu0
    %v970 = vadd.f32 %v211, %v969
    %v971 = vpop.f32.mrb[0].mxu0
    %v972 = vadd.f32 %v215, %v971
    %v973 = vpop.f32.mrb[0].mxu0
    %v974 = vadd.f32 %v211, %v973
    %v975 = vpop.f32.mrb[0].mxu0
    %v976 = vadd.f32 %v215, %v975
    %977 = vmatprep.mubr.bf16.mxu0 0
    %978 = vmatmul.mubr.bf16.gmra.mrb[0].mxu0 %v350
    %v979 = vpop.f32.mrb[0].mxu0
    %v980 = vadd.f32 %v211, %v979
    %v981 = vpop.f32.mrb[0].mxu0
    %v982 = vadd.f32 %v215, %v981
    %v983 = vpop.f32.mrb[0].mxu0
    %v984 = vadd.f32 %v211, %v983
    %v985 = vpop.f32.mrb[0].mxu0
    %v986 = vadd.f32 %v215, %v985
    %987 = vmatprep.mubr.bf16.mxu0 0
    %988 = vmatmul.mubr.bf16.gmra.mrb[0].mxu0 %v351
    %v989 = vpop.f32.mrb[0].mxu0
    %v990 = vadd.f32 %v211, %v989
    %v991 = vpop.f32.mrb[0].mxu0
    %v992 = vadd.f32 %v215, %v991
    %v993 = vpop.f32.mrb[0].mxu0
    %v994 = vadd.f32 %v211, %v993
    %v995 = vpop.f32.mrb[0].mxu0
    %v996 = vadd.f32 %v215, %v995
    %997 = vmatprep.mubr.bf16.mxu0 0
    %998 = vmatmul.mubr.bf16.gmra.mrb[0].mxu0 %v352
    %v999 = vpop.f32.mrb[0].mxu0
    %v1000 = vadd.f32 %v211, %v999
    %v1001 = vpop.f32.mrb[0].mxu0
    %v1002 = vadd.f32 %v215, %v1001
    %v1003 = vpop.f32.mrb[0].mxu0
    %v1004 = vadd.f32 %v211, %v1003
    %v1005 = vpop.f32.mrb[0].mxu0
    %v1006 = vadd.f32 %v215, %v1005
    %1007 = vmatprep.mubr.bf16.mxu0 0
    %1008 = vmatmul.mubr.bf16.gmra.mrb[0].mxu0 %v353
    %v1009 = vpop.f32.mrb[0].mxu0
    %v1010 = vadd.f32 %v211, %v1009
    %v1011 = vpop.f32.mrb[0].mxu0
    %v1012 = vadd.f32 %v215, %v1011
    %v1013 = vpop.f32.mrb[0].mxu0
    %v1014 = vadd.f32 %v211, %v1013
    %v1015 = vpop.f32.mrb[0].mxu0
    %v1016 = vadd.f32 %v215, %v1015
    %1017 = vmatprep.mubr.bf16.mxu0 0
    %1018 = vmatmul.mubr.bf16.gmra.mrb[0].mxu0 %v354
    %v1019 = vpop.f32.mrb[0].mxu0
    %v1020 = vadd.f32 %v211, %v1019
    %v1021 = vpop.f32.mrb[0].mxu0
    %v1022 = vadd.f32 %v215, %v1021
    %v1023 = vpop.f32.mrb[0].mxu0
    %v1024 = vadd.f32 %v211, %v1023
    %v1025 = vpop.f32.mrb[0].mxu0
    %v1026 = vadd.f32 %v215, %v1025
    %1027 = vmatprep.mubr.bf16.mxu0 0
    %1028 = vmatmul.mubr.bf16.gmra.mrb[0].mxu0 %v355
    %v1029 = vpop.f32.mrb[0].mxu0
    %v1030 = vadd.f32 %v211, %v1029
    %v1031 = vpop.f32.mrb[0].mxu0
    %v1032 = vadd.f32 %v215, %v1031
    %v1033 = vpop.f32.mrb[0].mxu0
    %v1034 = vadd.f32 %v211, %v1033
    %v1035 = vpop.f32.mrb[0].mxu0
    %v1036 = vadd.f32 %v215, %v1035
    %1037 = vmatprep.mubr.bf16.mxu0 0
    %1038 = vmatmul.mubr.bf16.gmra.mrb[0].mxu0 %v356
    %v1039 = vpop.f32.mrb[0].mxu0
    %v1040 = vadd.f32 %v211, %v1039
    %v1041 = vpop.f32.mrb[0].mxu0
    %v1042 = vadd.f32 %v215, %v1041
    %v1043 = vpop.f32.mrb[0].mxu0
    %v1044 = vadd.f32 %v211, %v1043
    %v1045 = vpop.f32.mrb[0].mxu0
    %v1046 = vadd.f32 %v215, %v1045
    %1047 = vmatprep.mubr.bf16.mxu0 0
    %1048 = vmatmul.mubr.bf16.gmra.mrb[0].mxu0 %v357
    %v1049 = vpop.f32.mrb[0].mxu0
    %v1050 = vadd.f32 %v211, %v1049
    %v1051 = vpop.f32.mrb[0].mxu0
    %v1052 = vadd.f32 %v215, %v1051
    %v1053 = vpop.f32.mrb[0].mxu0
    %v1054 = vadd.f32 %v211, %v1053
    %v1055 = vpop.f32.mrb[0].mxu0
    %v1056 = vadd.f32 %v215, %v1055
    %1057 = vmatprep.mubr.bf16.mxu0 0
    %1058 = vmatmul.mubr.bf16.gmra.mrb[0].mxu0 %v358
    %v1059 = vpop.f32.mrb[0].mxu0
    %v1060 = vadd.f32 %v211, %v1059
    %v1061 = vpop.f32.mrb[0].mxu0
    %v1062 = vadd.f32 %v215, %v1061
    %v1063 = vpop.f32.mrb[0].mxu0
    %v1064 = vadd.f32 %v211, %v1063
    %v1065 = vpop.f32.mrb[0].mxu0
    %v1066 = vadd.f32 %v215, %v1065
    %1067 = vmatprep.mubr.bf16.mxu0 0
    %1068 = vmatmul.mubr.bf16.gmra.mrb[0].mxu0 %v359
    %v1069 = vpop.f32.mrb[0].mxu0
    %v1070 = vadd.f32 %v211, %v1069
    %v1071 = vpop.f32.mrb[0].mxu0
    %v1072 = vadd.f32 %v215, %v1071
    %v1073 = vpop.f32.mrb[0].mxu0
    %v1074 = vadd.f32 %v211, %v1073
    %v1075 = vpop.f32.mrb[0].mxu0
    %v1076 = vadd.f32 %v215, %v1075
    %1077 = vmatprep.mubr.bf16.mxu0 0
    %1078 = vmatmul.mubr.bf16.gmra.mrb[0].mxu0 %v360
    %v1079 = vpop.f32.mrb[0].mxu0
    %v1080 = vadd.f32 %v211, %v1079
    %v1081 = vpop.f32.mrb[0].mxu0
    %v1082 = vadd.f32 %v215, %v1081
    %v1083 = vpop.f32.mrb[0].mxu0
    %v1084 = vadd.f32 %v211, %v1083
    %v1085 = vpop.f32.mrb[0].mxu0
    %v1086 = vadd.f32 %v215, %v1085
    %1087 = vmatprep.mubr.bf16.mxu0 0
    %1088 = vmatmul.mubr.bf16.gmra.mrb[0].mxu0 %v361
    %v1089 = vpop.f32.mrb[0].mxu0
    %v1090 = vadd.f32 %v211, %v1089
    %v1091 = vpop.f32.mrb[0].mxu0
    %v1092 = vadd.f32 %v215, %v1091
    %v1093 = vpop.f32.mrb[0].mxu0
    %v1094 = vadd.f32 %v211, %v1093
    %v1095 = vpop.f32.mrb[0].mxu0
    %v1096 = vadd.f32 %v215, %v1095
    %1097 = vmatprep.mubr.bf16.mxu0 0
    %1098 = vmatmul.mubr.bf16.gmra.mrb[0].mxu0 %v362
    %v1099 = vpop.f32.mrb[0].mxu0
    %v1100 = vadd.f32 %v211, %v1099
    %v1101 = vpop.f32.mrb[0].mxu0
    %v1102 = vadd.f32 %v215, %v1101
    %v1103 = vpop.f32.mrb[0].mxu0
    %v1104 = vadd.f32 %v211, %v1103
    %v1105 = vpop.f32.mrb[0].mxu0
    %v1106 = vadd.f32 %v215, %v1105
    %1107 = vmatprep.mubr.bf16.mxu0 0
    %1108 = vmatmul.mubr.bf16.gmra.mrb[0].mxu0 %v363
    %v1109 = vpop.f32.mrb[0].mxu0
    %v1110 = vadd.f32 %v211, %v1109
    %v1111 = vpop.f32.mrb[0].mxu0
    %v1112 = vadd.f32 %v215, %v1111
    %v1113 = vpop.f32.mrb[0].mxu0
    %v1114 = vadd.f32 %v211, %v1113
    %v1115 = vpop.f32.mrb[0].mxu0
    %v1116 = vadd.f32 %v215, %v1115
    %1117 = vmatprep.mubr.bf16.mxu0 0
    %1118 = vmatmul.mubr.bf16.gmra.mrb[0].mxu0 %v364
    %v1119 = vpop.f32.mrb[0].mxu0
    %v1120 = vadd.f32 %v211, %v1119
    %v1121 = vpop.f32.mrb[0].mxu0
    %v1122 = vadd.f32 %v215, %v1121
    %v1123 = vpop.f32.mrb[0].mxu0
    %v1124 = vadd.f32 %v211, %v1123
    %v1125 = vpop.f32.mrb[0].mxu0
    %v1126 = vadd.f32 %v215, %v1125
    %1127 = vmatprep.mubr.bf16.mxu0 0
    %1128 = vmatmul.mubr.bf16.gmra.mrb[0].mxu0 %v365
    %v1129 = vpop.f32.mrb[0].mxu0
    %v1130 = vadd.f32 %v211, %v1129
    %v1131 = vpop.f32.mrb[0].mxu0
    %v1132 = vadd.f32 %v215, %v1131
    %v1133 = vpop.f32.mrb[0].mxu0
    %v1134 = vadd.f32 %v211, %v1133
    %v1135 = vpop.f32.mrb[0].mxu0
    %v1136 = vadd.f32 %v215, %v1135
    %1137 = vmatprep.mubr.bf16.mxu0 0
    %1138 = vmatmul.mubr.bf16.gmra.mrb[0].mxu0 %v366
    %v1139 = vpop.f32.mrb[0].mxu0
    %v1140 = vadd.f32 %v211, %v1139
    %v1141 = vpop.f32.mrb[0].mxu0
    %v1142 = vadd.f32 %v215, %v1141
    %v1143 = vpop.f32.mrb[0].mxu0
    %v1144 = vadd.f32 %v211, %v1143
    %v1145 = vpop.f32.mrb[0].mxu0
    %v1146 = vadd.f32 %v215, %v1145
    %1147 = vmatprep.mubr.bf16.mxu0 0
    %1148 = vmatmul.mubr.bf16.gmra.mrb[0].mxu0 %v367
    %v1149 = vpop.f32.mrb[0].mxu0
    %v1150 = vadd.f32 %v211, %v1149
    %v1151 = vpop.f32.mrb[0].mxu0
    %v1152 = vadd.f32 %v215, %v1151
    %v1153 = vpop.f32.mrb[0].mxu0
    %v1154 = vadd.f32 %v211, %v1153
    %v1155 = vpop.f32.mrb[0].mxu0
    %v1156 = vadd.f32 %v215, %v1155
    %1157 = vmatprep.mubr.bf16.mxu0 0
    %1158 = vmatmul.mubr.bf16.gmra.mrb[0].mxu0 %v368
    %v1159 = vpop.f32.mrb[0].mxu0
    %v1160 = vadd.f32 %v211, %v1159
    %v1161 = vpop.f32.mrb[0].mxu0
    %v1162 = vadd.f32 %v215, %v1161
    %v1163 = vpop.f32.mrb[0].mxu0
    %v1164 = vadd.f32 %v211, %v1163
    %v1165 = vpop.f32.mrb[0].mxu0
    %v1166 = vadd.f32 %v215, %v1165
    %1167 = vmatprep.mubr.bf16.mxu0 0
    %1168 = vmatmul.mubr.bf16.gmra.mrb[0].mxu0 %v369
    %v1169 = vpop.f32.mrb[0].mxu0
    %v1170 = vadd.f32 %v211, %v1169
    %v1171 = vpop.f32.mrb[0].mxu0
    %v1172 = vadd.f32 %v215, %v1171
    %v1173 = vpop.f32.mrb[0].mxu0
    %v1174 = vadd.f32 %v211, %v1173
    %v1175 = vpop.f32.mrb[0].mxu0
    %v1176 = vadd.f32 %v215, %v1175
    %1177 = vmatprep.mubr.bf16.mxu0 0
    %1178 = vmatmul.mubr.bf16.gmra.mrb[0].mxu0 %v370
    %v1179 = vpop.f32.mrb[0].mxu0
    %v1180 = vadd.f32 %v211, %v1179
    %v1181 = vpop.f32.mrb[0].mxu0
    %v1182 = vadd.f32 %v215, %v1181
    %v1183 = vpop.f32.mrb[0].mxu0
    %v1184 = vadd.f32 %v211, %v1183
    %v1185 = vpop.f32.mrb[0].mxu0
    %v1186 = vadd.f32 %v215, %v1185
    %1187 = vmatprep.mubr.bf16.mxu0 0
    %1188 = vmatmul.mubr.bf16.gmra.mrb[0].mxu0 %v371
    %v1189 = vpop.f32.mrb[0].mxu0
    %v1190 = vadd.f32 %v211, %v1189
    %v1191 = vpop.f32.mrb[0].mxu0
    %v1192 = vadd.f32 %v215, %v1191
    %v1193 = vpop.f32.mrb[0].mxu0
    %v1194 = vadd.f32 %v211, %v1193
    %v1195 = vpop.f32.mrb[0].mxu0
    %v1196 = vadd.f32 %v215, %v1195
    %1197 = vmatprep.mubr.bf16.mxu0 0
    %1198 = vmatmul.mubr.bf16.gmra.mrb[0].mxu0 %v372
    %v1199 = vpop.f32.mrb[0].mxu0
    %v1200 = vadd.f32 %v211, %v1199
    %v1201 = vpop.f32.mrb[0].mxu0
    %v1202 = vadd.f32 %v215, %v1201
    %v1203 = vpop.f32.mrb[0].mxu0
    %v1204 = vadd.f32 %v211, %v1203
    %v1205 = vpop.f32.mrb[0].mxu0
    %v1206 = vadd.f32 %v215, %v1205
    %1207 = vmatprep.mubr.bf16.mxu0 0
    %1208 = vmatmul.mubr.bf16.gmra.mrb[0].mxu0 %v373
    %v1209 = vpop.f32.mrb[0].mxu0
    %v1210 = vadd.f32 %v211, %v1209
    %v1211 = vpop.f32.mrb[0].mxu0
    %v1212 = vadd.f32 %v215, %v1211
    %v1213 = vpop.f32.mrb[0].mxu0
    %v1214 = vadd.f32 %v211, %v1213
    %v1215 = vpop.f32.mrb[0].mxu0
    %v1216 = vadd.f32 %v215, %v1215
    %1217 = vmatprep.mubr.bf16.mxu0 0
    %1218 = vmatmul.mubr.bf16.gmra.mrb[0].mxu0 %v374
    %v1219 = vpop.f32.mrb[0].mxu0
    %v1220 = vadd.f32 %v211, %v1219
    %v1221 = vpop.f32.mrb[0].mxu0
    %v1222 = vadd.f32 %v215, %v1221
    %v1223 = vpop.f32.mrb[0].mxu0
    %v1224 = vadd.f32 %v211, %v1223
    %v1225 = vpop.f32.mrb[0].mxu0
    %v1226 = vadd.f32 %v215, %v1225
    %1227 = vmatprep.mubr.bf16.mxu0 0
    %1228 = vmatmul.mubr.bf16.gmra.mrb[0].mxu0 %v375
    %v1229 = vpop.f32.mrb[0].mxu0
    %v1230 = vadd.f32 %v211, %v1229
    %v1231 = vpop.f32.mrb[0].mxu0
    %v1232 = vadd.f32 %v215, %v1231
    %v1233 = vpop.f32.mrb[0].mxu0
    %v1234 = vadd.f32 %v211, %v1233
    %v1235 = vpop.f32.mrb[0].mxu0
    %v1236 = vadd.f32 %v215, %v1235
    %1237 = vmatprep.mubr.bf16.mxu0 0
    %1238 = vmatmul.mubr.bf16.gmra.mrb[0].mxu0 %v376
    %v1239 = vpop.f32.mrb[0].mxu0
    %v1240 = vadd.f32 %v211, %v1239
    %v1241 = vpop.f32.mrb[0].mxu0
    %v1242 = vadd.f32 %v215, %v1241
    %v1243 = vpop.f32.mrb[0].mxu0
    %v1244 = vadd.f32 %v211, %v1243
    %v1245 = vpop.f32.mrb[0].mxu0
    %v1246 = vadd.f32 %v215, %v1245
    %1247 = vmatprep.mubr.bf16.mxu0 0
    %1248 = vmatmul.mubr.bf16.gmra.mrb[0].mxu0 %v377
    %v1249 = vpop.f32.mrb[0].mxu0
    %v1250 = vadd.f32 %v211, %v1249
    %v1251 = vpop.f32.mrb[0].mxu0
    %v1252 = vadd.f32 %v215, %v1251
    %v1253 = vpop.f32.mrb[0].mxu0
    %v1254 = vadd.f32 %v211, %v1253
    %v1255 = vpop.f32.mrb[0].mxu0
    %v1256 = vadd.f32 %v215, %v1255
    %1257 = vmatprep.mubr.bf16.mxu0 0
    %1258 = vmatmul.mubr.bf16.gmra.mrb[0].mxu0 %v378
    %v1259 = vpop.f32.mrb[0].mxu0
    %v1260 = vadd.f32 %v211, %v1259
    %v1261 = vpop.f32.mrb[0].mxu0
    %v1262 = vadd.f32 %v215, %v1261
    %v1263 = vpop.f32.mrb[0].mxu0
    %v1264 = vadd.f32 %v211, %v1263
    %v1265 = vpop.f32.mrb[0].mxu0
    %v1266 = vadd.f32 %v215, %v1265
    %1267 = vmatprep.mubr.bf16.mxu0 0
    %1268 = vmatmul.mubr.bf16.gmra.mrb[0].mxu0 %v379
    %v1269 = vpop.f32.mrb[0].mxu0
    %v1270 = vadd.f32 %v211, %v1269
    %v1271 = vpop.f32.mrb[0].mxu0
    %v1272 = vadd.f32 %v215, %v1271
    %v1273 = vpop.f32.mrb[0].mxu0
    %v1274 = vadd.f32 %v211, %v1273
    %v1275 = vpop.f32.mrb[0].mxu0
    %v1276 = vadd.f32 %v215, %v1275
    %1277 = vdwg.mxu0
    %v1278 = vmax.f32 %v607, 0.0
    %v1279 = vmax.f32 %v609, 0.0
    %v1280 = vmax.f32 %v960, 0.0
    %v1281 = vmax.f32 %v962, 0.0
    %v1282 = vmax.f32 %v611, 0.0
    %v1283 = vmax.f32 %v613, 0.0
    %v1284 = vmax.f32 %v964, 0.0
    %v1285 = vmax.f32 %v966, 0.0
    %v1286 = vmax.f32 %v617, 0.0
    %v1287 = vmax.f32 %v619, 0.0
    %v1288 = vmax.f32 %v970, 0.0
    %v1289 = vmax.f32 %v972, 0.0
    %v1290 = vmax.f32 %v621, 0.0
    %v1291 = vmax.f32 %v623, 0.0
    %v1292 = vmax.f32 %v974, 0.0
    %v1293 = vmax.f32 %v976, 0.0
    %v1294 = vmax.f32 %v627, 0.0
    %v1295 = vmax.f32 %v629, 0.0
    %v1296 = vmax.f32 %v980, 0.0
    %v1297 = vmax.f32 %v982, 0.0
    %v1298 = vmax.f32 %v631, 0.0
    %v1299 = vmax.f32 %v633, 0.0
    %v1300 = vmax.f32 %v984, 0.0
    %v1301 = vmax.f32 %v986, 0.0
    %v1302 = vmax.f32 %v637, 0.0
    %v1303 = vmax.f32 %v639, 0.0
    %v1304 = vmax.f32 %v990, 0.0
    %v1305 = vmax.f32 %v992, 0.0
    %v1306 = vmax.f32 %v641, 0.0
    %v1307 = vmax.f32 %v643, 0.0
    %v1308 = vmax.f32 %v994, 0.0
    %v1309 = vmax.f32 %v996, 0.0
    %v1310 = vmax.f32 %v647, 0.0
    %v1311 = vmax.f32 %v649, 0.0
    %v1312 = vmax.f32 %v1000, 0.0
    %v1313 = vmax.f32 %v1002, 0.0
    %v1314 = vmax.f32 %v651, 0.0
    %v1315 = vmax.f32 %v653, 0.0
    %v1316 = vmax.f32 %v1004, 0.0
    %v1317 = vmax.f32 %v1006, 0.0
    %v1318 = vmax.f32 %v657, 0.0
    %v1319 = vmax.f32 %v659, 0.0
    %v1320 = vmax.f32 %v1010, 0.0
    %v1321 = vmax.f32 %v1012, 0.0
    %v1322 = vmax.f32 %v661, 0.0
    %v1323 = vmax.f32 %v663, 0.0
    %v1324 = vmax.f32 %v1014, 0.0
    %v1325 = vmax.f32 %v1016, 0.0
    %v1326 = vmax.f32 %v667, 0.0
    %v1327 = vmax.f32 %v669, 0.0
    %v1328 = vmax.f32 %v1020, 0.0
    %v1329 = vmax.f32 %v1022, 0.0
    %v1330 = vmax.f32 %v671, 0.0
    %v1331 = vmax.f32 %v673, 0.0
    %v1332 = vmax.f32 %v1024, 0.0
    %v1333 = vmax.f32 %v1026, 0.0
    %v1334 = vmax.f32 %v677, 0.0
    %v1335 = vmax.f32 %v679, 0.0
    %v1336 = vmax.f32 %v1030, 0.0
    %v1337 = vmax.f32 %v1032, 0.0
    %v1338 = vmax.f32 %v681, 0.0
    %v1339 = vmax.f32 %v683, 0.0
    %v1340 = vmax.f32 %v1034, 0.0
    %v1341 = vmax.f32 %v1036, 0.0
    %v1342 = vmax.f32 %v687, 0.0
    %v1343 = vmax.f32 %v689, 0.0
    %v1344 = vmax.f32 %v1040, 0.0
    %v1345 = vmax.f32 %v1042, 0.0
    %v1346 = vmax.f32 %v691, 0.0
    %v1347 = vmax.f32 %v693, 0.0
    %v1348 = vmax.f32 %v1044, 0.0
    %v1349 = vmax.f32 %v1046, 0.0
    %v1350 = vmax.f32 %v697, 0.0
    %v1351 = vmax.f32 %v699, 0.0
    %v1352 = vmax.f32 %v1050, 0.0
    %v1353 = vmax.f32 %v1052, 0.0
    %v1354 = vmax.f32 %v701, 0.0
    %v1355 = vmax.f32 %v703, 0.0
    %v1356 = vmax.f32 %v1054, 0.0
    %v1357 = vmax.f32 %v1056, 0.0
    %v1358 = vmax.f32 %v707, 0.0
    %v1359 = vmax.f32 %v709, 0.0
    %v1360 = vmax.f32 %v1060, 0.0
    %v1361 = vmax.f32 %v1062, 0.0
    %v1362 = vmax.f32 %v711, 0.0
    %v1363 = vmax.f32 %v713, 0.0
    %v1364 = vmax.f32 %v1064, 0.0
    %v1365 = vmax.f32 %v1066, 0.0
    %v1366 = vmax.f32 %v717, 0.0
    %v1367 = vmax.f32 %v719, 0.0
    %v1368 = vmax.f32 %v1070, 0.0
    %v1369 = vmax.f32 %v1072, 0.0
    %v1370 = vmax.f32 %v721, 0.0
    %v1371 = vmax.f32 %v723, 0.0
    %v1372 = vmax.f32 %v1074, 0.0
    %v1373 = vmax.f32 %v1076, 0.0
    %v1374 = vmax.f32 %v727, 0.0
    %v1375 = vmax.f32 %v729, 0.0
    %v1376 = vmax.f32 %v1080, 0.0
    %v1377 = vmax.f32 %v1082, 0.0
    %v1378 = vmax.f32 %v731, 0.0
    %v1379 = vmax.f32 %v733, 0.0
    %v1380 = vmax.f32 %v1084, 0.0
    %v1381 = vmax.f32 %v1086, 0.0
    %v1382 = vmax.f32 %v737, 0.0
    %v1383 = vmax.f32 %v739, 0.0
    %v1384 = vmax.f32 %v1090, 0.0
    %v1385 = vmax.f32 %v1092, 0.0
    %v1386 = vmax.f32 %v741, 0.0
    %v1387 = vmax.f32 %v743, 0.0
    %v1388 = vmax.f32 %v1094, 0.0
    %v1389 = vmax.f32 %v1096, 0.0
    %v1390 = vmax.f32 %v747, 0.0
    %v1391 = vmax.f32 %v749, 0.0
    %v1392 = vmax.f32 %v1100, 0.0
    %v1393 = vmax.f32 %v1102, 0.0
    %v1394 = vmax.f32 %v751, 0.0
    %v1395 = vmax.f32 %v753, 0.0
    %v1396 = vmax.f32 %v1104, 0.0
    %v1397 = vmax.f32 %v1106, 0.0
    %v1398 = vmax.f32 %v757, 0.0
    %v1399 = vmax.f32 %v759, 0.0
    %v1400 = vmax.f32 %v1110, 0.0
    %v1401 = vmax.f32 %v1112, 0.0
    %v1402 = vmax.f32 %v761, 0.0
    %v1403 = vmax.f32 %v763, 0.0
    %v1404 = vmax.f32 %v1114, 0.0
    %v1405 = vmax.f32 %v1116, 0.0
    %v1406 = vmax.f32 %v767, 0.0
    %v1407 = vmax.f32 %v769, 0.0
    %v1408 = vmax.f32 %v1120, 0.0
    %v1409 = vmax.f32 %v1122, 0.0
    %v1410 = vmax.f32 %v771, 0.0
    %v1411 = vmax.f32 %v773, 0.0
    %v1412 = vmax.f32 %v1124, 0.0
    %v1413 = vmax.f32 %v1126, 0.0
    %v1414 = vmax.f32 %v777, 0.0
    %v1415 = vmax.f32 %v779, 0.0
    %v1416 = vmax.f32 %v1130, 0.0
    %v1417 = vmax.f32 %v1132, 0.0
    %v1418 = vmax.f32 %v781, 0.0
    %v1419 = vmax.f32 %v783, 0.0
    %v1420 = vmax.f32 %v1134, 0.0
    %v1421 = vmax.f32 %v1136, 0.0
    %v1422 = vmax.f32 %v787, 0.0
    %v1423 = vmax.f32 %v789, 0.0
    %v1424 = vmax.f32 %v1140, 0.0
    %v1425 = vmax.f32 %v1142, 0.0
    %v1426 = vmax.f32 %v791, 0.0
    %v1427 = vmax.f32 %v793, 0.0
    %v1428 = vmax.f32 %v1144, 0.0
    %v1429 = vmax.f32 %v1146, 0.0
    %v1430 = vmax.f32 %v797, 0.0
    %v1431 = vmax.f32 %v799, 0.0
    %v1432 = vmax.f32 %v1150, 0.0
    %v1433 = vmax.f32 %v1152, 0.0
    %v1434 = vmax.f32 %v801, 0.0
    %v1435 = vmax.f32 %v803, 0.0
    %v1436 = vmax.f32 %v1154, 0.0
    %v1437 = vmax.f32 %v1156, 0.0
    %v1438 = vmax.f32 %v807, 0.0
    %v1439 = vmax.f32 %v809, 0.0
    %v1440 = vmax.f32 %v1160, 0.0
    %v1441 = vmax.f32 %v1162, 0.0
    %v1442 = vmax.f32 %v811, 0.0
    %v1443 = vmax.f32 %v813, 0.0
    %v1444 = vmax.f32 %v1164, 0.0
    %v1445 = vmax.f32 %v1166, 0.0
    %v1446 = vmax.f32 %v817, 0.0
    %v1447 = vmax.f32 %v819, 0.0
    %v1448 = vmax.f32 %v1170, 0.0
    %v1449 = vmax.f32 %v1172, 0.0
    %v1450 = vmax.f32 %v821, 0.0
    %v1451 = vmax.f32 %v823, 0.0
    %v1452 = vmax.f32 %v1174, 0.0
    %v1453 = vmax.f32 %v1176, 0.0
    %v1454 = vmax.f32 %v827, 0.0
    %v1455 = vmax.f32 %v829, 0.0
    %v1456 = vmax.f32 %v1180, 0.0
    %v1457 = vmax.f32 %v1182, 0.0
    %v1458 = vmax.f32 %v831, 0.0
    %v1459 = vmax.f32 %v833, 0.0
    %v1460 = vmax.f32 %v1184, 0.0
    %v1461 = vmax.f32 %v1186, 0.0
    %v1462 = vmax.f32 %v837, 0.0
    %v1463 = vmax.f32 %v839, 0.0
    %v1464 = vmax.f32 %v1190, 0.0
    %v1465 = vmax.f32 %v1192, 0.0
    %v1466 = vmax.f32 %v841, 0.0
    %v1467 = vmax.f32 %v843, 0.0
    %v1468 = vmax.f32 %v1194, 0.0
    %v1469 = vmax.f32 %v1196, 0.0
    %v1470 = vmax.f32 %v847, 0.0
    %v1471 = vmax.f32 %v849, 0.0
    %v1472 = vmax.f32 %v1200, 0.0
    %v1473 = vmax.f32 %v1202, 0.0
    %v1474 = vmax.f32 %v851, 0.0
    %v1475 = vmax.f32 %v853, 0.0
    %v1476 = vmax.f32 %v1204, 0.0
    %v1477 = vmax.f32 %v1206, 0.0
    %v1478 = vmax.f32 %v857, 0.0
    %v1479 = vmax.f32 %v859, 0.0
    %v1480 = vmax.f32 %v1210, 0.0
    %v1481 = vmax.f32 %v1212, 0.0
    %v1482 = vmax.f32 %v861, 0.0
    %v1483 = vmax.f32 %v863, 0.0
    %v1484 = vmax.f32 %v1214, 0.0
    %v1485 = vmax.f32 %v1216, 0.0
    %v1486 = vmax.f32 %v867, 0.0
    %v1487 = vmax.f32 %v869, 0.0
    %v1488 = vmax.f32 %v1220, 0.0
    %v1489 = vmax.f32 %v1222, 0.0
    %v1490 = vmax.f32 %v871, 0.0
    %v1491 = vmax.f32 %v873, 0.0
    %v1492 = vmax.f32 %v1224, 0.0
    %v1493 = vmax.f32 %v1226, 0.0
    %v1494 = vmax.f32 %v877, 0.0
    %v1495 = vmax.f32 %v879, 0.0
    %v1496 = vmax.f32 %v1230, 0.0
    %v1497 = vmax.f32 %v1232, 0.0
    %v1498 = vmax.f32 %v881, 0.0
    %v1499 = vmax.f32 %v883, 0.0
    %v1500 = vmax.f32 %v1234, 0.0
    %v1501 = vmax.f32 %v1236, 0.0
    %v1502 = vmax.f32 %v887, 0.0
    %v1503 = vmax.f32 %v889, 0.0
    %v1504 = vmax.f32 %v1240, 0.0
    %v1505 = vmax.f32 %v1242, 0.0
    %v1506 = vmax.f32 %v891, 0.0
    %v1507 = vmax.f32 %v893, 0.0
    %v1508 = vmax.f32 %v1244, 0.0
    %v1509 = vmax.f32 %v1246, 0.0
    %v1510 = vmax.f32 %v897, 0.0
    %v1511 = vmax.f32 %v899, 0.0
    %v1512 = vmax.f32 %v1250, 0.0
    %v1513 = vmax.f32 %v1252, 0.0
    %v1514 = vmax.f32 %v901, 0.0
    %v1515 = vmax.f32 %v903, 0.0
    %v1516 = vmax.f32 %v1254, 0.0
    %v1517 = vmax.f32 %v1256, 0.0
    %v1518 = vmax.f32 %v907, 0.0
    %v1519 = vmax.f32 %v909, 0.0
    %v1520 = vmax.f32 %v1260, 0.0
    %v1521 = vmax.f32 %v1262, 0.0
    %v1522 = vmax.f32 %v911, 0.0
    %v1523 = vmax.f32 %v913, 0.0
    %v1524 = vmax.f32 %v1264, 0.0
    %v1525 = vmax.f32 %v1266, 0.0
    %v1526 = vmax.f32 %v917, 0.0
    %v1527 = vmax.f32 %v919, 0.0
    %v1528 = vmax.f32 %v1270, 0.0
    %v1529 = vmax.f32 %v1272, 0.0
    %v1530 = vmax.f32 %v921, 0.0
    %v1531 = vmax.f32 %v923, 0.0
    %v1532 = vmax.f32 %v1274, 0.0
    %v1533 = vmax.f32 %v1276, 0.0
    %v1534 = vpack.c.bf16 %v1282, %v1278
    %v1535 = vpack.c.bf16 %v1283, %v1279
    %v1536 = vpack.c.bf16 %v1284, %v1280
    %v1537 = vpack.c.bf16 %v1285, %v1281
    %v1538 = vpack.c.bf16 %v1290, %v1286
    %v1539 = vpack.c.bf16 %v1291, %v1287
    %v1540 = vpack.c.bf16 %v1292, %v1288
    %v1541 = vpack.c.bf16 %v1293, %v1289
    %v1542 = vpack.c.bf16 %v1298, %v1294
    %v1543 = vpack.c.bf16 %v1299, %v1295
    %v1544 = vpack.c.bf16 %v1300, %v1296
    %v1545 = vpack.c.bf16 %v1301, %v1297
    %v1546 = vpack.c.bf16 %v1306, %v1302
    %v1547 = vpack.c.bf16 %v1307, %v1303
    %v1548 = vpack.c.bf16 %v1308, %v1304
    %v1549 = vpack.c.bf16 %v1309, %v1305
    %v1550 = vpack.c.bf16 %v1314, %v1310
    %v1551 = vpack.c.bf16 %v1315, %v1311
    %v1552 = vpack.c.bf16 %v1316, %v1312
    %v1553 = vpack.c.bf16 %v1317, %v1313
    %v1554 = vpack.c.bf16 %v1322, %v1318
    %v1555 = vpack.c.bf16 %v1323, %v1319
    %v1556 = vpack.c.bf16 %v1324, %v1320
    %v1557 = vpack.c.bf16 %v1325, %v1321
    %v1558 = vpack.c.bf16 %v1330, %v1326
    %v1559 = vpack.c.bf16 %v1331, %v1327
    %v1560 = vpack.c.bf16 %v1332, %v1328
    %v1561 = vpack.c.bf16 %v1333, %v1329
    %v1562 = vpack.c.bf16 %v1338, %v1334
    %v1563 = vpack.c.bf16 %v1339, %v1335
    %v1564 = vpack.c.bf16 %v1340, %v1336
    %v1565 = vpack.c.bf16 %v1341, %v1337
    %v1566 = vpack.c.bf16 %v1346, %v1342
    %v1567 = vpack.c.bf16 %v1347, %v1343
    %v1568 = vpack.c.bf16 %v1348, %v1344
    %v1569 = vpack.c.bf16 %v1349, %v1345
    %v1570 = vpack.c.bf16 %v1354, %v1350
    %v1571 = vpack.c.bf16 %v1355, %v1351
    %v1572 = vpack.c.bf16 %v1356, %v1352
    %v1573 = vpack.c.bf16 %v1357, %v1353
    %v1574 = vpack.c.bf16 %v1362, %v1358
    %v1575 = vpack.c.bf16 %v1363, %v1359
    %v1576 = vpack.c.bf16 %v1364, %v1360
    %v1577 = vpack.c.bf16 %v1365, %v1361
    %v1578 = vpack.c.bf16 %v1370, %v1366
    %v1579 = vpack.c.bf16 %v1371, %v1367
    %v1580 = vpack.c.bf16 %v1372, %v1368
    %v1581 = vpack.c.bf16 %v1373, %v1369
    %v1582 = vpack.c.bf16 %v1378, %v1374
    %v1583 = vpack.c.bf16 %v1379, %v1375
    %v1584 = vpack.c.bf16 %v1380, %v1376
    %v1585 = vpack.c.bf16 %v1381, %v1377
    %v1586 = vpack.c.bf16 %v1386, %v1382
    %v1587 = vpack.c.bf16 %v1387, %v1383
    %v1588 = vpack.c.bf16 %v1388, %v1384
    %v1589 = vpack.c.bf16 %v1389, %v1385
    %v1590 = vpack.c.bf16 %v1394, %v1390
    %v1591 = vpack.c.bf16 %v1395, %v1391
    %v1592 = vpack.c.bf16 %v1396, %v1392
    %v1593 = vpack.c.bf16 %v1397, %v1393
    %v1594 = vpack.c.bf16 %v1402, %v1398
    %v1595 = vpack.c.bf16 %v1403, %v1399
    %v1596 = vpack.c.bf16 %v1404, %v1400
    %v1597 = vpack.c.bf16 %v1405, %v1401
    %v1598 = vpack.c.bf16 %v1410, %v1406
    %v1599 = vpack.c.bf16 %v1411, %v1407
    %v1600 = vpack.c.bf16 %v1412, %v1408
    %v1601 = vpack.c.bf16 %v1413, %v1409
    %v1602 = vpack.c.bf16 %v1418, %v1414
    %v1603 = vpack.c.bf16 %v1419, %v1415
    %v1604 = vpack.c.bf16 %v1420, %v1416
    %v1605 = vpack.c.bf16 %v1421, %v1417
    %v1606 = vpack.c.bf16 %v1426, %v1422
    %v1607 = vpack.c.bf16 %v1427, %v1423
    %v1608 = vpack.c.bf16 %v1428, %v1424
    %v1609 = vpack.c.bf16 %v1429, %v1425
    %v1610 = vpack.c.bf16 %v1434, %v1430
    %v1611 = vpack.c.bf16 %v1435, %v1431
    %v1612 = vpack.c.bf16 %v1436, %v1432
    %v1613 = vpack.c.bf16 %v1437, %v1433
    %v1614 = vpack.c.bf16 %v1442, %v1438
    %v1615 = vpack.c.bf16 %v1443, %v1439
    %v1616 = vpack.c.bf16 %v1444, %v1440
    %v1617 = vpack.c.bf16 %v1445, %v1441
    %v1618 = vpack.c.bf16 %v1450, %v1446
    %v1619 = vpack.c.bf16 %v1451, %v1447
    %v1620 = vpack.c.bf16 %v1452, %v1448
    %v1621 = vpack.c.bf16 %v1453, %v1449
    %v1622 = vpack.c.bf16 %v1458, %v1454
    %v1623 = vpack.c.bf16 %v1459, %v1455
    %v1624 = vpack.c.bf16 %v1460, %v1456
    %v1625 = vpack.c.bf16 %v1461, %v1457
    %v1626 = vpack.c.bf16 %v1466, %v1462
    %v1627 = vpack.c.bf16 %v1467, %v1463
    %v1628 = vpack.c.bf16 %v1468, %v1464
    %v1629 = vpack.c.bf16 %v1469, %v1465
    %v1630 = vpack.c.bf16 %v1474, %v1470
    %v1631 = vpack.c.bf16 %v1475, %v1471
    %v1632 = vpack.c.bf16 %v1476, %v1472
    %v1633 = vpack.c.bf16 %v1477, %v1473
    %v1634 = vpack.c.bf16 %v1482, %v1478
    %v1635 = vpack.c.bf16 %v1483, %v1479
    %v1636 = vpack.c.bf16 %v1484, %v1480
    %v1637 = vpack.c.bf16 %v1485, %v1481
    %v1638 = vpack.c.bf16 %v1490, %v1486
    %v1639 = vpack.c.bf16 %v1491, %v1487
    %v1640 = vpack.c.bf16 %v1492, %v1488
    %v1641 = vpack.c.bf16 %v1493, %v1489
    %v1642 = vpack.c.bf16 %v1498, %v1494
    %v1643 = vpack.c.bf16 %v1499, %v1495
    %v1644 = vpack.c.bf16 %v1500, %v1496
    %v1645 = vpack.c.bf16 %v1501, %v1497
    %v1646 = vpack.c.bf16 %v1506, %v1502
    %v1647 = vpack.c.bf16 %v1507, %v1503
    %v1648 = vpack.c.bf16 %v1508, %v1504
    %v1649 = vpack.c.bf16 %v1509, %v1505
    %v1650 = vpack.c.bf16 %v1514, %v1510
    %v1651 = vpack.c.bf16 %v1515, %v1511
    %v1652 = vpack.c.bf16 %v1516, %v1512
    %v1653 = vpack.c.bf16 %v1517, %v1513
    %v1654 = vpack.c.bf16 %v1522, %v1518
    %v1655 = vpack.c.bf16 %v1523, %v1519
    %v1656 = vpack.c.bf16 %v1524, %v1520
    %v1657 = vpack.c.bf16 %v1525, %v1521
    %v1658 = vpack.c.bf16 %v1530, %v1526
    %v1659 = vpack.c.bf16 %v1531, %v1527
    %v1660 = vpack.c.bf16 %v1532, %v1528
    %v1661 = vpack.c.bf16 %v1533, %v1529
    %v1662 = vld [vmem:[#allocation7] sm:$0xff]
    %v1663 = vld [vmem:[#allocation7 + $0x8] sm:$0xf]
    %v1664 = vld [vmem:[#allocation7 + $0xc] sm:$0xff]
    %v1665 = vld [vmem:[#allocation7 + $0x14] sm:$0xf]
    %v1666 = vld [vmem:[#allocation7 + $0x18] sm:$0xff]
    %v1667 = vld [vmem:[#allocation7 + $0x20] sm:$0xf]
    %v1668 = vld [vmem:[#allocation7 + $0x24] sm:$0xff]
    %v1669 = vld [vmem:[#allocation7 + $0x2c] sm:$0xf]
    %v1670 = vld [vmem:[#allocation7 + $0x30] sm:$0xff]
    %v1671 = vld [vmem:[#allocation7 + $0x38] sm:$0xf]
    %v1672 = vld [vmem:[#allocation7 + $0x3c] sm:$0xff]
    %v1673 = vld [vmem:[#allocation7 + $0x44] sm:$0xf]
    %v1674 = vld [vmem:[#allocation7 + $0x48] sm:$0xff]
    %v1675 = vld [vmem:[#allocation7 + $0x50] sm:$0xf]
    %v1676 = vld [vmem:[#allocation7 + $0x54] sm:$0xff]
    %v1677 = vld [vmem:[#allocation7 + $0x5c] sm:$0xf]
    %v1678 = vld [vmem:[#allocation7 + $0x60] sm:$0xff]
    %v1679 = vld [vmem:[#allocation7 + $0x68] sm:$0xf]
    %v1680 = vld [vmem:[#allocation7 + $0x6c] sm:$0xff]
    %v1681 = vld [vmem:[#allocation7 + $0x74] sm:$0xf]
    %v1682 = vld [vmem:[#allocation7 + $0x78] sm:$0xff]
    %v1683 = vld [vmem:[#allocation7 + $0x80] sm:$0xf]
    %v1684 = vld [vmem:[#allocation7 + $0x84] sm:$0xff]
    %v1685 = vld [vmem:[#allocation7 + $0x8c] sm:$0xf]
    %v1686 = vld [vmem:[#allocation7 + $0x90] sm:$0xff]
    %v1687 = vld [vmem:[#allocation7 + $0x98] sm:$0xf]
    %v1688 = vld [vmem:[#allocation7 + $0x9c] sm:$0xff]
    %v1689 = vld [vmem:[#allocation7 + $0xa4] sm:$0xf]
    %v1690 = vld [vmem:[#allocation7 + $0xa8] sm:$0xff]
    %v1691 = vld [vmem:[#allocation7 + $0xb0] sm:$0xf]
    %v1692 = vld [vmem:[#allocation7 + $0xb4] sm:$0xff]
    %v1693 = vld [vmem:[#allocation7 + $0xbc] sm:$0xf]
    %v1694 = vld [vmem:[#allocation7 + $0xc0] sm:$0xff]
    %v1695 = vld [vmem:[#allocation7 + $0xc8] sm:$0xf]
    %v1696 = vld [vmem:[#allocation7 + $0xcc] sm:$0xff]
    %v1697 = vld [vmem:[#allocation7 + $0xd4] sm:$0xf]
    %v1698 = vld [vmem:[#allocation7 + $0xd8] sm:$0xff]
    %v1699 = vld [vmem:[#allocation7 + $0xe0] sm:$0xf]
    %v1700 = vld [vmem:[#allocation7 + $0xe4] sm:$0xff]
    %v1701 = vld [vmem:[#allocation7 + $0xec] sm:$0xf]
    %v1702 = vld [vmem:[#allocation7 + $0xf0] sm:$0xff]
    %v1703 = vld [vmem:[#allocation7 + $0xf8] sm:$0xf]
    %v1704 = vld [vmem:[#allocation7 + $0xfc] sm:$0xff]
    %v1705 = vld [vmem:[#allocation7 + $0x104] sm:$0xf]
    %v1706 = vld [vmem:[#allocation7 + $0x108] sm:$0xff]
    %v1707 = vld [vmem:[#allocation7 + $0x110] sm:$0xf]
    %v1708 = vld [vmem:[#allocation7 + $0x114] sm:$0xff]
    %v1709 = vld [vmem:[#allocation7 + $0x11c] sm:$0xf]
    %v1710 = vld [vmem:[#allocation7 + $0x120] sm:$0xff]
    %v1711 = vld [vmem:[#allocation7 + $0x128] sm:$0xf]
    %v1712 = vld [vmem:[#allocation7 + $0x12c] sm:$0xff]
    %v1713 = vld [vmem:[#allocation7 + $0x134] sm:$0xf]
    %v1714 = vld [vmem:[#allocation7 + $0x138] sm:$0xff]
    %v1715 = vld [vmem:[#allocation7 + $0x140] sm:$0xf]
    %v1716 = vld [vmem:[#allocation7 + $0x144] sm:$0xff]
    %v1717 = vld [vmem:[#allocation7 + $0x14c] sm:$0xf]
    %v1718 = vld [vmem:[#allocation7 + $0x150] sm:$0xff]
    %v1719 = vld [vmem:[#allocation7 + $0x158] sm:$0xf]
    %v1720 = vld [vmem:[#allocation7 + $0x15c] sm:$0xff]
    %v1721 = vld [vmem:[#allocation7 + $0x164] sm:$0xf]
    %v1722 = vld [vmem:[#allocation7 + $0x168] sm:$0xff]
    %v1723 = vld [vmem:[#allocation7 + $0x170] sm:$0xf]
    %v1724 = vld [vmem:[#allocation7 + $0x174] sm:$0xff]
    %v1725 = vld [vmem:[#allocation7 + $0x17c] sm:$0xf]
    %v1726 = vld [vmem:[#allocation7 + $0x180] sm:$0xff]
    %v1727 = vld [vmem:[#allocation7 + $0x188] sm:$0xf]
    %v1728 = vld [vmem:[#allocation7 + $0x18c] sm:$0xff]
    %v1729 = vld [vmem:[#allocation7 + $0x194] sm:$0xf]
    %v1730 = vld [vmem:[#allocation7 + $0x198] sm:$0xff]
    %v1731 = vld [vmem:[#allocation7 + $0x1a0] sm:$0xf]
    %v1732 = vld [vmem:[#allocation7 + $0x1a4] sm:$0xff]
    %v1733 = vld [vmem:[#allocation7 + $0x1ac] sm:$0xf]
    %v1734 = vld [vmem:[#allocation7 + $0x1b0] sm:$0xff]
    %v1735 = vld [vmem:[#allocation7 + $0x1b8] sm:$0xf]
    %v1736 = vld [vmem:[#allocation7 + $0x1bc] sm:$0xff]
    %v1737 = vld [vmem:[#allocation7 + $0x1c4] sm:$0xf]
    %v1738 = vld [vmem:[#allocation7 + $0x1c8] sm:$0xff]
    %v1739 = vld [vmem:[#allocation7 + $0x1d0] sm:$0xf]
    %v1740 = vld [vmem:[#allocation7 + $0x1d4] sm:$0xff]
    %v1741 = vld [vmem:[#allocation7 + $0x1dc] sm:$0xf]
    %v1742 = vld [vmem:[#allocation7 + $0x1e0] sm:$0xff]
    %v1743 = vld [vmem:[#allocation7 + $0x1e8] sm:$0xf]
    %v1744 = vld [vmem:[#allocation7 + $0x1ec] sm:$0xff]
    %v1745 = vld [vmem:[#allocation7 + $0x1f4] sm:$0xf]
    %v1746 = vld [vmem:[#allocation7 + $0x1f8] sm:$0xff]
    %v1747 = vld [vmem:[#allocation7 + $0x200] sm:$0xf]
    %v1748 = vld [vmem:[#allocation7 + $0x204] sm:$0xff]
    %v1749 = vld [vmem:[#allocation7 + $0x20c] sm:$0xf]
    %v1750 = vld [vmem:[#allocation7 + $0x210] sm:$0xff]
    %v1751 = vld [vmem:[#allocation7 + $0x218] sm:$0xf]
    %v1752 = vld [vmem:[#allocation7 + $0x21c] sm:$0xff]
    %v1753 = vld [vmem:[#allocation7 + $0x224] sm:$0xf]
    %v1754 = vld [vmem:[#allocation7 + $0x228] sm:$0xff]
    %v1755 = vld [vmem:[#allocation7 + $0x230] sm:$0xf]
    %v1756 = vld [vmem:[#allocation7 + $0x234] sm:$0xff]
    %v1757 = vld [vmem:[#allocation7 + $0x23c] sm:$0xf]
    %v1758 = vld [vmem:[#allocation7 + $0x240] sm:$0xff]
    %v1759 = vld [vmem:[#allocation7 + $0x248] sm:$0xf]
    %v1760 = vld [vmem:[#allocation7 + $0x24c] sm:$0xff]
    %v1761 = vld [vmem:[#allocation7 + $0x254] sm:$0xf]
    %v1762 = vld [vmem:[#allocation7 + $0x258] sm:$0xff]
    %v1763 = vld [vmem:[#allocation7 + $0x260] sm:$0xf]
    %v1764 = vld [vmem:[#allocation7 + $0x264] sm:$0xff]
    %v1765 = vld [vmem:[#allocation7 + $0x26c] sm:$0xf]
    %v1766 = vld [vmem:[#allocation7 + $0x270] sm:$0xff]
    %v1767 = vld [vmem:[#allocation7 + $0x278] sm:$0xf]
    %v1768 = vld [vmem:[#allocation7 + $0x27c] sm:$0xff]
    %v1769 = vld [vmem:[#allocation7 + $0x284] sm:$0xf]
    %v1770 = vld [vmem:[#allocation7 + $0x288] sm:$0xff]
    %v1771 = vld [vmem:[#allocation7 + $0x290] sm:$0xf]
    %v1772 = vld [vmem:[#allocation7 + $0x294] sm:$0xff]
    %v1773 = vld [vmem:[#allocation7 + $0x29c] sm:$0xf]
    %v1774 = vld [vmem:[#allocation7 + $0x2a0] sm:$0xff]
    %v1775 = vld [vmem:[#allocation7 + $0x2a8] sm:$0xf]
    %v1776 = vld [vmem:[#allocation7 + $0x2ac] sm:$0xff]
    %v1777 = vld [vmem:[#allocation7 + $0x2b4] sm:$0xf]
    %v1778 = vld [vmem:[#allocation7 + $0x2b8] sm:$0xff]
    %v1779 = vld [vmem:[#allocation7 + $0x2c0] sm:$0xf]
    %v1780 = vld [vmem:[#allocation7 + $0x2c4] sm:$0xff]
    %v1781 = vld [vmem:[#allocation7 + $0x2cc] sm:$0xf]
    %v1782 = vld [vmem:[#allocation7 + $0x2d0] sm:$0xff]
    %v1783 = vld [vmem:[#allocation7 + $0x2d8] sm:$0xf]
    %v1784 = vld [vmem:[#allocation7 + $0x2dc] sm:$0xff]
    %v1785 = vld [vmem:[#allocation7 + $0x2e4] sm:$0xf]
    %v1786 = vld [vmem:[#allocation7 + $0x2e8] sm:$0xff]
    %v1787 = vld [vmem:[#allocation7 + $0x2f0] sm:$0xf]
    %v1788 = vld [vmem:[#allocation7 + $0x2f4] sm:$0xff]
    %v1789 = vld [vmem:[#allocation7 + $0x2fc] sm:$0xf]
    %v1790 = vld [vmem:[%s4] sm:$0x7]
    %v1792 = vlaneseq
    %v1793 = vshrl.u32 %v1792, 7
    %v1794 = vsub.s32 0, %v1793
    %v1795 = vrot.slane %v1790, %v1794
    %v1796 = vlaneseq
    %v1797 = vshrl.u32 %v1796, 7
    %v1798 = vsub.s32 1, %v1797
    %v1799 = vrot.slane %v1790, %v1798
    %v1800 = vlaneseq
    %v1801 = vshrl.u32 %v1800, 7
    %v1802 = vsub.s32 2, %v1801
    %v1803 = vrot.slane %v1790, %v1802
    %v1935 = vunpack.c.l.b16 %v1662
    %v1936 = vunpack.c.h.b16 %v1662
    %v1937 = vunpack.c.l.b16 %v1663
    %v1938 = vunpack.c.l.b16 %v1664
    %v1939 = vunpack.c.h.b16 %v1664
    %v1940 = vunpack.c.l.b16 %v1665
    %v1941 = vunpack.c.l.b16 %v1666
    %v1942 = vunpack.c.h.b16 %v1666
    %v1943 = vunpack.c.l.b16 %v1667
    %v1944 = vunpack.c.l.b16 %v1668
    %v1945 = vunpack.c.h.b16 %v1668
    %v1946 = vunpack.c.l.b16 %v1669
    %v1947 = vunpack.c.l.b16 %v1670
    %v1948 = vunpack.c.h.b16 %v1670
    %v1949 = vunpack.c.l.b16 %v1671
    %v1950 = vunpack.c.l.b16 %v1672
    %v1951 = vunpack.c.h.b16 %v1672
    %v1952 = vunpack.c.l.b16 %v1673
    %v1953 = vunpack.c.l.b16 %v1674
    %v1954 = vunpack.c.h.b16 %v1674
    %v1955 = vunpack.c.l.b16 %v1675
    %v1956 = vunpack.c.l.b16 %v1676
    %v1957 = vunpack.c.h.b16 %v1676
    %v1958 = vunpack.c.l.b16 %v1677
    %v1959 = vunpack.c.l.b16 %v1678
    %v1960 = vunpack.c.h.b16 %v1678
    %v1961 = vunpack.c.l.b16 %v1679
    %v1962 = vunpack.c.l.b16 %v1680
    %v1963 = vunpack.c.h.b16 %v1680
    %v1964 = vunpack.c.l.b16 %v1681
    %v1965 = vunpack.c.l.b16 %v1682
    %v1966 = vunpack.c.h.b16 %v1682
    %v1967 = vunpack.c.l.b16 %v1683
    %v1968 = vunpack.c.l.b16 %v1684
    %v1969 = vunpack.c.h.b16 %v1684
    %v1970 = vunpack.c.l.b16 %v1685
    %v1971 = vunpack.c.l.b16 %v1686
    %v1972 = vunpack.c.h.b16 %v1686
    %v1973 = vunpack.c.l.b16 %v1687
    %v1974 = vunpack.c.l.b16 %v1688
    %v1975 = vunpack.c.h.b16 %v1688
    %v1976 = vunpack.c.l.b16 %v1689
    %v1977 = vunpack.c.l.b16 %v1690
    %v1978 = vunpack.c.h.b16 %v1690
    %v1979 = vunpack.c.l.b16 %v1691
    %v1980 = vunpack.c.l.b16 %v1692
    %v1981 = vunpack.c.h.b16 %v1692
    %v1982 = vunpack.c.l.b16 %v1693
    %v1983 = vunpack.c.l.b16 %v1694
    %v1984 = vunpack.c.h.b16 %v1694
    %v1985 = vunpack.c.l.b16 %v1695
    %v1986 = vunpack.c.l.b16 %v1696
    %v1987 = vunpack.c.h.b16 %v1696
    %v1988 = vunpack.c.l.b16 %v1697
    %v1989 = vunpack.c.l.b16 %v1698
    %v1990 = vunpack.c.h.b16 %v1698
    %v1991 = vunpack.c.l.b16 %v1699
    %v1992 = vunpack.c.l.b16 %v1700
    %v1993 = vunpack.c.h.b16 %v1700
    %v1994 = vunpack.c.l.b16 %v1701
    %v1995 = vunpack.c.l.b16 %v1702
    %v1996 = vunpack.c.h.b16 %v1702
    %v1997 = vunpack.c.l.b16 %v1703
    %v1998 = vunpack.c.l.b16 %v1704
    %v1999 = vunpack.c.h.b16 %v1704
    %v2000 = vunpack.c.l.b16 %v1705
    %v2001 = vunpack.c.l.b16 %v1706
    %v2002 = vunpack.c.h.b16 %v1706
    %v2003 = vunpack.c.l.b16 %v1707
    %v2004 = vunpack.c.l.b16 %v1708
    %v2005 = vunpack.c.h.b16 %v1708
    %v2006 = vunpack.c.l.b16 %v1709
    %v2007 = vunpack.c.l.b16 %v1710
    %v2008 = vunpack.c.h.b16 %v1710
    %v2009 = vunpack.c.l.b16 %v1711
    %v2010 = vunpack.c.l.b16 %v1712
    %v2011 = vunpack.c.h.b16 %v1712
    %v2012 = vunpack.c.l.b16 %v1713
    %v2013 = vunpack.c.l.b16 %v1714
    %v2014 = vunpack.c.h.b16 %v1714
    %v2015 = vunpack.c.l.b16 %v1715
    %v2016 = vunpack.c.l.b16 %v1716
    %v2017 = vunpack.c.h.b16 %v1716
    %v2018 = vunpack.c.l.b16 %v1717
    %v2019 = vunpack.c.l.b16 %v1718
    %v2020 = vunpack.c.h.b16 %v1718
    %v2021 = vunpack.c.l.b16 %v1719
    %v2022 = vunpack.c.l.b16 %v1720
    %v2023 = vunpack.c.h.b16 %v1720
    %v2024 = vunpack.c.l.b16 %v1721
    %v2025 = vunpack.c.l.b16 %v1722
    %v2026 = vunpack.c.h.b16 %v1722
    %v2027 = vunpack.c.l.b16 %v1723
    %v2028 = vunpack.c.l.b16 %v1724
    %v2029 = vunpack.c.h.b16 %v1724
    %v2030 = vunpack.c.l.b16 %v1725
    %v2031 = vunpack.c.l.b16 %v1726
    %v2032 = vunpack.c.h.b16 %v1726
    %v2033 = vunpack.c.l.b16 %v1727
    %v2034 = vunpack.c.l.b16 %v1728
    %v2035 = vunpack.c.h.b16 %v1728
    %v2036 = vunpack.c.l.b16 %v1729
    %v2037 = vunpack.c.l.b16 %v1730
    %v2038 = vunpack.c.h.b16 %v1730
    %v2039 = vunpack.c.l.b16 %v1731
    %v2040 = vunpack.c.l.b16 %v1732
    %v2041 = vunpack.c.h.b16 %v1732
    %v2042 = vunpack.c.l.b16 %v1733
    %v2043 = vunpack.c.l.b16 %v1734
    %v2044 = vunpack.c.h.b16 %v1734
    %v2045 = vunpack.c.l.b16 %v1735
    %v2046 = vunpack.c.l.b16 %v1736
    %v2047 = vunpack.c.h.b16 %v1736
    %v2048 = vunpack.c.l.b16 %v1737
    %v2049 = vunpack.c.l.b16 %v1738
    %v2050 = vunpack.c.h.b16 %v1738
    %v2051 = vunpack.c.l.b16 %v1739
    %v2052 = vunpack.c.l.b16 %v1740
    %v2053 = vunpack.c.h.b16 %v1740
    %v2054 = vunpack.c.l.b16 %v1741
    %v2055 = vunpack.c.l.b16 %v1742
    %v2056 = vunpack.c.h.b16 %v1742
    %v2057 = vunpack.c.l.b16 %v1743
    %v2058 = vunpack.c.l.b16 %v1744
    %v2059 = vunpack.c.h.b16 %v1744
    %v2060 = vunpack.c.l.b16 %v1745
    %v2061 = vunpack.c.l.b16 %v1746
    %v2062 = vunpack.c.h.b16 %v1746
    %v2063 = vunpack.c.l.b16 %v1747
    %v2064 = vunpack.c.l.b16 %v1748
    %v2065 = vunpack.c.h.b16 %v1748
    %v2066 = vunpack.c.l.b16 %v1749
    %v2067 = vunpack.c.l.b16 %v1750
    %v2068 = vunpack.c.h.b16 %v1750
    %v2069 = vunpack.c.l.b16 %v1751
    %v2070 = vunpack.c.l.b16 %v1752
    %v2071 = vunpack.c.h.b16 %v1752
    %v2072 = vunpack.c.l.b16 %v1753
    %v2073 = vunpack.c.l.b16 %v1754
    %v2074 = vunpack.c.h.b16 %v1754
    %v2075 = vunpack.c.l.b16 %v1755
    %v2076 = vunpack.c.l.b16 %v1756
    %v2077 = vunpack.c.h.b16 %v1756
    %v2078 = vunpack.c.l.b16 %v1757
    %v2079 = vunpack.c.l.b16 %v1758
    %v2080 = vunpack.c.h.b16 %v1758
    %v2081 = vunpack.c.l.b16 %v1759
    %v2082 = vunpack.c.l.b16 %v1760
    %v2083 = vunpack.c.h.b16 %v1760
    %v2084 = vunpack.c.l.b16 %v1761
    %v2085 = vunpack.c.l.b16 %v1762
    %v2086 = vunpack.c.h.b16 %v1762
    %v2087 = vunpack.c.l.b16 %v1763
    %v2088 = vunpack.c.l.b16 %v1764
    %v2089 = vunpack.c.h.b16 %v1764
    %v2090 = vunpack.c.l.b16 %v1765
    %v2091 = vunpack.c.l.b16 %v1766
    %v2092 = vunpack.c.h.b16 %v1766
    %v2093 = vunpack.c.l.b16 %v1767
    %v2094 = vunpack.c.l.b16 %v1768
    %v2095 = vunpack.c.h.b16 %v1768
    %v2096 = vunpack.c.l.b16 %v1769
    %v2097 = vunpack.c.l.b16 %v1770
    %v2098 = vunpack.c.h.b16 %v1770
    %v2099 = vunpack.c.l.b16 %v1771
    %v2100 = vunpack.c.l.b16 %v1772
    %v2101 = vunpack.c.h.b16 %v1772
    %v2102 = vunpack.c.l.b16 %v1773
    %v2103 = vunpack.c.l.b16 %v1774
    %v2104 = vunpack.c.h.b16 %v1774
    %v2105 = vunpack.c.l.b16 %v1775
    %v2106 = vunpack.c.l.b16 %v1776
    %v2107 = vunpack.c.h.b16 %v1776
    %v2108 = vunpack.c.l.b16 %v1777
    %v2109 = vunpack.c.l.b16 %v1778
    %v2110 = vunpack.c.h.b16 %v1778
    %v2111 = vunpack.c.l.b16 %v1779
    %v2112 = vunpack.c.l.b16 %v1780
    %v2113 = vunpack.c.h.b16 %v1780
    %v2114 = vunpack.c.l.b16 %v1781
    %v2115 = vunpack.c.l.b16 %v1782
    %v2116 = vunpack.c.h.b16 %v1782
    %v2117 = vunpack.c.l.b16 %v1783
    %v2118 = vunpack.c.l.b16 %v1784
    %v2119 = vunpack.c.h.b16 %v1784
    %v2120 = vunpack.c.l.b16 %v1785
    %v2121 = vunpack.c.l.b16 %v1786
    %v2122 = vunpack.c.h.b16 %v1786
    %v2123 = vunpack.c.l.b16 %v1787
    %v2124 = vunpack.c.l.b16 %v1788
    %v2125 = vunpack.c.h.b16 %v1788
    %v2126 = vunpack.c.l.b16 %v1789
    %v2127 = vpack.c.b16 %v1938, %v1935
    %v2128 = vpack.c.b16 %v1939, %v1936
    %v2129 = vpack.c.b16 %v1940, %v1937
    %v2130 = vpack.c.b16 %v1944, %v1941
    %v2131 = vpack.c.b16 %v1945, %v1942
    %v2132 = vpack.c.b16 %v1946, %v1943
    %v2133 = vpack.c.b16 %v1950, %v1947
    %v2134 = vpack.c.b16 %v1951, %v1948
    %v2135 = vpack.c.b16 %v1952, %v1949
    %v2136 = vpack.c.b16 %v1956, %v1953
    %v2137 = vpack.c.b16 %v1957, %v1954
    %v2138 = vpack.c.b16 %v1958, %v1955
    %v2139 = vpack.c.b16 %v1962, %v1959
    %v2140 = vpack.c.b16 %v1963, %v1960
    %v2141 = vpack.c.b16 %v1964, %v1961
    %v2142 = vpack.c.b16 %v1968, %v1965
    %v2143 = vpack.c.b16 %v1969, %v1966
    %v2144 = vpack.c.b16 %v1970, %v1967
    %v2145 = vpack.c.b16 %v1974, %v1971
    %v2146 = vpack.c.b16 %v1975, %v1972
    %v2147 = vpack.c.b16 %v1976, %v1973
    %v2148 = vpack.c.b16 %v1980, %v1977
    %v2149 = vpack.c.b16 %v1981, %v1978
    %v2150 = vpack.c.b16 %v1982, %v1979
    %v2151 = vpack.c.b16 %v1986, %v1983
    %v2152 = vpack.c.b16 %v1987, %v1984
    %v2153 = vpack.c.b16 %v1988, %v1985
    %v2154 = vpack.c.b16 %v1992, %v1989
    %v2155 = vpack.c.b16 %v1993, %v1990
    %v2156 = vpack.c.b16 %v1994, %v1991
    %v2157 = vpack.c.b16 %v1998, %v1995
    %v2158 = vpack.c.b16 %v1999, %v1996
    %v2159 = vpack.c.b16 %v2000, %v1997
    %v2160 = vpack.c.b16 %v2004, %v2001
    %v2161 = vpack.c.b16 %v2005, %v2002
    %v2162 = vpack.c.b16 %v2006, %v2003
    %v2163 = vpack.c.b16 %v2010, %v2007
    %v2164 = vpack.c.b16 %v2011, %v2008
    %v2165 = vpack.c.b16 %v2012, %v2009
    %v2166 = vpack.c.b16 %v2016, %v2013
    %v2167 = vpack.c.b16 %v2017, %v2014
    %v2168 = vpack.c.b16 %v2018, %v2015
    %v2169 = vpack.c.b16 %v2022, %v2019
    %v2170 = vpack.c.b16 %v2023, %v2020
    %v2171 = vpack.c.b16 %v2024, %v2021
    %v2172 = vpack.c.b16 %v2028, %v2025
    %v2173 = vpack.c.b16 %v2029, %v2026
    %v2174 = vpack.c.b16 %v2030, %v2027
    %v2175 = vpack.c.b16 %v2034, %v2031
    %v2176 = vpack.c.b16 %v2035, %v2032
    %v2177 = vpack.c.b16 %v2036, %v2033
    %v2178 = vpack.c.b16 %v2040, %v2037
    %v2179 = vpack.c.b16 %v2041, %v2038
    %v2180 = vpack.c.b16 %v2042, %v2039
    %v2181 = vpack.c.b16 %v2046, %v2043
    %v2182 = vpack.c.b16 %v2047, %v2044
    %v2183 = vpack.c.b16 %v2048, %v2045
    %v2184 = vpack.c.b16 %v2052, %v2049
    %v2185 = vpack.c.b16 %v2053, %v2050
    %v2186 = vpack.c.b16 %v2054, %v2051
    %v2187 = vpack.c.b16 %v2058, %v2055
    %v2188 = vpack.c.b16 %v2059, %v2056
    %v2189 = vpack.c.b16 %v2060, %v2057
    %v2190 = vpack.c.b16 %v2064, %v2061
    %v2191 = vpack.c.b16 %v2065, %v2062
    %v2192 = vpack.c.b16 %v2066, %v2063
    %v2193 = vpack.c.b16 %v2070, %v2067
    %v2194 = vpack.c.b16 %v2071, %v2068
    %v2195 = vpack.c.b16 %v2072, %v2069
    %v2196 = vpack.c.b16 %v2076, %v2073
    %v2197 = vpack.c.b16 %v2077, %v2074
    %v2198 = vpack.c.b16 %v2078, %v2075
    %v2199 = vpack.c.b16 %v2082, %v2079
    %v2200 = vpack.c.b16 %v2083, %v2080
    %v2201 = vpack.c.b16 %v2084, %v2081
    %v2202 = vpack.c.b16 %v2088, %v2085
    %v2203 = vpack.c.b16 %v2089, %v2086
    %v2204 = vpack.c.b16 %v2090, %v2087
    %v2205 = vpack.c.b16 %v2094, %v2091
    %v2206 = vpack.c.b16 %v2095, %v2092
    %v2207 = vpack.c.b16 %v2096, %v2093
    %v2208 = vpack.c.b16 %v2100, %v2097
    %v2209 = vpack.c.b16 %v2101, %v2098
    %v2210 = vpack.c.b16 %v2102, %v2099
    %v2211 = vpack.c.b16 %v2106, %v2103
    %v2212 = vpack.c.b16 %v2107, %v2104
    %v2213 = vpack.c.b16 %v2108, %v2105
    %v2214 = vpack.c.b16 %v2112, %v2109
    %v2215 = vpack.c.b16 %v2113, %v2110
    %v2216 = vpack.c.b16 %v2114, %v2111
    %v2217 = vpack.c.b16 %v2118, %v2115
    %v2218 = vpack.c.b16 %v2119, %v2116
    %v2219 = vpack.c.b16 %v2120, %v2117
    %v2220 = vpack.c.b16 %v2124, %v2121
    %v2221 = vpack.c.b16 %v2125, %v2122
    %v2222 = vpack.c.b16 %v2126, %v2123
    %2319 = vmatprep.subr.bf16.mxu0 %v2128
    %2320 = vmatpush1.bf16.msra.mxu0 %v2127
    %2321 = vmatprep.subr.bf16.mxu0 %v2131
    %2322 = vmatpush1.bf16.msra.mxu0 %v2130
    %2323 = vmatprep.subr.bf16.mxu0 %v2134
    %2324 = vmatpush1.bf16.msra.mxu0 %v2133
    %2325 = vmatprep.subr.bf16.mxu0 %v2137
    %2326 = vmatpush1.bf16.msra.mxu0 %v2136
    %2327 = vmatprep.subr.bf16.mxu0 %v2140
    %2328 = vmatpush1.bf16.msra.mxu0 %v2139
    %2329 = vmatprep.subr.bf16.mxu0 %v2143
    %2330 = vmatpush1.bf16.msra.mxu0 %v2142
    %2331 = vmatprep.subr.bf16.mxu0 %v2146
    %2332 = vmatpush1.bf16.msra.mxu0 %v2145
    %2333 = vmatprep.subr.bf16.mxu0 %v2149
    %2334 = vmatpush1.bf16.msra.mxu0 %v2148
    %2335 = vmatprep.subr.bf16.mxu0 %v2152
    %2336 = vmatpush1.bf16.msra.mxu0 %v2151
    %2337 = vmatprep.subr.bf16.mxu0 %v2155
    %2338 = vmatpush1.bf16.msra.mxu0 %v2154
    %2339 = vmatprep.subr.bf16.mxu0 %v2158
    %2340 = vmatpush1.bf16.msra.mxu0 %v2157
    %2341 = vmatprep.subr.bf16.mxu0 %v2161
    %2342 = vmatpush1.bf16.msra.mxu0 %v2160
    %2343 = vmatprep.subr.bf16.mxu0 %v2164
    %2344 = vmatpush1.bf16.msra.mxu0 %v2163
    %2345 = vmatprep.subr.bf16.mxu0 %v2167
    %2346 = vmatpush1.bf16.msra.mxu0 %v2166
    %2347 = vmatprep.subr.bf16.mxu0 %v2170
    %2348 = vmatpush1.bf16.msra.mxu0 %v2169
    %2349 = vmatprep.subr.bf16.mxu0 %v2173
    %2350 = vmatpush1.bf16.msra.mxu0 %v2172
    %2351 = vmatprep.mubr.bf16.mxu0 %v1535
    %2352 = vmatmul.mubr.bf16.gmra.mrb[0].mxu0 %v1534
    %v2353 = vpop.f32.mrb[0].mxu0
    %v2354 = vadd.f32 %v1795, %v2353
    %v2355 = vpop.f32.mrb[0].mxu0
    %v2356 = vadd.f32 %v1799, %v2355
    %v2357 = vpop.f32.mrb[0].mxu0
    %v2358 = vadd.f32 %v1795, %v2357
    %v2359 = vpop.f32.mrb[0].mxu0
    %v2360 = vadd.f32 %v1799, %v2359
    %2361 = vmatprep.mubr.bf16.mxu0 %v1539
    %2362 = vmatmul.mubr.bf16.gmra.mrb[0].mxu0 %v1538
    %v2363 = vpop.f32.mrb[0].mxu0
    %v2364 = vadd.f32 %v1795, %v2363
    %v2365 = vpop.f32.mrb[0].mxu0
    %v2366 = vadd.f32 %v1799, %v2365
    %v2367 = vpop.f32.mrb[0].mxu0
    %v2368 = vadd.f32 %v1795, %v2367
    %v2369 = vpop.f32.mrb[0].mxu0
    %v2370 = vadd.f32 %v1799, %v2369
    %2371 = vmatprep.mubr.bf16.mxu0 %v1543
    %2372 = vmatmul.mubr.bf16.gmra.mrb[0].mxu0 %v1542
    %v2373 = vpop.f32.mrb[0].mxu0
    %v2374 = vadd.f32 %v1795, %v2373
    %v2375 = vpop.f32.mrb[0].mxu0
    %v2376 = vadd.f32 %v1799, %v2375
    %v2377 = vpop.f32.mrb[0].mxu0
    %v2378 = vadd.f32 %v1795, %v2377
    %v2379 = vpop.f32.mrb[0].mxu0
    %v2380 = vadd.f32 %v1799, %v2379
    %2381 = vmatprep.mubr.bf16.mxu0 %v1547
    %2382 = vmatmul.mubr.bf16.gmra.mrb[0].mxu0 %v1546
    %v2383 = vpop.f32.mrb[0].mxu0
    %v2384 = vadd.f32 %v1795, %v2383
    %v2385 = vpop.f32.mrb[0].mxu0
    %v2386 = vadd.f32 %v1799, %v2385
    %v2387 = vpop.f32.mrb[0].mxu0
    %v2388 = vadd.f32 %v1795, %v2387
    %v2389 = vpop.f32.mrb[0].mxu0
    %v2390 = vadd.f32 %v1799, %v2389
    %2391 = vmatprep.mubr.bf16.mxu0 %v1551
    %2392 = vmatmul.mubr.bf16.gmra.mrb[0].mxu0 %v1550
    %v2393 = vpop.f32.mrb[0].mxu0
    %v2394 = vadd.f32 %v1795, %v2393
    %v2395 = vpop.f32.mrb[0].mxu0
    %v2396 = vadd.f32 %v1799, %v2395
    %v2397 = vpop.f32.mrb[0].mxu0
    %v2398 = vadd.f32 %v1795, %v2397
    %v2399 = vpop.f32.mrb[0].mxu0
    %v2400 = vadd.f32 %v1799, %v2399
    %2401 = vmatprep.mubr.bf16.mxu0 %v1555
    %2402 = vmatmul.mubr.bf16.gmra.mrb[0].mxu0 %v1554
    %v2403 = vpop.f32.mrb[0].mxu0
    %v2404 = vadd.f32 %v1795, %v2403
    %v2405 = vpop.f32.mrb[0].mxu0
    %v2406 = vadd.f32 %v1799, %v2405
    %v2407 = vpop.f32.mrb[0].mxu0
    %v2408 = vadd.f32 %v1795, %v2407
    %v2409 = vpop.f32.mrb[0].mxu0
    %v2410 = vadd.f32 %v1799, %v2409
    %2411 = vmatprep.mubr.bf16.mxu0 %v1559
    %2412 = vmatmul.mubr.bf16.gmra.mrb[0].mxu0 %v1558
    %v2413 = vpop.f32.mrb[0].mxu0
    %v2414 = vadd.f32 %v1795, %v2413
    %v2415 = vpop.f32.mrb[0].mxu0
    %v2416 = vadd.f32 %v1799, %v2415
    %v2417 = vpop.f32.mrb[0].mxu0
    %v2418 = vadd.f32 %v1795, %v2417
    %v2419 = vpop.f32.mrb[0].mxu0
    %v2420 = vadd.f32 %v1799, %v2419
    %2421 = vmatprep.mubr.bf16.mxu0 %v1563
    %2422 = vmatmul.mubr.bf16.gmra.mrb[0].mxu0 %v1562
    %v2423 = vpop.f32.mrb[0].mxu0
    %v2424 = vadd.f32 %v1795, %v2423
    %v2425 = vpop.f32.mrb[0].mxu0
    %v2426 = vadd.f32 %v1799, %v2425
    %v2427 = vpop.f32.mrb[0].mxu0
    %v2428 = vadd.f32 %v1795, %v2427
    %v2429 = vpop.f32.mrb[0].mxu0
    %v2430 = vadd.f32 %v1799, %v2429
    %2431 = vmatprep.mubr.bf16.mxu0 %v1567
    %2432 = vmatmul.mubr.bf16.gmra.mrb[0].mxu0 %v1566
    %v2433 = vpop.f32.mrb[0].mxu0
    %v2434 = vadd.f32 %v1795, %v2433
    %v2435 = vpop.f32.mrb[0].mxu0
    %v2436 = vadd.f32 %v1799, %v2435
    %v2437 = vpop.f32.mrb[0].mxu0
    %v2438 = vadd.f32 %v1795, %v2437
    %v2439 = vpop.f32.mrb[0].mxu0
    %v2440 = vadd.f32 %v1799, %v2439
    %2441 = vmatprep.mubr.bf16.mxu0 %v1571
    %2442 = vmatmul.mubr.bf16.gmra.mrb[0].mxu0 %v1570
    %v2443 = vpop.f32.mrb[0].mxu0
    %v2444 = vadd.f32 %v1795, %v2443
    %v2445 = vpop.f32.mrb[0].mxu0
    %v2446 = vadd.f32 %v1799, %v2445
    %v2447 = vpop.f32.mrb[0].mxu0
    %v2448 = vadd.f32 %v1795, %v2447
    %v2449 = vpop.f32.mrb[0].mxu0
    %v2450 = vadd.f32 %v1799, %v2449
    %2451 = vmatprep.mubr.bf16.mxu0 %v1575
    %2452 = vmatmul.mubr.bf16.gmra.mrb[0].mxu0 %v1574
    %v2453 = vpop.f32.mrb[0].mxu0
    %v2454 = vadd.f32 %v1795, %v2453
    %v2455 = vpop.f32.mrb[0].mxu0
    %v2456 = vadd.f32 %v1799, %v2455
    %v2457 = vpop.f32.mrb[0].mxu0
    %v2458 = vadd.f32 %v1795, %v2457
    %v2459 = vpop.f32.mrb[0].mxu0
    %v2460 = vadd.f32 %v1799, %v2459
    %2461 = vmatprep.mubr.bf16.mxu0 %v1579
    %2462 = vmatmul.mubr.bf16.gmra.mrb[0].mxu0 %v1578
    %v2463 = vpop.f32.mrb[0].mxu0
    %v2464 = vadd.f32 %v1795, %v2463
    %v2465 = vpop.f32.mrb[0].mxu0
    %v2466 = vadd.f32 %v1799, %v2465
    %v2467 = vpop.f32.mrb[0].mxu0
    %v2468 = vadd.f32 %v1795, %v2467
    %v2469 = vpop.f32.mrb[0].mxu0
    %v2470 = vadd.f32 %v1799, %v2469
    %2471 = vmatprep.mubr.bf16.mxu0 %v1583
    %2472 = vmatmul.mubr.bf16.gmra.mrb[0].mxu0 %v1582
    %v2473 = vpop.f32.mrb[0].mxu0
    %v2474 = vadd.f32 %v1795, %v2473
    %v2475 = vpop.f32.mrb[0].mxu0
    %v2476 = vadd.f32 %v1799, %v2475
    %v2477 = vpop.f32.mrb[0].mxu0
    %v2478 = vadd.f32 %v1795, %v2477
    %v2479 = vpop.f32.mrb[0].mxu0
    %v2480 = vadd.f32 %v1799, %v2479
    %2481 = vmatprep.mubr.bf16.mxu0 %v1587
    %2482 = vmatmul.mubr.bf16.gmra.mrb[0].mxu0 %v1586
    %v2483 = vpop.f32.mrb[0].mxu0
    %v2484 = vadd.f32 %v1795, %v2483
    %v2485 = vpop.f32.mrb[0].mxu0
    %v2486 = vadd.f32 %v1799, %v2485
    %v2487 = vpop.f32.mrb[0].mxu0
    %v2488 = vadd.f32 %v1795, %v2487
    %v2489 = vpop.f32.mrb[0].mxu0
    %v2490 = vadd.f32 %v1799, %v2489
    %2491 = vmatprep.mubr.bf16.mxu0 %v1591
    %2492 = vmatmul.mubr.bf16.gmra.mrb[0].mxu0 %v1590
    %v2493 = vpop.f32.mrb[0].mxu0
    %v2494 = vadd.f32 %v1795, %v2493
    %v2495 = vpop.f32.mrb[0].mxu0
    %v2496 = vadd.f32 %v1799, %v2495
    %v2497 = vpop.f32.mrb[0].mxu0
    %v2498 = vadd.f32 %v1795, %v2497
    %v2499 = vpop.f32.mrb[0].mxu0
    %v2500 = vadd.f32 %v1799, %v2499
    %2501 = vmatprep.mubr.bf16.mxu0 %v1595
    %2502 = vmatmul.mubr.bf16.gmra.mrb[0].mxu0 %v1594
    %v2503 = vpop.f32.mrb[0].mxu0
    %v2504 = vadd.f32 %v1795, %v2503
    %v2505 = vpop.f32.mrb[0].mxu0
    %v2506 = vadd.f32 %v1799, %v2505
    %v2507 = vpop.f32.mrb[0].mxu0
    %v2508 = vadd.f32 %v1795, %v2507
    %v2509 = vpop.f32.mrb[0].mxu0
    %v2510 = vadd.f32 %v1799, %v2509
    %2511 = vmatprep.mubr.bf16.mxu0 %v1599
    %2512 = vmatmul.mubr.bf16.gmra.mrb[0].mxu0 %v1598
    %v2513 = vpop.f32.mrb[0].mxu0
    %v2514 = vadd.f32 %v1795, %v2513
    %v2515 = vpop.f32.mrb[0].mxu0
    %v2516 = vadd.f32 %v1799, %v2515
    %v2517 = vpop.f32.mrb[0].mxu0
    %v2518 = vadd.f32 %v1795, %v2517
    %v2519 = vpop.f32.mrb[0].mxu0
    %v2520 = vadd.f32 %v1799, %v2519
    %2521 = vmatprep.mubr.bf16.mxu0 %v1603
    %2522 = vmatmul.mubr.bf16.gmra.mrb[0].mxu0 %v1602
    %v2523 = vpop.f32.mrb[0].mxu0
    %v2524 = vadd.f32 %v1795, %v2523
    %v2525 = vpop.f32.mrb[0].mxu0
    %v2526 = vadd.f32 %v1799, %v2525
    %v2527 = vpop.f32.mrb[0].mxu0
    %v2528 = vadd.f32 %v1795, %v2527
    %v2529 = vpop.f32.mrb[0].mxu0
    %v2530 = vadd.f32 %v1799, %v2529
    %2531 = vmatprep.mubr.bf16.mxu0 %v1607
    %2532 = vmatmul.mubr.bf16.gmra.mrb[0].mxu0 %v1606
    %v2533 = vpop.f32.mrb[0].mxu0
    %v2534 = vadd.f32 %v1795, %v2533
    %v2535 = vpop.f32.mrb[0].mxu0
    %v2536 = vadd.f32 %v1799, %v2535
    %v2537 = vpop.f32.mrb[0].mxu0
    %v2538 = vadd.f32 %v1795, %v2537
    %v2539 = vpop.f32.mrb[0].mxu0
    %v2540 = vadd.f32 %v1799, %v2539
    %2541 = vmatprep.mubr.bf16.mxu0 %v1611
    %2542 = vmatmul.mubr.bf16.gmra.mrb[0].mxu0 %v1610
    %v2543 = vpop.f32.mrb[0].mxu0
    %v2544 = vadd.f32 %v1795, %v2543
    %v2545 = vpop.f32.mrb[0].mxu0
    %v2546 = vadd.f32 %v1799, %v2545
    %v2547 = vpop.f32.mrb[0].mxu0
    %v2548 = vadd.f32 %v1795, %v2547
    %v2549 = vpop.f32.mrb[0].mxu0
    %v2550 = vadd.f32 %v1799, %v2549
    %2551 = vmatprep.mubr.bf16.mxu0 %v1615
    %2552 = vmatmul.mubr.bf16.gmra.mrb[0].mxu0 %v1614
    %v2553 = vpop.f32.mrb[0].mxu0
    %v2554 = vadd.f32 %v1795, %v2553
    %v2555 = vpop.f32.mrb[0].mxu0
    %v2556 = vadd.f32 %v1799, %v2555
    %v2557 = vpop.f32.mrb[0].mxu0
    %v2558 = vadd.f32 %v1795, %v2557
    %v2559 = vpop.f32.mrb[0].mxu0
    %v2560 = vadd.f32 %v1799, %v2559
    %2561 = vmatprep.mubr.bf16.mxu0 %v1619
    %2562 = vmatmul.mubr.bf16.gmra.mrb[0].mxu0 %v1618
    %v2563 = vpop.f32.mrb[0].mxu0
    %v2564 = vadd.f32 %v1795, %v2563
    %v2565 = vpop.f32.mrb[0].mxu0
    %v2566 = vadd.f32 %v1799, %v2565
    %v2567 = vpop.f32.mrb[0].mxu0
    %v2568 = vadd.f32 %v1795, %v2567
    %v2569 = vpop.f32.mrb[0].mxu0
    %v2570 = vadd.f32 %v1799, %v2569
    %2571 = vmatprep.mubr.bf16.mxu0 %v1623
    %2572 = vmatmul.mubr.bf16.gmra.mrb[0].mxu0 %v1622
    %v2573 = vpop.f32.mrb[0].mxu0
    %v2574 = vadd.f32 %v1795, %v2573
    %v2575 = vpop.f32.mrb[0].mxu0
    %v2576 = vadd.f32 %v1799, %v2575
    %v2577 = vpop.f32.mrb[0].mxu0
    %v2578 = vadd.f32 %v1795, %v2577
    %v2579 = vpop.f32.mrb[0].mxu0
    %v2580 = vadd.f32 %v1799, %v2579
    %2581 = vmatprep.mubr.bf16.mxu0 %v1627
    %2582 = vmatmul.mubr.bf16.gmra.mrb[0].mxu0 %v1626
    %v2583 = vpop.f32.mrb[0].mxu0
    %v2584 = vadd.f32 %v1795, %v2583
    %v2585 = vpop.f32.mrb[0].mxu0
    %v2586 = vadd.f32 %v1799, %v2585
    %v2587 = vpop.f32.mrb[0].mxu0
    %v2588 = vadd.f32 %v1795, %v2587
    %v2589 = vpop.f32.mrb[0].mxu0
    %v2590 = vadd.f32 %v1799, %v2589
    %2591 = vmatprep.mubr.bf16.mxu0 %v1631
    %2592 = vmatmul.mubr.bf16.gmra.mrb[0].mxu0 %v1630
    %v2593 = vpop.f32.mrb[0].mxu0
    %v2594 = vadd.f32 %v1795, %v2593
    %v2595 = vpop.f32.mrb[0].mxu0
    %v2596 = vadd.f32 %v1799, %v2595
    %v2597 = vpop.f32.mrb[0].mxu0
    %v2598 = vadd.f32 %v1795, %v2597
    %v2599 = vpop.f32.mrb[0].mxu0
    %v2600 = vadd.f32 %v1799, %v2599
    %2601 = vmatprep.mubr.bf16.mxu0 %v1635
    %2602 = vmatmul.mubr.bf16.gmra.mrb[0].mxu0 %v1634
    %v2603 = vpop.f32.mrb[0].mxu0
    %v2604 = vadd.f32 %v1795, %v2603
    %v2605 = vpop.f32.mrb[0].mxu0
    %v2606 = vadd.f32 %v1799, %v2605
    %v2607 = vpop.f32.mrb[0].mxu0
    %v2608 = vadd.f32 %v1795, %v2607
    %v2609 = vpop.f32.mrb[0].mxu0
    %v2610 = vadd.f32 %v1799, %v2609
    %2611 = vmatprep.mubr.bf16.mxu0 %v1639
    %2612 = vmatmul.mubr.bf16.gmra.mrb[0].mxu0 %v1638
    %v2613 = vpop.f32.mrb[0].mxu0
    %v2614 = vadd.f32 %v1795, %v2613
    %v2615 = vpop.f32.mrb[0].mxu0
    %v2616 = vadd.f32 %v1799, %v2615
    %v2617 = vpop.f32.mrb[0].mxu0
    %v2618 = vadd.f32 %v1795, %v2617
    %v2619 = vpop.f32.mrb[0].mxu0
    %v2620 = vadd.f32 %v1799, %v2619
    %2621 = vmatprep.mubr.bf16.mxu0 %v1643
    %2622 = vmatmul.mubr.bf16.gmra.mrb[0].mxu0 %v1642
    %v2623 = vpop.f32.mrb[0].mxu0
    %v2624 = vadd.f32 %v1795, %v2623
    %v2625 = vpop.f32.mrb[0].mxu0
    %v2626 = vadd.f32 %v1799, %v2625
    %v2627 = vpop.f32.mrb[0].mxu0
    %v2628 = vadd.f32 %v1795, %v2627
    %v2629 = vpop.f32.mrb[0].mxu0
    %v2630 = vadd.f32 %v1799, %v2629
    %2631 = vmatprep.mubr.bf16.mxu0 %v1647
    %2632 = vmatmul.mubr.bf16.gmra.mrb[0].mxu0 %v1646
    %v2633 = vpop.f32.mrb[0].mxu0
    %v2634 = vadd.f32 %v1795, %v2633
    %v2635 = vpop.f32.mrb[0].mxu0
    %v2636 = vadd.f32 %v1799, %v2635
    %v2637 = vpop.f32.mrb[0].mxu0
    %v2638 = vadd.f32 %v1795, %v2637
    %v2639 = vpop.f32.mrb[0].mxu0
    %v2640 = vadd.f32 %v1799, %v2639
    %2641 = vmatprep.mubr.bf16.mxu0 %v1651
    %2642 = vmatmul.mubr.bf16.gmra.mrb[0].mxu0 %v1650
    %v2643 = vpop.f32.mrb[0].mxu0
    %v2644 = vadd.f32 %v1795, %v2643
    %v2645 = vpop.f32.mrb[0].mxu0
    %v2646 = vadd.f32 %v1799, %v2645
    %v2647 = vpop.f32.mrb[0].mxu0
    %v2648 = vadd.f32 %v1795, %v2647
    %v2649 = vpop.f32.mrb[0].mxu0
    %v2650 = vadd.f32 %v1799, %v2649
    %2651 = vmatprep.mubr.bf16.mxu0 %v1655
    %2652 = vmatmul.mubr.bf16.gmra.mrb[0].mxu0 %v1654
    %v2653 = vpop.f32.mrb[0].mxu0
    %v2654 = vadd.f32 %v1795, %v2653
    %v2655 = vpop.f32.mrb[0].mxu0
    %v2656 = vadd.f32 %v1799, %v2655
    %v2657 = vpop.f32.mrb[0].mxu0
    %v2658 = vadd.f32 %v1795, %v2657
    %v2659 = vpop.f32.mrb[0].mxu0
    %v2660 = vadd.f32 %v1799, %v2659
    %2661 = vmatprep.mubr.bf16.mxu0 %v1659
    %2662 = vmatmul.mubr.bf16.gmra.mrb[0].mxu0 %v1658
    %v2663 = vpop.f32.mrb[0].mxu0
    %v2664 = vadd.f32 %v1795, %v2663
    %v2665 = vpop.f32.mrb[0].mxu0
    %v2666 = vadd.f32 %v1799, %v2665
    %v2667 = vpop.f32.mrb[0].mxu0
    %v2668 = vadd.f32 %v1795, %v2667
    %v2669 = vpop.f32.mrb[0].mxu0
    %v2670 = vadd.f32 %v1799, %v2669
    %2671 = vdwg.mxu0
    %2672 = vmatprep.subr.bf16.mxu0 %v2176
    %2673 = vmatpush1.bf16.msra.mxu0 %v2175
    %2674 = vmatprep.subr.bf16.mxu0 %v2179
    %2675 = vmatpush1.bf16.msra.mxu0 %v2178
    %2676 = vmatprep.subr.bf16.mxu0 %v2182
    %2677 = vmatpush1.bf16.msra.mxu0 %v2181
    %2678 = vmatprep.subr.bf16.mxu0 %v2185
    %2679 = vmatpush1.bf16.msra.mxu0 %v2184
    %2680 = vmatprep.subr.bf16.mxu0 %v2188
    %2681 = vmatpush1.bf16.msra.mxu0 %v2187
    %2682 = vmatprep.subr.bf16.mxu0 %v2191
    %2683 = vmatpush1.bf16.msra.mxu0 %v2190
    %2684 = vmatprep.subr.bf16.mxu0 %v2194
    %2685 = vmatpush1.bf16.msra.mxu0 %v2193
    %2686 = vmatprep.subr.bf16.mxu0 %v2197
    %2687 = vmatpush1.bf16.msra.mxu0 %v2196
    %2688 = vmatprep.subr.bf16.mxu0 %v2200
    %2689 = vmatpush1.bf16.msra.mxu0 %v2199
    %2690 = vmatprep.subr.bf16.mxu0 %v2203
    %2691 = vmatpush1.bf16.msra.mxu0 %v2202
    %2692 = vmatprep.subr.bf16.mxu0 %v2206
    %2693 = vmatpush1.bf16.msra.mxu0 %v2205
    %2694 = vmatprep.subr.bf16.mxu0 %v2209
    %2695 = vmatpush1.bf16.msra.mxu0 %v2208
    %2696 = vmatprep.subr.bf16.mxu0 %v2212
    %2697 = vmatpush1.bf16.msra.mxu0 %v2211
    %2698 = vmatprep.subr.bf16.mxu0 %v2215
    %2699 = vmatpush1.bf16.msra.mxu0 %v2214
    %2700 = vmatprep.subr.bf16.mxu0 %v2218
    %2701 = vmatpush1.bf16.msra.mxu0 %v2217
    %2702 = vmatprep.subr.bf16.mxu0 %v2221
    %2703 = vmatpush1.bf16.msra.mxu0 %v2220
    %2704 = vmatprep.mubr.bf16.mxu0 %v1537
    %2705 = vmatmul.mubr.bf16.gmra.mrb[0].mxu0 %v1536
    %v2706 = vpop.f32.mrb[0].mxu0
    %v2707 = vadd.f32 %v2354, %v2706
    %v2708 = vpop.f32.mrb[0].mxu0
    %v2709 = vadd.f32 %v2356, %v2708
    %v2710 = vpop.f32.mrb[0].mxu0
    %v2711 = vadd.f32 %v2358, %v2710
    %v2712 = vpop.f32.mrb[0].mxu0
    %v2713 = vadd.f32 %v2360, %v2712
    %2714 = vmatprep.mubr.bf16.mxu0 %v1541
    %2715 = vmatmul.mubr.bf16.gmra.mrb[0].mxu0 %v1540
    %v2716 = vpop.f32.mrb[0].mxu0
    %v2717 = vadd.f32 %v2364, %v2716
    %v2718 = vpop.f32.mrb[0].mxu0
    %v2719 = vadd.f32 %v2366, %v2718
    %v2720 = vpop.f32.mrb[0].mxu0
    %v2721 = vadd.f32 %v2368, %v2720
    %v2722 = vpop.f32.mrb[0].mxu0
    %v2723 = vadd.f32 %v2370, %v2722
    %2724 = vmatprep.mubr.bf16.mxu0 %v1545
    %2725 = vmatmul.mubr.bf16.gmra.mrb[0].mxu0 %v1544
    %v2726 = vpop.f32.mrb[0].mxu0
    %v2727 = vadd.f32 %v2374, %v2726
    %v2728 = vpop.f32.mrb[0].mxu0
    %v2729 = vadd.f32 %v2376, %v2728
    %v2730 = vpop.f32.mrb[0].mxu0
    %v2731 = vadd.f32 %v2378, %v2730
    %v2732 = vpop.f32.mrb[0].mxu0
    %v2733 = vadd.f32 %v2380, %v2732
    %2734 = vmatprep.mubr.bf16.mxu0 %v1549
    %2735 = vmatmul.mubr.bf16.gmra.mrb[0].mxu0 %v1548
    %v2736 = vpop.f32.mrb[0].mxu0
    %v2737 = vadd.f32 %v2384, %v2736
    %v2738 = vpop.f32.mrb[0].mxu0
    %v2739 = vadd.f32 %v2386, %v2738
    %v2740 = vpop.f32.mrb[0].mxu0
    %v2741 = vadd.f32 %v2388, %v2740
    %v2742 = vpop.f32.mrb[0].mxu0
    %v2743 = vadd.f32 %v2390, %v2742
    %2744 = vmatprep.mubr.bf16.mxu0 %v1553
    %2745 = vmatmul.mubr.bf16.gmra.mrb[0].mxu0 %v1552
    %v2746 = vpop.f32.mrb[0].mxu0
    %v2747 = vadd.f32 %v2394, %v2746
    %v2748 = vpop.f32.mrb[0].mxu0
    %v2749 = vadd.f32 %v2396, %v2748
    %v2750 = vpop.f32.mrb[0].mxu0
    %v2751 = vadd.f32 %v2398, %v2750
    %v2752 = vpop.f32.mrb[0].mxu0
    %v2753 = vadd.f32 %v2400, %v2752
    %2754 = vmatprep.mubr.bf16.mxu0 %v1557
    %2755 = vmatmul.mubr.bf16.gmra.mrb[0].mxu0 %v1556
    %v2756 = vpop.f32.mrb[0].mxu0
    %v2757 = vadd.f32 %v2404, %v2756
    %v2758 = vpop.f32.mrb[0].mxu0
    %v2759 = vadd.f32 %v2406, %v2758
    %v2760 = vpop.f32.mrb[0].mxu0
    %v2761 = vadd.f32 %v2408, %v2760
    %v2762 = vpop.f32.mrb[0].mxu0
    %v2763 = vadd.f32 %v2410, %v2762
    %2764 = vmatprep.mubr.bf16.mxu0 %v1561
    %2765 = vmatmul.mubr.bf16.gmra.mrb[0].mxu0 %v1560
    %v2766 = vpop.f32.mrb[0].mxu0
    %v2767 = vadd.f32 %v2414, %v2766
    %v2768 = vpop.f32.mrb[0].mxu0
    %v2769 = vadd.f32 %v2416, %v2768
    %v2770 = vpop.f32.mrb[0].mxu0
    %v2771 = vadd.f32 %v2418, %v2770
    %v2772 = vpop.f32.mrb[0].mxu0
    %v2773 = vadd.f32 %v2420, %v2772
    %2774 = vmatprep.mubr.bf16.mxu0 %v1565
    %2775 = vmatmul.mubr.bf16.gmra.mrb[0].mxu0 %v1564
    %v2776 = vpop.f32.mrb[0].mxu0
    %v2777 = vadd.f32 %v2424, %v2776
    %v2778 = vpop.f32.mrb[0].mxu0
    %v2779 = vadd.f32 %v2426, %v2778
    %v2780 = vpop.f32.mrb[0].mxu0
    %v2781 = vadd.f32 %v2428, %v2780
    %v2782 = vpop.f32.mrb[0].mxu0
    %v2783 = vadd.f32 %v2430, %v2782
    %2784 = vmatprep.mubr.bf16.mxu0 %v1569
    %2785 = vmatmul.mubr.bf16.gmra.mrb[0].mxu0 %v1568
    %v2786 = vpop.f32.mrb[0].mxu0
    %v2787 = vadd.f32 %v2434, %v2786
    %v2788 = vpop.f32.mrb[0].mxu0
    %v2789 = vadd.f32 %v2436, %v2788
    %v2790 = vpop.f32.mrb[0].mxu0
    %v2791 = vadd.f32 %v2438, %v2790
    %v2792 = vpop.f32.mrb[0].mxu0
    %v2793 = vadd.f32 %v2440, %v2792
    %2794 = vmatprep.mubr.bf16.mxu0 %v1573
    %2795 = vmatmul.mubr.bf16.gmra.mrb[0].mxu0 %v1572
    %v2796 = vpop.f32.mrb[0].mxu0
    %v2797 = vadd.f32 %v2444, %v2796
    %v2798 = vpop.f32.mrb[0].mxu0
    %v2799 = vadd.f32 %v2446, %v2798
    %v2800 = vpop.f32.mrb[0].mxu0
    %v2801 = vadd.f32 %v2448, %v2800
    %v2802 = vpop.f32.mrb[0].mxu0
    %v2803 = vadd.f32 %v2450, %v2802
    %2804 = vmatprep.mubr.bf16.mxu0 %v1577
    %2805 = vmatmul.mubr.bf16.gmra.mrb[0].mxu0 %v1576
    %v2806 = vpop.f32.mrb[0].mxu0
    %v2807 = vadd.f32 %v2454, %v2806
    %v2808 = vpop.f32.mrb[0].mxu0
    %v2809 = vadd.f32 %v2456, %v2808
    %v2810 = vpop.f32.mrb[0].mxu0
    %v2811 = vadd.f32 %v2458, %v2810
    %v2812 = vpop.f32.mrb[0].mxu0
    %v2813 = vadd.f32 %v2460, %v2812
    %2814 = vmatprep.mubr.bf16.mxu0 %v1581
    %2815 = vmatmul.mubr.bf16.gmra.mrb[0].mxu0 %v1580
    %v2816 = vpop.f32.mrb[0].mxu0
    %v2817 = vadd.f32 %v2464, %v2816
    %v2818 = vpop.f32.mrb[0].mxu0
    %v2819 = vadd.f32 %v2466, %v2818
    %v2820 = vpop.f32.mrb[0].mxu0
    %v2821 = vadd.f32 %v2468, %v2820
    %v2822 = vpop.f32.mrb[0].mxu0
    %v2823 = vadd.f32 %v2470, %v2822
    %2824 = vmatprep.mubr.bf16.mxu0 %v1585
    %2825 = vmatmul.mubr.bf16.gmra.mrb[0].mxu0 %v1584
    %v2826 = vpop.f32.mrb[0].mxu0
    %v2827 = vadd.f32 %v2474, %v2826
    %v2828 = vpop.f32.mrb[0].mxu0
    %v2829 = vadd.f32 %v2476, %v2828
    %v2830 = vpop.f32.mrb[0].mxu0
    %v2831 = vadd.f32 %v2478, %v2830
    %v2832 = vpop.f32.mrb[0].mxu0
    %v2833 = vadd.f32 %v2480, %v2832
    %2834 = vmatprep.mubr.bf16.mxu0 %v1589
    %2835 = vmatmul.mubr.bf16.gmra.mrb[0].mxu0 %v1588
    %v2836 = vpop.f32.mrb[0].mxu0
    %v2837 = vadd.f32 %v2484, %v2836
    %v2838 = vpop.f32.mrb[0].mxu0
    %v2839 = vadd.f32 %v2486, %v2838
    %v2840 = vpop.f32.mrb[0].mxu0
    %v2841 = vadd.f32 %v2488, %v2840
    %v2842 = vpop.f32.mrb[0].mxu0
    %v2843 = vadd.f32 %v2490, %v2842
    %2844 = vmatprep.mubr.bf16.mxu0 %v1593
    %2845 = vmatmul.mubr.bf16.gmra.mrb[0].mxu0 %v1592
    %v2846 = vpop.f32.mrb[0].mxu0
    %v2847 = vadd.f32 %v2494, %v2846
    %v2848 = vpop.f32.mrb[0].mxu0
    %v2849 = vadd.f32 %v2496, %v2848
    %v2850 = vpop.f32.mrb[0].mxu0
    %v2851 = vadd.f32 %v2498, %v2850
    %v2852 = vpop.f32.mrb[0].mxu0
    %v2853 = vadd.f32 %v2500, %v2852
    %2854 = vmatprep.mubr.bf16.mxu0 %v1597
    %2855 = vmatmul.mubr.bf16.gmra.mrb[0].mxu0 %v1596
    %v2856 = vpop.f32.mrb[0].mxu0
    %v2857 = vadd.f32 %v2504, %v2856
    %v2858 = vpop.f32.mrb[0].mxu0
    %v2859 = vadd.f32 %v2506, %v2858
    %v2860 = vpop.f32.mrb[0].mxu0
    %v2861 = vadd.f32 %v2508, %v2860
    %v2862 = vpop.f32.mrb[0].mxu0
    %v2863 = vadd.f32 %v2510, %v2862
    %2864 = vmatprep.mubr.bf16.mxu0 %v1601
    %2865 = vmatmul.mubr.bf16.gmra.mrb[0].mxu0 %v1600
    %v2866 = vpop.f32.mrb[0].mxu0
    %v2867 = vadd.f32 %v2514, %v2866
    %v2868 = vpop.f32.mrb[0].mxu0
    %v2869 = vadd.f32 %v2516, %v2868
    %v2870 = vpop.f32.mrb[0].mxu0
    %v2871 = vadd.f32 %v2518, %v2870
    %v2872 = vpop.f32.mrb[0].mxu0
    %v2873 = vadd.f32 %v2520, %v2872
    %2874 = vmatprep.mubr.bf16.mxu0 %v1605
    %2875 = vmatmul.mubr.bf16.gmra.mrb[0].mxu0 %v1604
    %v2876 = vpop.f32.mrb[0].mxu0
    %v2877 = vadd.f32 %v2524, %v2876
    %v2878 = vpop.f32.mrb[0].mxu0
    %v2879 = vadd.f32 %v2526, %v2878
    %v2880 = vpop.f32.mrb[0].mxu0
    %v2881 = vadd.f32 %v2528, %v2880
    %v2882 = vpop.f32.mrb[0].mxu0
    %v2883 = vadd.f32 %v2530, %v2882
    %2884 = vmatprep.mubr.bf16.mxu0 %v1609
    %2885 = vmatmul.mubr.bf16.gmra.mrb[0].mxu0 %v1608
    %v2886 = vpop.f32.mrb[0].mxu0
    %v2887 = vadd.f32 %v2534, %v2886
    %v2888 = vpop.f32.mrb[0].mxu0
    %v2889 = vadd.f32 %v2536, %v2888
    %v2890 = vpop.f32.mrb[0].mxu0
    %v2891 = vadd.f32 %v2538, %v2890
    %v2892 = vpop.f32.mrb[0].mxu0
    %v2893 = vadd.f32 %v2540, %v2892
    %2894 = vmatprep.mubr.bf16.mxu0 %v1613
    %2895 = vmatmul.mubr.bf16.gmra.mrb[0].mxu0 %v1612
    %v2896 = vpop.f32.mrb[0].mxu0
    %v2897 = vadd.f32 %v2544, %v2896
    %v2898 = vpop.f32.mrb[0].mxu0
    %v2899 = vadd.f32 %v2546, %v2898
    %v2900 = vpop.f32.mrb[0].mxu0
    %v2901 = vadd.f32 %v2548, %v2900
    %v2902 = vpop.f32.mrb[0].mxu0
    %v2903 = vadd.f32 %v2550, %v2902
    %2904 = vmatprep.mubr.bf16.mxu0 %v1617
    %2905 = vmatmul.mubr.bf16.gmra.mrb[0].mxu0 %v1616
    %v2906 = vpop.f32.mrb[0].mxu0
    %v2907 = vadd.f32 %v2554, %v2906
    %v2908 = vpop.f32.mrb[0].mxu0
    %v2909 = vadd.f32 %v2556, %v2908
    %v2910 = vpop.f32.mrb[0].mxu0
    %v2911 = vadd.f32 %v2558, %v2910
    %v2912 = vpop.f32.mrb[0].mxu0
    %v2913 = vadd.f32 %v2560, %v2912
    %2914 = vmatprep.mubr.bf16.mxu0 %v1621
    %2915 = vmatmul.mubr.bf16.gmra.mrb[0].mxu0 %v1620
    %v2916 = vpop.f32.mrb[0].mxu0
    %v2917 = vadd.f32 %v2564, %v2916
    %v2918 = vpop.f32.mrb[0].mxu0
    %v2919 = vadd.f32 %v2566, %v2918
    %v2920 = vpop.f32.mrb[0].mxu0
    %v2921 = vadd.f32 %v2568, %v2920
    %v2922 = vpop.f32.mrb[0].mxu0
    %v2923 = vadd.f32 %v2570, %v2922
    %2924 = vmatprep.mubr.bf16.mxu0 %v1625
    %2925 = vmatmul.mubr.bf16.gmra.mrb[0].mxu0 %v1624
    %v2926 = vpop.f32.mrb[0].mxu0
    %v2927 = vadd.f32 %v2574, %v2926
    %v2928 = vpop.f32.mrb[0].mxu0
    %v2929 = vadd.f32 %v2576, %v2928
    %v2930 = vpop.f32.mrb[0].mxu0
    %v2931 = vadd.f32 %v2578, %v2930
    %v2932 = vpop.f32.mrb[0].mxu0
    %v2933 = vadd.f32 %v2580, %v2932
    %2934 = vmatprep.mubr.bf16.mxu0 %v1629
    %2935 = vmatmul.mubr.bf16.gmra.mrb[0].mxu0 %v1628
    %v2936 = vpop.f32.mrb[0].mxu0
    %v2937 = vadd.f32 %v2584, %v2936
    %v2938 = vpop.f32.mrb[0].mxu0
    %v2939 = vadd.f32 %v2586, %v2938
    %v2940 = vpop.f32.mrb[0].mxu0
    %v2941 = vadd.f32 %v2588, %v2940
    %v2942 = vpop.f32.mrb[0].mxu0
    %v2943 = vadd.f32 %v2590, %v2942
    %2944 = vmatprep.mubr.bf16.mxu0 %v1633
    %2945 = vmatmul.mubr.bf16.gmra.mrb[0].mxu0 %v1632
    %v2946 = vpop.f32.mrb[0].mxu0
    %v2947 = vadd.f32 %v2594, %v2946
    %v2948 = vpop.f32.mrb[0].mxu0
    %v2949 = vadd.f32 %v2596, %v2948
    %v2950 = vpop.f32.mrb[0].mxu0
    %v2951 = vadd.f32 %v2598, %v2950
    %v2952 = vpop.f32.mrb[0].mxu0
    %v2953 = vadd.f32 %v2600, %v2952
    %2954 = vmatprep.mubr.bf16.mxu0 %v1637
    %2955 = vmatmul.mubr.bf16.gmra.mrb[0].mxu0 %v1636
    %v2956 = vpop.f32.mrb[0].mxu0
    %v2957 = vadd.f32 %v2604, %v2956
    %v2958 = vpop.f32.mrb[0].mxu0
    %v2959 = vadd.f32 %v2606, %v2958
    %v2960 = vpop.f32.mrb[0].mxu0
    %v2961 = vadd.f32 %v2608, %v2960
    %v2962 = vpop.f32.mrb[0].mxu0
    %v2963 = vadd.f32 %v2610, %v2962
    %2964 = vmatprep.mubr.bf16.mxu0 %v1641
    %2965 = vmatmul.mubr.bf16.gmra.mrb[0].mxu0 %v1640
    %v2966 = vpop.f32.mrb[0].mxu0
    %v2967 = vadd.f32 %v2614, %v2966
    %v2968 = vpop.f32.mrb[0].mxu0
    %v2969 = vadd.f32 %v2616, %v2968
    %v2970 = vpop.f32.mrb[0].mxu0
    %v2971 = vadd.f32 %v2618, %v2970
    %v2972 = vpop.f32.mrb[0].mxu0
    %v2973 = vadd.f32 %v2620, %v2972
    %2974 = vmatprep.mubr.bf16.mxu0 %v1645
    %2975 = vmatmul.mubr.bf16.gmra.mrb[0].mxu0 %v1644
    %v2976 = vpop.f32.mrb[0].mxu0
    %v2977 = vadd.f32 %v2624, %v2976
    %v2978 = vpop.f32.mrb[0].mxu0
    %v2979 = vadd.f32 %v2626, %v2978
    %v2980 = vpop.f32.mrb[0].mxu0
    %v2981 = vadd.f32 %v2628, %v2980
    %v2982 = vpop.f32.mrb[0].mxu0
    %v2983 = vadd.f32 %v2630, %v2982
    %2984 = vmatprep.mubr.bf16.mxu0 %v1649
    %2985 = vmatmul.mubr.bf16.gmra.mrb[0].mxu0 %v1648
    %v2986 = vpop.f32.mrb[0].mxu0
    %v2987 = vadd.f32 %v2634, %v2986
    %v2988 = vpop.f32.mrb[0].mxu0
    %v2989 = vadd.f32 %v2636, %v2988
    %v2990 = vpop.f32.mrb[0].mxu0
    %v2991 = vadd.f32 %v2638, %v2990
    %v2992 = vpop.f32.mrb[0].mxu0
    %v2993 = vadd.f32 %v2640, %v2992
    %2994 = vmatprep.mubr.bf16.mxu0 %v1653
    %2995 = vmatmul.mubr.bf16.gmra.mrb[0].mxu0 %v1652
    %v2996 = vpop.f32.mrb[0].mxu0
    %v2997 = vadd.f32 %v2644, %v2996
    %v2998 = vpop.f32.mrb[0].mxu0
    %v2999 = vadd.f32 %v2646, %v2998
    %v3000 = vpop.f32.mrb[0].mxu0
    %v3001 = vadd.f32 %v2648, %v3000
    %v3002 = vpop.f32.mrb[0].mxu0
    %v3003 = vadd.f32 %v2650, %v3002
    %3004 = vmatprep.mubr.bf16.mxu0 %v1657
    %3005 = vmatmul.mubr.bf16.gmra.mrb[0].mxu0 %v1656
    %v3006 = vpop.f32.mrb[0].mxu0
    %v3007 = vadd.f32 %v2654, %v3006
    %v3008 = vpop.f32.mrb[0].mxu0
    %v3009 = vadd.f32 %v2656, %v3008
    %v3010 = vpop.f32.mrb[0].mxu0
    %v3011 = vadd.f32 %v2658, %v3010
    %v3012 = vpop.f32.mrb[0].mxu0
    %v3013 = vadd.f32 %v2660, %v3012
    %3014 = vmatprep.mubr.bf16.mxu0 %v1661
    %3015 = vmatmul.mubr.bf16.gmra.mrb[0].mxu0 %v1660
    %v3016 = vpop.f32.mrb[0].mxu0
    %v3017 = vadd.f32 %v2664, %v3016
    %v3018 = vpop.f32.mrb[0].mxu0
    %v3019 = vadd.f32 %v2666, %v3018
    %v3020 = vpop.f32.mrb[0].mxu0
    %v3021 = vadd.f32 %v2668, %v3020
    %v3022 = vpop.f32.mrb[0].mxu0
    %v3023 = vadd.f32 %v2670, %v3022
    %3024 = vdwg.mxu0
    %3025 = vmatprep.subr.bf16.mxu0 0
    %3026 = vmatpush1.bf16.msra.mxu0 %v2129
    %3027 = vmatprep.subr.bf16.mxu0 0
    %3028 = vmatpush1.bf16.msra.mxu0 %v2132
    %3029 = vmatprep.subr.bf16.mxu0 0
    %3030 = vmatpush1.bf16.msra.mxu0 %v2135
    %3031 = vmatprep.subr.bf16.mxu0 0
    %3032 = vmatpush1.bf16.msra.mxu0 %v2138
    %3033 = vmatprep.subr.bf16.mxu0 0
    %3034 = vmatpush1.bf16.msra.mxu0 %v2141
    %3035 = vmatprep.subr.bf16.mxu0 0
    %3036 = vmatpush1.bf16.msra.mxu0 %v2144
    %3037 = vmatprep.subr.bf16.mxu0 0
    %3038 = vmatpush1.bf16.msra.mxu0 %v2147
    %3039 = vmatprep.subr.bf16.mxu0 0
    %3040 = vmatpush1.bf16.msra.mxu0 %v2150
    %3041 = vmatprep.subr.bf16.mxu0 0
    %3042 = vmatpush1.bf16.msra.mxu0 %v2153
    %3043 = vmatprep.subr.bf16.mxu0 0
    %3044 = vmatpush1.bf16.msra.mxu0 %v2156
    %3045 = vmatprep.subr.bf16.mxu0 0
    %3046 = vmatpush1.bf16.msra.mxu0 %v2159
    %3047 = vmatprep.subr.bf16.mxu0 0
    %3048 = vmatpush1.bf16.msra.mxu0 %v2162
    %3049 = vmatprep.subr.bf16.mxu0 0
    %3050 = vmatpush1.bf16.msra.mxu0 %v2165
    %3051 = vmatprep.subr.bf16.mxu0 0
    %3052 = vmatpush1.bf16.msra.mxu0 %v2168
    %3053 = vmatprep.subr.bf16.mxu0 0
    %3054 = vmatpush1.bf16.msra.mxu0 %v2171
    %3055 = vmatprep.subr.bf16.mxu0 0
    %3056 = vmatpush1.bf16.msra.mxu0 %v2174
    %3057 = vmatprep.mubr.bf16.mxu0 %v1535
    %3058 = vmatmul.mubr.bf16.gmra.mrb[0].mxu0 %v1534
    %v3059 = vpop.f32.mrb[0].mxu0
    %v3060 = vadd.f32 %v1803, %v3059
    %v3061 = vpop.f32.mrb[0].mxu0
    %v3062 = vpop.f32.mrb[0].mxu0
    %v3063 = vadd.f32 %v1803, %v3062
    %v3064 = vpop.f32.mrb[0].mxu0
    %3065 = vmatprep.mubr.bf16.mxu0 %v1539
    %3066 = vmatmul.mubr.bf16.gmra.mrb[0].mxu0 %v1538
    %v3067 = vpop.f32.mrb[0].mxu0
    %v3068 = vadd.f32 %v1803, %v3067
    %v3069 = vpop.f32.mrb[0].mxu0
    %v3070 = vpop.f32.mrb[0].mxu0
    %v3071 = vadd.f32 %v1803, %v3070
    %v3072 = vpop.f32.mrb[0].mxu0
    %3073 = vmatprep.mubr.bf16.mxu0 %v1543
    %3074 = vmatmul.mubr.bf16.gmra.mrb[0].mxu0 %v1542
    %v3075 = vpop.f32.mrb[0].mxu0
    %v3076 = vadd.f32 %v1803, %v3075
    %v3077 = vpop.f32.mrb[0].mxu0
    %v3078 = vpop.f32.mrb[0].mxu0
    %v3079 = vadd.f32 %v1803, %v3078
    %v3080 = vpop.f32.mrb[0].mxu0
    %3081 = vmatprep.mubr.bf16.mxu0 %v1547
    %3082 = vmatmul.mubr.bf16.gmra.mrb[0].mxu0 %v1546
    %v3083 = vpop.f32.mrb[0].mxu0
    %v3084 = vadd.f32 %v1803, %v3083
    %v3085 = vpop.f32.mrb[0].mxu0
    %v3086 = vpop.f32.mrb[0].mxu0
    %v3087 = vadd.f32 %v1803, %v3086
    %v3088 = vpop.f32.mrb[0].mxu0
    %3089 = vmatprep.mubr.bf16.mxu0 %v1551
    %3090 = vmatmul.mubr.bf16.gmra.mrb[0].mxu0 %v1550
    %v3091 = vpop.f32.mrb[0].mxu0
    %v3092 = vadd.f32 %v1803, %v3091
    %v3093 = vpop.f32.mrb[0].mxu0
    %v3094 = vpop.f32.mrb[0].mxu0
    %v3095 = vadd.f32 %v1803, %v3094
    %v3096 = vpop.f32.mrb[0].mxu0
    %3097 = vmatprep.mubr.bf16.mxu0 %v1555
    %3098 = vmatmul.mubr.bf16.gmra.mrb[0].mxu0 %v1554
    %v3099 = vpop.f32.mrb[0].mxu0
    %v3100 = vadd.f32 %v1803, %v3099
    %v3101 = vpop.f32.mrb[0].mxu0
    %v3102 = vpop.f32.mrb[0].mxu0
    %v3103 = vadd.f32 %v1803, %v3102
    %v3104 = vpop.f32.mrb[0].mxu0
    %3105 = vmatprep.mubr.bf16.mxu0 %v1559
    %3106 = vmatmul.mubr.bf16.gmra.mrb[0].mxu0 %v1558
    %v3107 = vpop.f32.mrb[0].mxu0
    %v3108 = vadd.f32 %v1803, %v3107
    %v3109 = vpop.f32.mrb[0].mxu0
    %v3110 = vpop.f32.mrb[0].mxu0
    %v3111 = vadd.f32 %v1803, %v3110
    %v3112 = vpop.f32.mrb[0].mxu0
    %3113 = vmatprep.mubr.bf16.mxu0 %v1563
    %3114 = vmatmul.mubr.bf16.gmra.mrb[0].mxu0 %v1562
    %v3115 = vpop.f32.mrb[0].mxu0
    %v3116 = vadd.f32 %v1803, %v3115
    %v3117 = vpop.f32.mrb[0].mxu0
    %v3118 = vpop.f32.mrb[0].mxu0
    %v3119 = vadd.f32 %v1803, %v3118
    %v3120 = vpop.f32.mrb[0].mxu0
    %3121 = vmatprep.mubr.bf16.mxu0 %v1567
    %3122 = vmatmul.mubr.bf16.gmra.mrb[0].mxu0 %v1566
    %v3123 = vpop.f32.mrb[0].mxu0
    %v3124 = vadd.f32 %v1803, %v3123
    %v3125 = vpop.f32.mrb[0].mxu0
    %v3126 = vpop.f32.mrb[0].mxu0
    %v3127 = vadd.f32 %v1803, %v3126
    %v3128 = vpop.f32.mrb[0].mxu0
    %3129 = vmatprep.mubr.bf16.mxu0 %v1571
    %3130 = vmatmul.mubr.bf16.gmra.mrb[0].mxu0 %v1570
    %v3131 = vpop.f32.mrb[0].mxu0
    %v3132 = vadd.f32 %v1803, %v3131
    %v3133 = vpop.f32.mrb[0].mxu0
    %v3134 = vpop.f32.mrb[0].mxu0
    %v3135 = vadd.f32 %v1803, %v3134
    %v3136 = vpop.f32.mrb[0].mxu0
    %3137 = vmatprep.mubr.bf16.mxu0 %v1575
    %3138 = vmatmul.mubr.bf16.gmra.mrb[0].mxu0 %v1574
    %v3139 = vpop.f32.mrb[0].mxu0
    %v3140 = vadd.f32 %v1803, %v3139
    %v3141 = vpop.f32.mrb[0].mxu0
    %v3142 = vpop.f32.mrb[0].mxu0
    %v3143 = vadd.f32 %v1803, %v3142
    %v3144 = vpop.f32.mrb[0].mxu0
    %3145 = vmatprep.mubr.bf16.mxu0 %v1579
    %3146 = vmatmul.mubr.bf16.gmra.mrb[0].mxu0 %v1578
    %v3147 = vpop.f32.mrb[0].mxu0
    %v3148 = vadd.f32 %v1803, %v3147
    %v3149 = vpop.f32.mrb[0].mxu0
    %v3150 = vpop.f32.mrb[0].mxu0
    %v3151 = vadd.f32 %v1803, %v3150
    %v3152 = vpop.f32.mrb[0].mxu0
    %3153 = vmatprep.mubr.bf16.mxu0 %v1583
    %3154 = vmatmul.mubr.bf16.gmra.mrb[0].mxu0 %v1582
    %v3155 = vpop.f32.mrb[0].mxu0
    %v3156 = vadd.f32 %v1803, %v3155
    %v3157 = vpop.f32.mrb[0].mxu0
    %v3158 = vpop.f32.mrb[0].mxu0
    %v3159 = vadd.f32 %v1803, %v3158
    %v3160 = vpop.f32.mrb[0].mxu0
    %3161 = vmatprep.mubr.bf16.mxu0 %v1587
    %3162 = vmatmul.mubr.bf16.gmra.mrb[0].mxu0 %v1586
    %v3163 = vpop.f32.mrb[0].mxu0
    %v3164 = vadd.f32 %v1803, %v3163
    %v3165 = vpop.f32.mrb[0].mxu0
    %v3166 = vpop.f32.mrb[0].mxu0
    %v3167 = vadd.f32 %v1803, %v3166
    %v3168 = vpop.f32.mrb[0].mxu0
    %3169 = vmatprep.mubr.bf16.mxu0 %v1591
    %3170 = vmatmul.mubr.bf16.gmra.mrb[0].mxu0 %v1590
    %v3171 = vpop.f32.mrb[0].mxu0
    %v3172 = vadd.f32 %v1803, %v3171
    %v3173 = vpop.f32.mrb[0].mxu0
    %v3174 = vpop.f32.mrb[0].mxu0
    %v3175 = vadd.f32 %v1803, %v3174
    %v3176 = vpop.f32.mrb[0].mxu0
    %3177 = vmatprep.mubr.bf16.mxu0 %v1595
    %3178 = vmatmul.mubr.bf16.gmra.mrb[0].mxu0 %v1594
    %v3179 = vpop.f32.mrb[0].mxu0
    %v3180 = vadd.f32 %v1803, %v3179
    %v3181 = vpop.f32.mrb[0].mxu0
    %v3182 = vpop.f32.mrb[0].mxu0
    %v3183 = vadd.f32 %v1803, %v3182
    %v3184 = vpop.f32.mrb[0].mxu0
    %3185 = vmatprep.mubr.bf16.mxu0 %v1599
    %3186 = vmatmul.mubr.bf16.gmra.mrb[0].mxu0 %v1598
    %v3187 = vpop.f32.mrb[0].mxu0
    %v3188 = vadd.f32 %v1803, %v3187
    %v3189 = vpop.f32.mrb[0].mxu0
    %v3190 = vpop.f32.mrb[0].mxu0
    %v3191 = vadd.f32 %v1803, %v3190
    %v3192 = vpop.f32.mrb[0].mxu0
    %3193 = vmatprep.mubr.bf16.mxu0 %v1603
    %3194 = vmatmul.mubr.bf16.gmra.mrb[0].mxu0 %v1602
    %v3195 = vpop.f32.mrb[0].mxu0
    %v3196 = vadd.f32 %v1803, %v3195
    %v3197 = vpop.f32.mrb[0].mxu0
    %v3198 = vpop.f32.mrb[0].mxu0
    %v3199 = vadd.f32 %v1803, %v3198
    %v3200 = vpop.f32.mrb[0].mxu0
    %3201 = vmatprep.mubr.bf16.mxu0 %v1607
    %3202 = vmatmul.mubr.bf16.gmra.mrb[0].mxu0 %v1606
    %v3203 = vpop.f32.mrb[0].mxu0
    %v3204 = vadd.f32 %v1803, %v3203
    %v3205 = vpop.f32.mrb[0].mxu0
    %v3206 = vpop.f32.mrb[0].mxu0
    %v3207 = vadd.f32 %v1803, %v3206
    %v3208 = vpop.f32.mrb[0].mxu0
    %3209 = vmatprep.mubr.bf16.mxu0 %v1611
    %3210 = vmatmul.mubr.bf16.gmra.mrb[0].mxu0 %v1610
    %v3211 = vpop.f32.mrb[0].mxu0
    %v3212 = vadd.f32 %v1803, %v3211
    %v3213 = vpop.f32.mrb[0].mxu0
    %v3214 = vpop.f32.mrb[0].mxu0
    %v3215 = vadd.f32 %v1803, %v3214
    %v3216 = vpop.f32.mrb[0].mxu0
    %3217 = vmatprep.mubr.bf16.mxu0 %v1615
    %3218 = vmatmul.mubr.bf16.gmra.mrb[0].mxu0 %v1614
    %v3219 = vpop.f32.mrb[0].mxu0
    %v3220 = vadd.f32 %v1803, %v3219
    %v3221 = vpop.f32.mrb[0].mxu0
    %v3222 = vpop.f32.mrb[0].mxu0
    %v3223 = vadd.f32 %v1803, %v3222
    %v3224 = vpop.f32.mrb[0].mxu0
    %3225 = vmatprep.mubr.bf16.mxu0 %v1619
    %3226 = vmatmul.mubr.bf16.gmra.mrb[0].mxu0 %v1618
    %v3227 = vpop.f32.mrb[0].mxu0
    %v3228 = vadd.f32 %v1803, %v3227
    %v3229 = vpop.f32.mrb[0].mxu0
    %v3230 = vpop.f32.mrb[0].mxu0
    %v3231 = vadd.f32 %v1803, %v3230
    %v3232 = vpop.f32.mrb[0].mxu0
    %3233 = vmatprep.mubr.bf16.mxu0 %v1623
    %3234 = vmatmul.mubr.bf16.gmra.mrb[0].mxu0 %v1622
    %v3235 = vpop.f32.mrb[0].mxu0
    %v3236 = vadd.f32 %v1803, %v3235
    %v3237 = vpop.f32.mrb[0].mxu0
    %v3238 = vpop.f32.mrb[0].mxu0
    %v3239 = vadd.f32 %v1803, %v3238
    %v3240 = vpop.f32.mrb[0].mxu0
    %3241 = vmatprep.mubr.bf16.mxu0 %v1627
    %3242 = vmatmul.mubr.bf16.gmra.mrb[0].mxu0 %v1626
    %v3243 = vpop.f32.mrb[0].mxu0
    %v3244 = vadd.f32 %v1803, %v3243
    %v3245 = vpop.f32.mrb[0].mxu0
    %v3246 = vpop.f32.mrb[0].mxu0
    %v3247 = vadd.f32 %v1803, %v3246
    %v3248 = vpop.f32.mrb[0].mxu0
    %3249 = vmatprep.mubr.bf16.mxu0 %v1631
    %3250 = vmatmul.mubr.bf16.gmra.mrb[0].mxu0 %v1630
    %v3251 = vpop.f32.mrb[0].mxu0
    %v3252 = vadd.f32 %v1803, %v3251
    %v3253 = vpop.f32.mrb[0].mxu0
    %v3254 = vpop.f32.mrb[0].mxu0
    %v3255 = vadd.f32 %v1803, %v3254
    %v3256 = vpop.f32.mrb[0].mxu0
    %3257 = vmatprep.mubr.bf16.mxu0 %v1635
    %3258 = vmatmul.mubr.bf16.gmra.mrb[0].mxu0 %v1634
    %v3259 = vpop.f32.mrb[0].mxu0
    %v3260 = vadd.f32 %v1803, %v3259
    %v3261 = vpop.f32.mrb[0].mxu0
    %v3262 = vpop.f32.mrb[0].mxu0
    %v3263 = vadd.f32 %v1803, %v3262
    %v3264 = vpop.f32.mrb[0].mxu0
    %3265 = vmatprep.mubr.bf16.mxu0 %v1639
    %3266 = vmatmul.mubr.bf16.gmra.mrb[0].mxu0 %v1638
    %v3267 = vpop.f32.mrb[0].mxu0
    %v3268 = vadd.f32 %v1803, %v3267
    %v3269 = vpop.f32.mrb[0].mxu0
    %v3270 = vpop.f32.mrb[0].mxu0
    %v3271 = vadd.f32 %v1803, %v3270
    %v3272 = vpop.f32.mrb[0].mxu0
    %3273 = vmatprep.mubr.bf16.mxu0 %v1643
    %3274 = vmatmul.mubr.bf16.gmra.mrb[0].mxu0 %v1642
    %v3275 = vpop.f32.mrb[0].mxu0
    %v3276 = vadd.f32 %v1803, %v3275
    %v3277 = vpop.f32.mrb[0].mxu0
    %v3278 = vpop.f32.mrb[0].mxu0
    %v3279 = vadd.f32 %v1803, %v3278
    %v3280 = vpop.f32.mrb[0].mxu0
    %3281 = vmatprep.mubr.bf16.mxu0 %v1647
    %3282 = vmatmul.mubr.bf16.gmra.mrb[0].mxu0 %v1646
    %v3283 = vpop.f32.mrb[0].mxu0
    %v3284 = vadd.f32 %v1803, %v3283
    %v3285 = vpop.f32.mrb[0].mxu0
    %v3286 = vpop.f32.mrb[0].mxu0
    %v3287 = vadd.f32 %v1803, %v3286
    %v3288 = vpop.f32.mrb[0].mxu0
    %3289 = vmatprep.mubr.bf16.mxu0 %v1651
    %3290 = vmatmul.mubr.bf16.gmra.mrb[0].mxu0 %v1650
    %v3291 = vpop.f32.mrb[0].mxu0
    %v3292 = vadd.f32 %v1803, %v3291
    %v3293 = vpop.f32.mrb[0].mxu0
    %v3294 = vpop.f32.mrb[0].mxu0
    %v3295 = vadd.f32 %v1803, %v3294
    %v3296 = vpop.f32.mrb[0].mxu0
    %3297 = vmatprep.mubr.bf16.mxu0 %v1655
    %3298 = vmatmul.mubr.bf16.gmra.mrb[0].mxu0 %v1654
    %v3299 = vpop.f32.mrb[0].mxu0
    %v3300 = vadd.f32 %v1803, %v3299
    %v3301 = vpop.f32.mrb[0].mxu0
    %v3302 = vpop.f32.mrb[0].mxu0
    %v3303 = vadd.f32 %v1803, %v3302
    %v3304 = vpop.f32.mrb[0].mxu0
    %3305 = vmatprep.mubr.bf16.mxu0 %v1659
    %3306 = vmatmul.mubr.bf16.gmra.mrb[0].mxu0 %v1658
    %v3307 = vpop.f32.mrb[0].mxu0
    %v3308 = vadd.f32 %v1803, %v3307
    %v3309 = vpop.f32.mrb[0].mxu0
    %v3310 = vpop.f32.mrb[0].mxu0
    %v3311 = vadd.f32 %v1803, %v3310
    %v3312 = vpop.f32.mrb[0].mxu0
    %3313 = vdwg.mxu0
    %3314 = vmatprep.subr.bf16.mxu0 0
    %3315 = vmatpush1.bf16.msra.mxu0 %v2177
    %3316 = vmatprep.subr.bf16.mxu0 0
    %3317 = vmatpush1.bf16.msra.mxu0 %v2180
    %3318 = vmatprep.subr.bf16.mxu0 0
    %3319 = vmatpush1.bf16.msra.mxu0 %v2183
    %3320 = vmatprep.subr.bf16.mxu0 0
    %3321 = vmatpush1.bf16.msra.mxu0 %v2186
    %3322 = vmatprep.subr.bf16.mxu0 0
    %3323 = vmatpush1.bf16.msra.mxu0 %v2189
    %3324 = vmatprep.subr.bf16.mxu0 0
    %3325 = vmatpush1.bf16.msra.mxu0 %v2192
    %3326 = vmatprep.subr.bf16.mxu0 0
    %3327 = vmatpush1.bf16.msra.mxu0 %v2195
    %3328 = vmatprep.subr.bf16.mxu0 0
    %3329 = vmatpush1.bf16.msra.mxu0 %v2198
    %3330 = vmatprep.subr.bf16.mxu0 0
    %3331 = vmatpush1.bf16.msra.mxu0 %v2201
    %3332 = vmatprep.subr.bf16.mxu0 0
    %3333 = vmatpush1.bf16.msra.mxu0 %v2204
    %3334 = vmatprep.subr.bf16.mxu0 0
    %3335 = vmatpush1.bf16.msra.mxu0 %v2207
    %3336 = vmatprep.subr.bf16.mxu0 0
    %3337 = vmatpush1.bf16.msra.mxu0 %v2210
    %3338 = vmatprep.subr.bf16.mxu0 0
    %3339 = vmatpush1.bf16.msra.mxu0 %v2213
    %3340 = vmatprep.subr.bf16.mxu0 0
    %3341 = vmatpush1.bf16.msra.mxu0 %v2216
    %3342 = vmatprep.subr.bf16.mxu0 0
    %3343 = vmatpush1.bf16.msra.mxu0 %v2219
    %3344 = vmatprep.subr.bf16.mxu0 0
    %3345 = vmatpush1.bf16.msra.mxu0 %v2222
    %3346 = vmatprep.mubr.bf16.mxu0 %v1537
    %3347 = vmatmul.mubr.bf16.gmra.mrb[0].mxu0 %v1536
    %v3348 = vpop.f32.mrb[0].mxu0
    %v3349 = vadd.f32 %v3060, %v3348
    %v3350 = vpop.f32.mrb[0].mxu0
    %v3351 = vpop.f32.mrb[0].mxu0
    %v3352 = vadd.f32 %v3063, %v3351
    %v3353 = vpop.f32.mrb[0].mxu0
    %3354 = vmatprep.mubr.bf16.mxu0 %v1541
    %3355 = vmatmul.mubr.bf16.gmra.mrb[0].mxu0 %v1540
    %v3356 = vpop.f32.mrb[0].mxu0
    %v3357 = vadd.f32 %v3068, %v3356
    %v3358 = vpop.f32.mrb[0].mxu0
    %v3359 = vpop.f32.mrb[0].mxu0
    %v3360 = vadd.f32 %v3071, %v3359
    %v3361 = vpop.f32.mrb[0].mxu0
    %3362 = vmatprep.mubr.bf16.mxu0 %v1545
    %3363 = vmatmul.mubr.bf16.gmra.mrb[0].mxu0 %v1544
    %v3364 = vpop.f32.mrb[0].mxu0
    %v3365 = vadd.f32 %v3076, %v3364
    %v3366 = vpop.f32.mrb[0].mxu0
    %v3367 = vpop.f32.mrb[0].mxu0
    %v3368 = vadd.f32 %v3079, %v3367
    %v3369 = vpop.f32.mrb[0].mxu0
    %3370 = vmatprep.mubr.bf16.mxu0 %v1549
    %3371 = vmatmul.mubr.bf16.gmra.mrb[0].mxu0 %v1548
    %v3372 = vpop.f32.mrb[0].mxu0
    %v3373 = vadd.f32 %v3084, %v3372
    %v3374 = vpop.f32.mrb[0].mxu0
    %v3375 = vpop.f32.mrb[0].mxu0
    %v3376 = vadd.f32 %v3087, %v3375
    %v3377 = vpop.f32.mrb[0].mxu0
    %3378 = vmatprep.mubr.bf16.mxu0 %v1553
    %3379 = vmatmul.mubr.bf16.gmra.mrb[0].mxu0 %v1552
    %v3380 = vpop.f32.mrb[0].mxu0
    %v3381 = vadd.f32 %v3092, %v3380
    %v3382 = vpop.f32.mrb[0].mxu0
    %v3383 = vpop.f32.mrb[0].mxu0
    %v3384 = vadd.f32 %v3095, %v3383
    %v3385 = vpop.f32.mrb[0].mxu0
    %3386 = vmatprep.mubr.bf16.mxu0 %v1557
    %3387 = vmatmul.mubr.bf16.gmra.mrb[0].mxu0 %v1556
    %v3388 = vpop.f32.mrb[0].mxu0
    %v3389 = vadd.f32 %v3100, %v3388
    %v3390 = vpop.f32.mrb[0].mxu0
    %v3391 = vpop.f32.mrb[0].mxu0
    %v3392 = vadd.f32 %v3103, %v3391
    %v3393 = vpop.f32.mrb[0].mxu0
    %3394 = vmatprep.mubr.bf16.mxu0 %v1561
    %3395 = vmatmul.mubr.bf16.gmra.mrb[0].mxu0 %v1560
    %v3396 = vpop.f32.mrb[0].mxu0
    %v3397 = vadd.f32 %v3108, %v3396
    %v3398 = vpop.f32.mrb[0].mxu0
    %v3399 = vpop.f32.mrb[0].mxu0
    %v3400 = vadd.f32 %v3111, %v3399
    %v3401 = vpop.f32.mrb[0].mxu0
    %3402 = vmatprep.mubr.bf16.mxu0 %v1565
    %3403 = vmatmul.mubr.bf16.gmra.mrb[0].mxu0 %v1564
    %v3404 = vpop.f32.mrb[0].mxu0
    %v3405 = vadd.f32 %v3116, %v3404
    %v3406 = vpop.f32.mrb[0].mxu0
    %v3407 = vpop.f32.mrb[0].mxu0
    %v3408 = vadd.f32 %v3119, %v3407
    %v3409 = vpop.f32.mrb[0].mxu0
    %3410 = vmatprep.mubr.bf16.mxu0 %v1569
    %3411 = vmatmul.mubr.bf16.gmra.mrb[0].mxu0 %v1568
    %v3412 = vpop.f32.mrb[0].mxu0
    %v3413 = vadd.f32 %v3124, %v3412
    %v3414 = vpop.f32.mrb[0].mxu0
    %v3415 = vpop.f32.mrb[0].mxu0
    %v3416 = vadd.f32 %v3127, %v3415
    %v3417 = vpop.f32.mrb[0].mxu0
    %3418 = vmatprep.mubr.bf16.mxu0 %v1573
    %3419 = vmatmul.mubr.bf16.gmra.mrb[0].mxu0 %v1572
    %v3420 = vpop.f32.mrb[0].mxu0
    %v3421 = vadd.f32 %v3132, %v3420
    %v3422 = vpop.f32.mrb[0].mxu0
    %v3423 = vpop.f32.mrb[0].mxu0
    %v3424 = vadd.f32 %v3135, %v3423
    %v3425 = vpop.f32.mrb[0].mxu0
    %3426 = vmatprep.mubr.bf16.mxu0 %v1577
    %3427 = vmatmul.mubr.bf16.gmra.mrb[0].mxu0 %v1576
    %v3428 = vpop.f32.mrb[0].mxu0
    %v3429 = vadd.f32 %v3140, %v3428
    %v3430 = vpop.f32.mrb[0].mxu0
    %v3431 = vpop.f32.mrb[0].mxu0
    %v3432 = vadd.f32 %v3143, %v3431
    %v3433 = vpop.f32.mrb[0].mxu0
    %3434 = vmatprep.mubr.bf16.mxu0 %v1581
    %3435 = vmatmul.mubr.bf16.gmra.mrb[0].mxu0 %v1580
    %v3436 = vpop.f32.mrb[0].mxu0
    %v3437 = vadd.f32 %v3148, %v3436
    %v3438 = vpop.f32.mrb[0].mxu0
    %v3439 = vpop.f32.mrb[0].mxu0
    %v3440 = vadd.f32 %v3151, %v3439
    %v3441 = vpop.f32.mrb[0].mxu0
    %3442 = vmatprep.mubr.bf16.mxu0 %v1585
    %3443 = vmatmul.mubr.bf16.gmra.mrb[0].mxu0 %v1584
    %v3444 = vpop.f32.mrb[0].mxu0
    %v3445 = vadd.f32 %v3156, %v3444
    %v3446 = vpop.f32.mrb[0].mxu0
    %v3447 = vpop.f32.mrb[0].mxu0
    %v3448 = vadd.f32 %v3159, %v3447
    %v3449 = vpop.f32.mrb[0].mxu0
    %3450 = vmatprep.mubr.bf16.mxu0 %v1589
    %3451 = vmatmul.mubr.bf16.gmra.mrb[0].mxu0 %v1588
    %v3452 = vpop.f32.mrb[0].mxu0
    %v3453 = vadd.f32 %v3164, %v3452
    %v3454 = vpop.f32.mrb[0].mxu0
    %v3455 = vpop.f32.mrb[0].mxu0
    %v3456 = vadd.f32 %v3167, %v3455
    %v3457 = vpop.f32.mrb[0].mxu0
    %3458 = vmatprep.mubr.bf16.mxu0 %v1593
    %3459 = vmatmul.mubr.bf16.gmra.mrb[0].mxu0 %v1592
    %v3460 = vpop.f32.mrb[0].mxu0
    %v3461 = vadd.f32 %v3172, %v3460
    %v3462 = vpop.f32.mrb[0].mxu0
    %v3463 = vpop.f32.mrb[0].mxu0
    %v3464 = vadd.f32 %v3175, %v3463
    %v3465 = vpop.f32.mrb[0].mxu0
    %3466 = vmatprep.mubr.bf16.mxu0 %v1597
    %3467 = vmatmul.mubr.bf16.gmra.mrb[0].mxu0 %v1596
    %v3468 = vpop.f32.mrb[0].mxu0
    %v3469 = vadd.f32 %v3180, %v3468
    %v3470 = vpop.f32.mrb[0].mxu0
    %v3471 = vpop.f32.mrb[0].mxu0
    %v3472 = vadd.f32 %v3183, %v3471
    %v3473 = vpop.f32.mrb[0].mxu0
    %3474 = vmatprep.mubr.bf16.mxu0 %v1601
    %3475 = vmatmul.mubr.bf16.gmra.mrb[0].mxu0 %v1600
    %v3476 = vpop.f32.mrb[0].mxu0
    %v3477 = vadd.f32 %v3188, %v3476
    %v3478 = vpop.f32.mrb[0].mxu0
    %v3479 = vpop.f32.mrb[0].mxu0
    %v3480 = vadd.f32 %v3191, %v3479
    %v3481 = vpop.f32.mrb[0].mxu0
    %3482 = vmatprep.mubr.bf16.mxu0 %v1605
    %3483 = vmatmul.mubr.bf16.gmra.mrb[0].mxu0 %v1604
    %v3484 = vpop.f32.mrb[0].mxu0
    %v3485 = vadd.f32 %v3196, %v3484
    %v3486 = vpop.f32.mrb[0].mxu0
    %v3487 = vpop.f32.mrb[0].mxu0
    %v3488 = vadd.f32 %v3199, %v3487
    %v3489 = vpop.f32.mrb[0].mxu0
    %3490 = vmatprep.mubr.bf16.mxu0 %v1609
    %3491 = vmatmul.mubr.bf16.gmra.mrb[0].mxu0 %v1608
    %v3492 = vpop.f32.mrb[0].mxu0
    %v3493 = vadd.f32 %v3204, %v3492
    %v3494 = vpop.f32.mrb[0].mxu0
    %v3495 = vpop.f32.mrb[0].mxu0
    %v3496 = vadd.f32 %v3207, %v3495
    %v3497 = vpop.f32.mrb[0].mxu0
    %3498 = vmatprep.mubr.bf16.mxu0 %v1613
    %3499 = vmatmul.mubr.bf16.gmra.mrb[0].mxu0 %v1612
    %v3500 = vpop.f32.mrb[0].mxu0
    %v3501 = vadd.f32 %v3212, %v3500
    %v3502 = vpop.f32.mrb[0].mxu0
    %v3503 = vpop.f32.mrb[0].mxu0
    %v3504 = vadd.f32 %v3215, %v3503
    %v3505 = vpop.f32.mrb[0].mxu0
    %3506 = vmatprep.mubr.bf16.mxu0 %v1617
    %3507 = vmatmul.mubr.bf16.gmra.mrb[0].mxu0 %v1616
    %v3508 = vpop.f32.mrb[0].mxu0
    %v3509 = vadd.f32 %v3220, %v3508
    %v3510 = vpop.f32.mrb[0].mxu0
    %v3511 = vpop.f32.mrb[0].mxu0
    %v3512 = vadd.f32 %v3223, %v3511
    %v3513 = vpop.f32.mrb[0].mxu0
    %3514 = vmatprep.mubr.bf16.mxu0 %v1621
    %3515 = vmatmul.mubr.bf16.gmra.mrb[0].mxu0 %v1620
    %v3516 = vpop.f32.mrb[0].mxu0
    %v3517 = vadd.f32 %v3228, %v3516
    %v3518 = vpop.f32.mrb[0].mxu0
    %v3519 = vpop.f32.mrb[0].mxu0
    %v3520 = vadd.f32 %v3231, %v3519
    %v3521 = vpop.f32.mrb[0].mxu0
    %3522 = vmatprep.mubr.bf16.mxu0 %v1625
    %3523 = vmatmul.mubr.bf16.gmra.mrb[0].mxu0 %v1624
    %v3524 = vpop.f32.mrb[0].mxu0
    %v3525 = vadd.f32 %v3236, %v3524
    %v3526 = vpop.f32.mrb[0].mxu0
    %v3527 = vpop.f32.mrb[0].mxu0
    %v3528 = vadd.f32 %v3239, %v3527
    %v3529 = vpop.f32.mrb[0].mxu0
    %3530 = vmatprep.mubr.bf16.mxu0 %v1629
    %3531 = vmatmul.mubr.bf16.gmra.mrb[0].mxu0 %v1628
    %v3532 = vpop.f32.mrb[0].mxu0
    %v3533 = vadd.f32 %v3244, %v3532
    %v3534 = vpop.f32.mrb[0].mxu0
    %v3535 = vpop.f32.mrb[0].mxu0
    %v3536 = vadd.f32 %v3247, %v3535
    %v3537 = vpop.f32.mrb[0].mxu0
    %3538 = vmatprep.mubr.bf16.mxu0 %v1633
    %3539 = vmatmul.mubr.bf16.gmra.mrb[0].mxu0 %v1632
    %v3540 = vpop.f32.mrb[0].mxu0
    %v3541 = vadd.f32 %v3252, %v3540
    %v3542 = vpop.f32.mrb[0].mxu0
    %v3543 = vpop.f32.mrb[0].mxu0
    %v3544 = vadd.f32 %v3255, %v3543
    %v3545 = vpop.f32.mrb[0].mxu0
    %3546 = vmatprep.mubr.bf16.mxu0 %v1637
    %3547 = vmatmul.mubr.bf16.gmra.mrb[0].mxu0 %v1636
    %v3548 = vpop.f32.mrb[0].mxu0
    %v3549 = vadd.f32 %v3260, %v3548
    %v3550 = vpop.f32.mrb[0].mxu0
    %v3551 = vpop.f32.mrb[0].mxu0
    %v3552 = vadd.f32 %v3263, %v3551
    %v3553 = vpop.f32.mrb[0].mxu0
    %3554 = vmatprep.mubr.bf16.mxu0 %v1641
    %3555 = vmatmul.mubr.bf16.gmra.mrb[0].mxu0 %v1640
    %v3556 = vpop.f32.mrb[0].mxu0
    %v3557 = vadd.f32 %v3268, %v3556
    %v3558 = vpop.f32.mrb[0].mxu0
    %v3559 = vpop.f32.mrb[0].mxu0
    %v3560 = vadd.f32 %v3271, %v3559
    %v3561 = vpop.f32.mrb[0].mxu0
    %3562 = vmatprep.mubr.bf16.mxu0 %v1645
    %3563 = vmatmul.mubr.bf16.gmra.mrb[0].mxu0 %v1644
    %v3564 = vpop.f32.mrb[0].mxu0
    %v3565 = vadd.f32 %v3276, %v3564
    %v3566 = vpop.f32.mrb[0].mxu0
    %v3567 = vpop.f32.mrb[0].mxu0
    %v3568 = vadd.f32 %v3279, %v3567
    %v3569 = vpop.f32.mrb[0].mxu0
    %3570 = vmatprep.mubr.bf16.mxu0 %v1649
    %3571 = vmatmul.mubr.bf16.gmra.mrb[0].mxu0 %v1648
    %v3572 = vpop.f32.mrb[0].mxu0
    %v3573 = vadd.f32 %v3284, %v3572
    %v3574 = vpop.f32.mrb[0].mxu0
    %v3575 = vpop.f32.mrb[0].mxu0
    %v3576 = vadd.f32 %v3287, %v3575
    %v3577 = vpop.f32.mrb[0].mxu0
    %3578 = vmatprep.mubr.bf16.mxu0 %v1653
    %3579 = vmatmul.mubr.bf16.gmra.mrb[0].mxu0 %v1652
    %v3580 = vpop.f32.mrb[0].mxu0
    %v3581 = vadd.f32 %v3292, %v3580
    %v3582 = vpop.f32.mrb[0].mxu0
    %v3583 = vpop.f32.mrb[0].mxu0
    %v3584 = vadd.f32 %v3295, %v3583
    %v3585 = vpop.f32.mrb[0].mxu0
    %3586 = vmatprep.mubr.bf16.mxu0 %v1657
    %3587 = vmatmul.mubr.bf16.gmra.mrb[0].mxu0 %v1656
    %v3588 = vpop.f32.mrb[0].mxu0
    %v3589 = vadd.f32 %v3300, %v3588
    %v3590 = vpop.f32.mrb[0].mxu0
    %v3591 = vpop.f32.mrb[0].mxu0
    %v3592 = vadd.f32 %v3303, %v3591
    %v3593 = vpop.f32.mrb[0].mxu0
    %3594 = vmatprep.mubr.bf16.mxu0 %v1661
    %3595 = vmatmul.mubr.bf16.gmra.mrb[0].mxu0 %v1660
    %v3596 = vpop.f32.mrb[0].mxu0
    %v3597 = vadd.f32 %v3308, %v3596
    %v3598 = vpop.f32.mrb[0].mxu0
    %v3599 = vpop.f32.mrb[0].mxu0
    %v3600 = vadd.f32 %v3311, %v3599
    %v3601 = vpop.f32.mrb[0].mxu0
    %3602 = vdwg.mxu0
    %v3603 = vmax.f32 %v2707, 0.0
    %v3604 = vmax.f32 %v2709, 0.0
    %v3605 = vmax.f32 %v3349, 0.0
    %v3606 = vmax.f32 %v2711, 0.0
    %v3607 = vmax.f32 %v2713, 0.0
    %v3608 = vmax.f32 %v3352, 0.0
    %v3609 = vmax.f32 %v2717, 0.0
    %v3610 = vmax.f32 %v2719, 0.0
    %v3611 = vmax.f32 %v3357, 0.0
    %v3612 = vmax.f32 %v2721, 0.0
    %v3613 = vmax.f32 %v2723, 0.0
    %v3614 = vmax.f32 %v3360, 0.0
    %v3615 = vmax.f32 %v2727, 0.0
    %v3616 = vmax.f32 %v2729, 0.0
    %v3617 = vmax.f32 %v3365, 0.0
    %v3618 = vmax.f32 %v2731, 0.0
    %v3619 = vmax.f32 %v2733, 0.0
    %v3620 = vmax.f32 %v3368, 0.0
    %v3621 = vmax.f32 %v2737, 0.0
    %v3622 = vmax.f32 %v2739, 0.0
    %v3623 = vmax.f32 %v3373, 0.0
    %v3624 = vmax.f32 %v2741, 0.0
    %v3625 = vmax.f32 %v2743, 0.0
    %v3626 = vmax.f32 %v3376, 0.0
    %v3627 = vmax.f32 %v2747, 0.0
    %v3628 = vmax.f32 %v2749, 0.0
    %v3629 = vmax.f32 %v3381, 0.0
    %v3630 = vmax.f32 %v2751, 0.0
    %v3631 = vmax.f32 %v2753, 0.0
    %v3632 = vmax.f32 %v3384, 0.0
    %v3633 = vmax.f32 %v2757, 0.0
    %v3634 = vmax.f32 %v2759, 0.0
    %v3635 = vmax.f32 %v3389, 0.0
    %v3636 = vmax.f32 %v2761, 0.0
    %v3637 = vmax.f32 %v2763, 0.0
    %v3638 = vmax.f32 %v3392, 0.0
    %v3639 = vmax.f32 %v2767, 0.0
    %v3640 = vmax.f32 %v2769, 0.0
    %v3641 = vmax.f32 %v3397, 0.0
    %v3642 = vmax.f32 %v2771, 0.0
    %v3643 = vmax.f32 %v2773, 0.0
    %v3644 = vmax.f32 %v3400, 0.0
    %v3645 = vmax.f32 %v2777, 0.0
    %v3646 = vmax.f32 %v2779, 0.0
    %v3647 = vmax.f32 %v3405, 0.0
    %v3648 = vmax.f32 %v2781, 0.0
    %v3649 = vmax.f32 %v2783, 0.0
    %v3650 = vmax.f32 %v3408, 0.0
    %v3651 = vmax.f32 %v2787, 0.0
    %v3652 = vmax.f32 %v2789, 0.0
    %v3653 = vmax.f32 %v3413, 0.0
    %v3654 = vmax.f32 %v2791, 0.0
    %v3655 = vmax.f32 %v2793, 0.0
    %v3656 = vmax.f32 %v3416, 0.0
    %v3657 = vmax.f32 %v2797, 0.0
    %v3658 = vmax.f32 %v2799, 0.0
    %v3659 = vmax.f32 %v3421, 0.0
    %v3660 = vmax.f32 %v2801, 0.0
    %v3661 = vmax.f32 %v2803, 0.0
    %v3662 = vmax.f32 %v3424, 0.0
    %v3663 = vmax.f32 %v2807, 0.0
    %v3664 = vmax.f32 %v2809, 0.0
    %v3665 = vmax.f32 %v3429, 0.0
    %v3666 = vmax.f32 %v2811, 0.0
    %v3667 = vmax.f32 %v2813, 0.0
    %v3668 = vmax.f32 %v3432, 0.0
    %v3669 = vmax.f32 %v2817, 0.0
    %v3670 = vmax.f32 %v2819, 0.0
    %v3671 = vmax.f32 %v3437, 0.0
    %v3672 = vmax.f32 %v2821, 0.0
    %v3673 = vmax.f32 %v2823, 0.0
    %v3674 = vmax.f32 %v3440, 0.0
    %v3675 = vmax.f32 %v2827, 0.0
    %v3676 = vmax.f32 %v2829, 0.0
    %v3677 = vmax.f32 %v3445, 0.0
    %v3678 = vmax.f32 %v2831, 0.0
    %v3679 = vmax.f32 %v2833, 0.0
    %v3680 = vmax.f32 %v3448, 0.0
    %v3681 = vmax.f32 %v2837, 0.0
    %v3682 = vmax.f32 %v2839, 0.0
    %v3683 = vmax.f32 %v3453, 0.0
    %v3684 = vmax.f32 %v2841, 0.0
    %v3685 = vmax.f32 %v2843, 0.0
    %v3686 = vmax.f32 %v3456, 0.0
    %v3687 = vmax.f32 %v2847, 0.0
    %v3688 = vmax.f32 %v2849, 0.0
    %v3689 = vmax.f32 %v3461, 0.0
    %v3690 = vmax.f32 %v2851, 0.0
    %v3691 = vmax.f32 %v2853, 0.0
    %v3692 = vmax.f32 %v3464, 0.0
    %v3693 = vmax.f32 %v2857, 0.0
    %v3694 = vmax.f32 %v2859, 0.0
    %v3695 = vmax.f32 %v3469, 0.0
    %v3696 = vmax.f32 %v2861, 0.0
    %v3697 = vmax.f32 %v2863, 0.0
    %v3698 = vmax.f32 %v3472, 0.0
    %v3699 = vmax.f32 %v2867, 0.0
    %v3700 = vmax.f32 %v2869, 0.0
    %v3701 = vmax.f32 %v3477, 0.0
    %v3702 = vmax.f32 %v2871, 0.0
    %v3703 = vmax.f32 %v2873, 0.0
    %v3704 = vmax.f32 %v3480, 0.0
    %v3705 = vmax.f32 %v2877, 0.0
    %v3706 = vmax.f32 %v2879, 0.0
    %v3707 = vmax.f32 %v3485, 0.0
    %v3708 = vmax.f32 %v2881, 0.0
    %v3709 = vmax.f32 %v2883, 0.0
    %v3710 = vmax.f32 %v3488, 0.0
    %v3711 = vmax.f32 %v2887, 0.0
    %v3712 = vmax.f32 %v2889, 0.0
    %v3713 = vmax.f32 %v3493, 0.0
    %v3714 = vmax.f32 %v2891, 0.0
    %v3715 = vmax.f32 %v2893, 0.0
    %v3716 = vmax.f32 %v3496, 0.0
    %v3717 = vmax.f32 %v2897, 0.0
    %v3718 = vmax.f32 %v2899, 0.0
    %v3719 = vmax.f32 %v3501, 0.0
    %v3720 = vmax.f32 %v2901, 0.0
    %v3721 = vmax.f32 %v2903, 0.0
    %v3722 = vmax.f32 %v3504, 0.0
    %v3723 = vmax.f32 %v2907, 0.0
    %v3724 = vmax.f32 %v2909, 0.0
    %v3725 = vmax.f32 %v3509, 0.0
    %v3726 = vmax.f32 %v2911, 0.0
    %v3727 = vmax.f32 %v2913, 0.0
    %v3728 = vmax.f32 %v3512, 0.0
    %v3729 = vmax.f32 %v2917, 0.0
    %v3730 = vmax.f32 %v2919, 0.0
    %v3731 = vmax.f32 %v3517, 0.0
    %v3732 = vmax.f32 %v2921, 0.0
    %v3733 = vmax.f32 %v2923, 0.0
    %v3734 = vmax.f32 %v3520, 0.0
    %v3735 = vmax.f32 %v2927, 0.0
    %v3736 = vmax.f32 %v2929, 0.0
    %v3737 = vmax.f32 %v3525, 0.0
    %v3738 = vmax.f32 %v2931, 0.0
    %v3739 = vmax.f32 %v2933, 0.0
    %v3740 = vmax.f32 %v3528, 0.0
    %v3741 = vmax.f32 %v2937, 0.0
    %v3742 = vmax.f32 %v2939, 0.0
    %v3743 = vmax.f32 %v3533, 0.0
    %v3744 = vmax.f32 %v2941, 0.0
    %v3745 = vmax.f32 %v2943, 0.0
    %v3746 = vmax.f32 %v3536, 0.0
    %v3747 = vmax.f32 %v2947, 0.0
    %v3748 = vmax.f32 %v2949, 0.0
    %v3749 = vmax.f32 %v3541, 0.0
    %v3750 = vmax.f32 %v2951, 0.0
    %v3751 = vmax.f32 %v2953, 0.0
    %v3752 = vmax.f32 %v3544, 0.0
    %v3753 = vmax.f32 %v2957, 0.0
    %v3754 = vmax.f32 %v2959, 0.0
    %v3755 = vmax.f32 %v3549, 0.0
    %v3756 = vmax.f32 %v2961, 0.0
    %v3757 = vmax.f32 %v2963, 0.0
    %v3758 = vmax.f32 %v3552, 0.0
    %v3759 = vmax.f32 %v2967, 0.0
    %v3760 = vmax.f32 %v2969, 0.0
    %v3761 = vmax.f32 %v3557, 0.0
    %v3762 = vmax.f32 %v2971, 0.0
    %v3763 = vmax.f32 %v2973, 0.0
    %v3764 = vmax.f32 %v3560, 0.0
    %v3765 = vmax.f32 %v2977, 0.0
    %v3766 = vmax.f32 %v2979, 0.0
    %v3767 = vmax.f32 %v3565, 0.0
    %v3768 = vmax.f32 %v2981, 0.0
    %v3769 = vmax.f32 %v2983, 0.0
    %v3770 = vmax.f32 %v3568, 0.0
    %v3771 = vmax.f32 %v2987, 0.0
    %v3772 = vmax.f32 %v2989, 0.0
    %v3773 = vmax.f32 %v3573, 0.0
    %v3774 = vmax.f32 %v2991, 0.0
    %v3775 = vmax.f32 %v2993, 0.0
    %v3776 = vmax.f32 %v3576, 0.0
    %v3777 = vmax.f32 %v2997, 0.0
    %v3778 = vmax.f32 %v2999, 0.0
    %v3779 = vmax.f32 %v3581, 0.0
    %v3780 = vmax.f32 %v3001, 0.0
    %v3781 = vmax.f32 %v3003, 0.0
    %v3782 = vmax.f32 %v3584, 0.0
    %v3783 = vmax.f32 %v3007, 0.0
    %v3784 = vmax.f32 %v3009, 0.0
    %v3785 = vmax.f32 %v3589, 0.0
    %v3786 = vmax.f32 %v3011, 0.0
    %v3787 = vmax.f32 %v3013, 0.0
    %v3788 = vmax.f32 %v3592, 0.0
    %v3789 = vmax.f32 %v3017, 0.0
    %v3790 = vmax.f32 %v3019, 0.0
    %v3791 = vmax.f32 %v3597, 0.0
    %v3792 = vmax.f32 %v3021, 0.0
    %v3793 = vmax.f32 %v3023, 0.0
    %v3794 = vmax.f32 %v3600, 0.0
    %v3795 = vpack.c.bf16 %v3606, %v3603
    %v3796 = vpack.c.bf16 %v3607, %v3604
    %v3797 = vpack.c.bf16 %v3608, %v3605
    %v3798 = vpack.c.bf16 %v3612, %v3609
    %v3799 = vpack.c.bf16 %v3613, %v3610
    %v3800 = vpack.c.bf16 %v3614, %v3611
    %v3801 = vpack.c.bf16 %v3618, %v3615
    %v3802 = vpack.c.bf16 %v3619, %v3616
    %v3803 = vpack.c.bf16 %v3620, %v3617
    %v3804 = vpack.c.bf16 %v3624, %v3621
    %v3805 = vpack.c.bf16 %v3625, %v3622
    %v3806 = vpack.c.bf16 %v3626, %v3623
    %v3807 = vpack.c.bf16 %v3630, %v3627
    %v3808 = vpack.c.bf16 %v3631, %v3628
    %v3809 = vpack.c.bf16 %v3632, %v3629
    %v3810 = vpack.c.bf16 %v3636, %v3633
    %v3811 = vpack.c.bf16 %v3637, %v3634
    %v3812 = vpack.c.bf16 %v3638, %v3635
    %v3813 = vpack.c.bf16 %v3642, %v3639
    %v3814 = vpack.c.bf16 %v3643, %v3640
    %v3815 = vpack.c.bf16 %v3644, %v3641
    %v3816 = vpack.c.bf16 %v3648, %v3645
    %v3817 = vpack.c.bf16 %v3649, %v3646
    %v3818 = vpack.c.bf16 %v3650, %v3647
    %v3819 = vpack.c.bf16 %v3654, %v3651
    %v3820 = vpack.c.bf16 %v3655, %v3652
    %v3821 = vpack.c.bf16 %v3656, %v3653
    %v3822 = vpack.c.bf16 %v3660, %v3657
    %v3823 = vpack.c.bf16 %v3661, %v3658
    %v3824 = vpack.c.bf16 %v3662, %v3659
    %v3825 = vpack.c.bf16 %v3666, %v3663
    %v3826 = vpack.c.bf16 %v3667, %v3664
    %v3827 = vpack.c.bf16 %v3668, %v3665
    %v3828 = vpack.c.bf16 %v3672, %v3669
    %v3829 = vpack.c.bf16 %v3673, %v3670
    %v3830 = vpack.c.bf16 %v3674, %v3671
    %v3831 = vpack.c.bf16 %v3678, %v3675
    %v3832 = vpack.c.bf16 %v3679, %v3676
    %v3833 = vpack.c.bf16 %v3680, %v3677
    %v3834 = vpack.c.bf16 %v3684, %v3681
    %v3835 = vpack.c.bf16 %v3685, %v3682
    %v3836 = vpack.c.bf16 %v3686, %v3683
    %v3837 = vpack.c.bf16 %v3690, %v3687
    %v3838 = vpack.c.bf16 %v3691, %v3688
    %v3839 = vpack.c.bf16 %v3692, %v3689
    %v3840 = vpack.c.bf16 %v3696, %v3693
    %v3841 = vpack.c.bf16 %v3697, %v3694
    %v3842 = vpack.c.bf16 %v3698, %v3695
    %v3843 = vpack.c.bf16 %v3702, %v3699
    %v3844 = vpack.c.bf16 %v3703, %v3700
    %v3845 = vpack.c.bf16 %v3704, %v3701
    %v3846 = vpack.c.bf16 %v3708, %v3705
    %v3847 = vpack.c.bf16 %v3709, %v3706
    %v3848 = vpack.c.bf16 %v3710, %v3707
    %v3849 = vpack.c.bf16 %v3714, %v3711
    %v3850 = vpack.c.bf16 %v3715, %v3712
    %v3851 = vpack.c.bf16 %v3716, %v3713
    %v3852 = vpack.c.bf16 %v3720, %v3717
    %v3853 = vpack.c.bf16 %v3721, %v3718
    %v3854 = vpack.c.bf16 %v3722, %v3719
    %v3855 = vpack.c.bf16 %v3726, %v3723
    %v3856 = vpack.c.bf16 %v3727, %v3724
    %v3857 = vpack.c.bf16 %v3728, %v3725
    %v3858 = vpack.c.bf16 %v3732, %v3729
    %v3859 = vpack.c.bf16 %v3733, %v3730
    %v3860 = vpack.c.bf16 %v3734, %v3731
    %v3861 = vpack.c.bf16 %v3738, %v3735
    %v3862 = vpack.c.bf16 %v3739, %v3736
    %v3863 = vpack.c.bf16 %v3740, %v3737
    %v3864 = vpack.c.bf16 %v3744, %v3741
    %v3865 = vpack.c.bf16 %v3745, %v3742
    %v3866 = vpack.c.bf16 %v3746, %v3743
    %v3867 = vpack.c.bf16 %v3750, %v3747
    %v3868 = vpack.c.bf16 %v3751, %v3748
    %v3869 = vpack.c.bf16 %v3752, %v3749
    %v3870 = vpack.c.bf16 %v3756, %v3753
    %v3871 = vpack.c.bf16 %v3757, %v3754
    %v3872 = vpack.c.bf16 %v3758, %v3755
    %v3873 = vpack.c.bf16 %v3762, %v3759
    %v3874 = vpack.c.bf16 %v3763, %v3760
    %v3875 = vpack.c.bf16 %v3764, %v3761
    %v3876 = vpack.c.bf16 %v3768, %v3765
    %v3877 = vpack.c.bf16 %v3769, %v3766
    %v3878 = vpack.c.bf16 %v3770, %v3767
    %v3879 = vpack.c.bf16 %v3774, %v3771
    %v3880 = vpack.c.bf16 %v3775, %v3772
    %v3881 = vpack.c.bf16 %v3776, %v3773
    %v3882 = vpack.c.bf16 %v3780, %v3777
    %v3883 = vpack.c.bf16 %v3781, %v3778
    %v3884 = vpack.c.bf16 %v3782, %v3779
    %v3885 = vpack.c.bf16 %v3786, %v3783
    %v3886 = vpack.c.bf16 %v3787, %v3784
    %v3887 = vpack.c.bf16 %v3788, %v3785
    %v3888 = vpack.c.bf16 %v3792, %v3789
    %v3889 = vpack.c.bf16 %v3793, %v3790
    %v3890 = vpack.c.bf16 %v3794, %v3791
    %v3891 = vld [vmem:[#allocation8] sm:$0xf]
    %v3892 = vld [vmem:[#allocation8 + $0x4] sm:$0xf]
    %v3893 = vld [vmem:[#allocation8 + $0x8] sm:$0xf]
    %v3894 = vld [vmem:[#allocation8 + $0xc] sm:$0xf]
    %v3895 = vld [vmem:[#allocation8 + $0x10] sm:$0xf]
    %v3896 = vld [vmem:[#allocation8 + $0x14] sm:$0xf]
    %v3897 = vld [vmem:[#allocation8 + $0x18] sm:$0xf]
    %v3898 = vld [vmem:[#allocation8 + $0x1c] sm:$0xf]
    %v3899 = vld [vmem:[#allocation8 + $0x20] sm:$0xf]
    %v3900 = vld [vmem:[#allocation8 + $0x24] sm:$0xf]
    %v3901 = vld [vmem:[#allocation8 + $0x28] sm:$0xf]
    %v3902 = vld [vmem:[#allocation8 + $0x2c] sm:$0xf]
    %v3903 = vld [vmem:[#allocation8 + $0x30] sm:$0xf]
    %v3904 = vld [vmem:[#allocation8 + $0x34] sm:$0xf]
    %v3905 = vld [vmem:[#allocation8 + $0x38] sm:$0xf]
    %v3906 = vld [vmem:[#allocation8 + $0x3c] sm:$0xf]
    %v3907 = vld [vmem:[#allocation8 + $0x40] sm:$0xf]
    %v3908 = vld [vmem:[#allocation8 + $0x44] sm:$0xf]
    %v3909 = vld [vmem:[#allocation8 + $0x48] sm:$0xf]
    %v3910 = vld [vmem:[#allocation8 + $0x4c] sm:$0xf]
    %v3911 = vld [vmem:[#allocation8 + $0x50] sm:$0xf]
    %v3912 = vld [vmem:[#allocation8 + $0x54] sm:$0xf]
    %v3913 = vld [vmem:[#allocation8 + $0x58] sm:$0xf]
    %v3914 = vld [vmem:[#allocation8 + $0x5c] sm:$0xf]
    %v3915 = vld [vmem:[#allocation8 + $0x60] sm:$0xf]
    %v3916 = vld [vmem:[#allocation8 + $0x64] sm:$0xf]
    %v3917 = vld [vmem:[#allocation8 + $0x68] sm:$0xf]
    %v3918 = vld [vmem:[#allocation8 + $0x6c] sm:$0xf]
    %v3919 = vld [vmem:[#allocation8 + $0x70] sm:$0xf]
    %v3920 = vld [vmem:[#allocation8 + $0x74] sm:$0xf]
    %v3921 = vld [vmem:[#allocation8 + $0x78] sm:$0xf]
    %v3922 = vld [vmem:[#allocation8 + $0x7c] sm:$0xf]
    %v3923 = vld [vmem:[#allocation8 + $0x80] sm:$0xf]
    %v3924 = vld [vmem:[#allocation8 + $0x84] sm:$0xf]
    %v3925 = vld [vmem:[#allocation8 + $0x88] sm:$0xf]
    %v3926 = vld [vmem:[#allocation8 + $0x8c] sm:$0xf]
    %v3927 = vld [vmem:[#allocation8 + $0x90] sm:$0xf]
    %v3928 = vld [vmem:[#allocation8 + $0x94] sm:$0xf]
    %v3929 = vld [vmem:[#allocation8 + $0x98] sm:$0xf]
    %v3930 = vld [vmem:[#allocation8 + $0x9c] sm:$0xf]
    %v3931 = vld [vmem:[#allocation8 + $0xa0] sm:$0xf]
    %v3932 = vld [vmem:[#allocation8 + $0xa4] sm:$0xf]
    %v3933 = vld [vmem:[#allocation8 + $0xa8] sm:$0xf]
    %v3934 = vld [vmem:[#allocation8 + $0xac] sm:$0xf]
    %v3935 = vld [vmem:[#allocation8 + $0xb0] sm:$0xf]
    %v3936 = vld [vmem:[#allocation8 + $0xb4] sm:$0xf]
    %v3937 = vld [vmem:[#allocation8 + $0xb8] sm:$0xf]
    %v3938 = vld [vmem:[#allocation8 + $0xbc] sm:$0xf]
    %v3939 = vld [vmem:[%s6] sm:$0x1]
    %v3941 = vlaneseq
    %v3942 = vshrl.u32 %v3941, 7
    %v3943 = vsub.s32 0, %v3942
    %v3944 = vrot.slane %v3939, %v3943
    %v3994 = vunpack.c.l.b16 %v3891
    %v3995 = vunpack.c.l.b16 %v3892
    %v3996 = vunpack.c.l.b16 %v3893
    %v3997 = vunpack.c.l.b16 %v3894
    %v3998 = vunpack.c.l.b16 %v3895
    %v3999 = vunpack.c.l.b16 %v3896
    %v4000 = vunpack.c.l.b16 %v3897
    %v4001 = vunpack.c.l.b16 %v3898
    %v4002 = vunpack.c.l.b16 %v3899
    %v4003 = vunpack.c.l.b16 %v3900
    %v4004 = vunpack.c.l.b16 %v3901
    %v4005 = vunpack.c.l.b16 %v3902
    %v4006 = vunpack.c.l.b16 %v3903
    %v4007 = vunpack.c.l.b16 %v3904
    %v4008 = vunpack.c.l.b16 %v3905
    %v4009 = vunpack.c.l.b16 %v3906
    %v4010 = vunpack.c.l.b16 %v3907
    %v4011 = vunpack.c.l.b16 %v3908
    %v4012 = vunpack.c.l.b16 %v3909
    %v4013 = vunpack.c.l.b16 %v3910
    %v4014 = vunpack.c.l.b16 %v3911
    %v4015 = vunpack.c.l.b16 %v3912
    %v4016 = vunpack.c.l.b16 %v3913
    %v4017 = vunpack.c.l.b16 %v3914
    %v4018 = vunpack.c.l.b16 %v3915
    %v4019 = vunpack.c.l.b16 %v3916
    %v4020 = vunpack.c.l.b16 %v3917
    %v4021 = vunpack.c.l.b16 %v3918
    %v4022 = vunpack.c.l.b16 %v3919
    %v4023 = vunpack.c.l.b16 %v3920
    %v4024 = vunpack.c.l.b16 %v3921
    %v4025 = vunpack.c.l.b16 %v3922
    %v4026 = vunpack.c.l.b16 %v3923
    %v4027 = vunpack.c.l.b16 %v3924
    %v4028 = vunpack.c.l.b16 %v3925
    %v4029 = vunpack.c.l.b16 %v3926
    %v4030 = vunpack.c.l.b16 %v3927
    %v4031 = vunpack.c.l.b16 %v3928
    %v4032 = vunpack.c.l.b16 %v3929
    %v4033 = vunpack.c.l.b16 %v3930
    %v4034 = vunpack.c.l.b16 %v3931
    %v4035 = vunpack.c.l.b16 %v3932
    %v4036 = vunpack.c.l.b16 %v3933
    %v4037 = vunpack.c.l.b16 %v3934
    %v4038 = vunpack.c.l.b16 %v3935
    %v4039 = vunpack.c.l.b16 %v3936
    %v4040 = vunpack.c.l.b16 %v3937
    %v4041 = vunpack.c.l.b16 %v3938
    %v4042 = vpack.c.b16 %v3995, %v3994
    %v4043 = vpack.c.b16 %v3997, %v3996
    %v4044 = vpack.c.b16 %v3999, %v3998
    %v4045 = vpack.c.b16 %v4001, %v4000
    %v4046 = vpack.c.b16 %v4003, %v4002
    %v4047 = vpack.c.b16 %v4005, %v4004
    %v4048 = vpack.c.b16 %v4007, %v4006
    %v4049 = vpack.c.b16 %v4009, %v4008
    %v4050 = vpack.c.b16 %v4011, %v4010
    %v4051 = vpack.c.b16 %v4013, %v4012
    %v4052 = vpack.c.b16 %v4015, %v4014
    %v4053 = vpack.c.b16 %v4017, %v4016
    %v4054 = vpack.c.b16 %v4019, %v4018
    %v4055 = vpack.c.b16 %v4021, %v4020
    %v4056 = vpack.c.b16 %v4023, %v4022
    %v4057 = vpack.c.b16 %v4025, %v4024
    %v4058 = vpack.c.b16 %v4027, %v4026
    %v4059 = vpack.c.b16 %v4029, %v4028
    %v4060 = vpack.c.b16 %v4031, %v4030
    %v4061 = vpack.c.b16 %v4033, %v4032
    %v4062 = vpack.c.b16 %v4035, %v4034
    %v4063 = vpack.c.b16 %v4037, %v4036
    %v4064 = vpack.c.b16 %v4039, %v4038
    %v4065 = vpack.c.b16 %v4041, %v4040
    %4090 = vmatprep.subr.bf16.mxu0 0
    %4091 = vmatpush1.bf16.msra.mxu0 %v4042
    %4092 = vmatprep.subr.bf16.mxu0 0
    %4093 = vmatpush1.bf16.msra.mxu0 %v4043
    %4094 = vmatprep.subr.bf16.mxu0 0
    %4095 = vmatpush1.bf16.msra.mxu0 %v4044
    %4096 = vmatprep.subr.bf16.mxu0 0
    %4097 = vmatpush1.bf16.msra.mxu0 %v4045
    %4098 = vmatprep.subr.bf16.mxu0 0
    %4099 = vmatpush1.bf16.msra.mxu0 %v4046
    %4100 = vmatprep.subr.bf16.mxu0 0
    %4101 = vmatpush1.bf16.msra.mxu0 %v4047
    %4102 = vmatprep.subr.bf16.mxu0 0
    %4103 = vmatpush1.bf16.msra.mxu0 %v4048
    %4104 = vmatprep.subr.bf16.mxu0 0
    %4105 = vmatpush1.bf16.msra.mxu0 %v4049
    %4106 = vmatprep.subr.bf16.mxu0 0
    %4107 = vmatpush1.bf16.msra.mxu0 %v4050
    %4108 = vmatprep.subr.bf16.mxu0 0
    %4109 = vmatpush1.bf16.msra.mxu0 %v4051
    %4110 = vmatprep.subr.bf16.mxu0 0
    %4111 = vmatpush1.bf16.msra.mxu0 %v4052
    %4112 = vmatprep.subr.bf16.mxu0 0
    %4113 = vmatpush1.bf16.msra.mxu0 %v4053
    %4114 = vmatprep.subr.bf16.mxu0 0
    %4115 = vmatpush1.bf16.msra.mxu0 %v4054
    %4116 = vmatprep.subr.bf16.mxu0 0
    %4117 = vmatpush1.bf16.msra.mxu0 %v4055
    %4118 = vmatprep.subr.bf16.mxu0 0
    %4119 = vmatpush1.bf16.msra.mxu0 %v4056
    %4120 = vmatprep.subr.bf16.mxu0 0
    %4121 = vmatpush1.bf16.msra.mxu0 %v4057
    %4122 = vmatprep.mubr.bf16.mxu0 %v3796
    %4123 = vmatmul.mubr.bf16.gmra.mrb[0].mxu0 %v3795
    %v4124 = vpop.f32.mrb[0].mxu0
    %v4125 = vadd.f32 %v3944, %v4124
    %v4126 = vpop.f32.mrb[0].mxu0
    %v4127 = vpop.f32.mrb[0].mxu0
    %v4128 = vadd.f32 %v3944, %v4127
    %v4129 = vpop.f32.mrb[0].mxu0
    %4130 = vmatprep.mubr.bf16.mxu0 %v3799
    %4131 = vmatmul.mubr.bf16.gmra.mrb[0].mxu0 %v3798
    %v4132 = vpop.f32.mrb[0].mxu0
    %v4133 = vadd.f32 %v3944, %v4132
    %v4134 = vpop.f32.mrb[0].mxu0
    %v4135 = vpop.f32.mrb[0].mxu0
    %v4136 = vadd.f32 %v3944, %v4135
    %v4137 = vpop.f32.mrb[0].mxu0
    %4138 = vmatprep.mubr.bf16.mxu0 %v3802
    %4139 = vmatmul.mubr.bf16.gmra.mrb[0].mxu0 %v3801
    %v4140 = vpop.f32.mrb[0].mxu0
    %v4141 = vadd.f32 %v3944, %v4140
    %v4142 = vpop.f32.mrb[0].mxu0
    %v4143 = vpop.f32.mrb[0].mxu0
    %v4144 = vadd.f32 %v3944, %v4143
    %v4145 = vpop.f32.mrb[0].mxu0
    %4146 = vmatprep.mubr.bf16.mxu0 %v3805
    %4147 = vmatmul.mubr.bf16.gmra.mrb[0].mxu0 %v3804
    %v4148 = vpop.f32.mrb[0].mxu0
    %v4149 = vadd.f32 %v3944, %v4148
    %v4150 = vpop.f32.mrb[0].mxu0
    %v4151 = vpop.f32.mrb[0].mxu0
    %v4152 = vadd.f32 %v3944, %v4151
    %v4153 = vpop.f32.mrb[0].mxu0
    %4154 = vmatprep.mubr.bf16.mxu0 %v3808
    %4155 = vmatmul.mubr.bf16.gmra.mrb[0].mxu0 %v3807
    %v4156 = vpop.f32.mrb[0].mxu0
    %v4157 = vadd.f32 %v3944, %v4156
    %v4158 = vpop.f32.mrb[0].mxu0
    %v4159 = vpop.f32.mrb[0].mxu0
    %v4160 = vadd.f32 %v3944, %v4159
    %v4161 = vpop.f32.mrb[0].mxu0
    %4162 = vmatprep.mubr.bf16.mxu0 %v3811
    %4163 = vmatmul.mubr.bf16.gmra.mrb[0].mxu0 %v3810
    %v4164 = vpop.f32.mrb[0].mxu0
    %v4165 = vadd.f32 %v3944, %v4164
    %v4166 = vpop.f32.mrb[0].mxu0
    %v4167 = vpop.f32.mrb[0].mxu0
    %v4168 = vadd.f32 %v3944, %v4167
    %v4169 = vpop.f32.mrb[0].mxu0
    %4170 = vmatprep.mubr.bf16.mxu0 %v3814
    %4171 = vmatmul.mubr.bf16.gmra.mrb[0].mxu0 %v3813
    %v4172 = vpop.f32.mrb[0].mxu0
    %v4173 = vadd.f32 %v3944, %v4172
    %v4174 = vpop.f32.mrb[0].mxu0
    %v4175 = vpop.f32.mrb[0].mxu0
    %v4176 = vadd.f32 %v3944, %v4175
    %v4177 = vpop.f32.mrb[0].mxu0
    %4178 = vmatprep.mubr.bf16.mxu0 %v3817
    %4179 = vmatmul.mubr.bf16.gmra.mrb[0].mxu0 %v3816
    %v4180 = vpop.f32.mrb[0].mxu0
    %v4181 = vadd.f32 %v3944, %v4180
    %v4182 = vpop.f32.mrb[0].mxu0
    %v4183 = vpop.f32.mrb[0].mxu0
    %v4184 = vadd.f32 %v3944, %v4183
    %v4185 = vpop.f32.mrb[0].mxu0
    %4186 = vmatprep.mubr.bf16.mxu0 %v3820
    %4187 = vmatmul.mubr.bf16.gmra.mrb[0].mxu0 %v3819
    %v4188 = vpop.f32.mrb[0].mxu0
    %v4189 = vadd.f32 %v3944, %v4188
    %v4190 = vpop.f32.mrb[0].mxu0
    %v4191 = vpop.f32.mrb[0].mxu0
    %v4192 = vadd.f32 %v3944, %v4191
    %v4193 = vpop.f32.mrb[0].mxu0
    %4194 = vmatprep.mubr.bf16.mxu0 %v3823
    %4195 = vmatmul.mubr.bf16.gmra.mrb[0].mxu0 %v3822
    %v4196 = vpop.f32.mrb[0].mxu0
    %v4197 = vadd.f32 %v3944, %v4196
    %v4198 = vpop.f32.mrb[0].mxu0
    %v4199 = vpop.f32.mrb[0].mxu0
    %v4200 = vadd.f32 %v3944, %v4199
    %v4201 = vpop.f32.mrb[0].mxu0
    %4202 = vmatprep.mubr.bf16.mxu0 %v3826
    %4203 = vmatmul.mubr.bf16.gmra.mrb[0].mxu0 %v3825
    %v4204 = vpop.f32.mrb[0].mxu0
    %v4205 = vadd.f32 %v3944, %v4204
    %v4206 = vpop.f32.mrb[0].mxu0
    %v4207 = vpop.f32.mrb[0].mxu0
    %v4208 = vadd.f32 %v3944, %v4207
    %v4209 = vpop.f32.mrb[0].mxu0
    %4210 = vmatprep.mubr.bf16.mxu0 %v3829
    %4211 = vmatmul.mubr.bf16.gmra.mrb[0].mxu0 %v3828
    %v4212 = vpop.f32.mrb[0].mxu0
    %v4213 = vadd.f32 %v3944, %v4212
    %v4214 = vpop.f32.mrb[0].mxu0
    %v4215 = vpop.f32.mrb[0].mxu0
    %v4216 = vadd.f32 %v3944, %v4215
    %v4217 = vpop.f32.mrb[0].mxu0
    %4218 = vmatprep.mubr.bf16.mxu0 %v3832
    %4219 = vmatmul.mubr.bf16.gmra.mrb[0].mxu0 %v3831
    %v4220 = vpop.f32.mrb[0].mxu0
    %v4221 = vadd.f32 %v3944, %v4220
    %v4222 = vpop.f32.mrb[0].mxu0
    %v4223 = vpop.f32.mrb[0].mxu0
    %v4224 = vadd.f32 %v3944, %v4223
    %v4225 = vpop.f32.mrb[0].mxu0
    %4226 = vmatprep.mubr.bf16.mxu0 %v3835
    %4227 = vmatmul.mubr.bf16.gmra.mrb[0].mxu0 %v3834
    %v4228 = vpop.f32.mrb[0].mxu0
    %v4229 = vadd.f32 %v3944, %v4228
    %v4230 = vpop.f32.mrb[0].mxu0
    %v4231 = vpop.f32.mrb[0].mxu0
    %v4232 = vadd.f32 %v3944, %v4231
    %v4233 = vpop.f32.mrb[0].mxu0
    %4234 = vmatprep.mubr.bf16.mxu0 %v3838
    %4235 = vmatmul.mubr.bf16.gmra.mrb[0].mxu0 %v3837
    %v4236 = vpop.f32.mrb[0].mxu0
    %v4237 = vadd.f32 %v3944, %v4236
    %v4238 = vpop.f32.mrb[0].mxu0
    %v4239 = vpop.f32.mrb[0].mxu0
    %v4240 = vadd.f32 %v3944, %v4239
    %v4241 = vpop.f32.mrb[0].mxu0
    %4242 = vmatprep.mubr.bf16.mxu0 %v3841
    %4243 = vmatmul.mubr.bf16.gmra.mrb[0].mxu0 %v3840
    %v4244 = vpop.f32.mrb[0].mxu0
    %v4245 = vadd.f32 %v3944, %v4244
    %v4246 = vpop.f32.mrb[0].mxu0
    %v4247 = vpop.f32.mrb[0].mxu0
    %v4248 = vadd.f32 %v3944, %v4247
    %v4249 = vpop.f32.mrb[0].mxu0
    %4250 = vmatprep.mubr.bf16.mxu0 %v3844
    %4251 = vmatmul.mubr.bf16.gmra.mrb[0].mxu0 %v3843
    %v4252 = vpop.f32.mrb[0].mxu0
    %v4253 = vadd.f32 %v3944, %v4252
    %v4254 = vpop.f32.mrb[0].mxu0
    %v4255 = vpop.f32.mrb[0].mxu0
    %v4256 = vadd.f32 %v3944, %v4255
    %v4257 = vpop.f32.mrb[0].mxu0
    %4258 = vmatprep.mubr.bf16.mxu0 %v3847
    %4259 = vmatmul.mubr.bf16.gmra.mrb[0].mxu0 %v3846
    %v4260 = vpop.f32.mrb[0].mxu0
    %v4261 = vadd.f32 %v3944, %v4260
    %v4262 = vpop.f32.mrb[0].mxu0
    %v4263 = vpop.f32.mrb[0].mxu0
    %v4264 = vadd.f32 %v3944, %v4263
    %v4265 = vpop.f32.mrb[0].mxu0
    %4266 = vmatprep.mubr.bf16.mxu0 %v3850
    %4267 = vmatmul.mubr.bf16.gmra.mrb[0].mxu0 %v3849
    %v4268 = vpop.f32.mrb[0].mxu0
    %v4269 = vadd.f32 %v3944, %v4268
    %v4270 = vpop.f32.mrb[0].mxu0
    %v4271 = vpop.f32.mrb[0].mxu0
    %v4272 = vadd.f32 %v3944, %v4271
    %v4273 = vpop.f32.mrb[0].mxu0
    %4274 = vmatprep.mubr.bf16.mxu0 %v3853
    %4275 = vmatmul.mubr.bf16.gmra.mrb[0].mxu0 %v3852
    %v4276 = vpop.f32.mrb[0].mxu0
    %v4277 = vadd.f32 %v3944, %v4276
    %v4278 = vpop.f32.mrb[0].mxu0
    %v4279 = vpop.f32.mrb[0].mxu0
    %v4280 = vadd.f32 %v3944, %v4279
    %v4281 = vpop.f32.mrb[0].mxu0
    %4282 = vmatprep.mubr.bf16.mxu0 %v3856
    %4283 = vmatmul.mubr.bf16.gmra.mrb[0].mxu0 %v3855
    %v4284 = vpop.f32.mrb[0].mxu0
    %v4285 = vadd.f32 %v3944, %v4284
    %v4286 = vpop.f32.mrb[0].mxu0
    %v4287 = vpop.f32.mrb[0].mxu0
    %v4288 = vadd.f32 %v3944, %v4287
    %v4289 = vpop.f32.mrb[0].mxu0
    %4290 = vmatprep.mubr.bf16.mxu0 %v3859
    %4291 = vmatmul.mubr.bf16.gmra.mrb[0].mxu0 %v3858
    %v4292 = vpop.f32.mrb[0].mxu0
    %v4293 = vadd.f32 %v3944, %v4292
    %v4294 = vpop.f32.mrb[0].mxu0
    %v4295 = vpop.f32.mrb[0].mxu0
    %v4296 = vadd.f32 %v3944, %v4295
    %v4297 = vpop.f32.mrb[0].mxu0
    %4298 = vmatprep.mubr.bf16.mxu0 %v3862
    %4299 = vmatmul.mubr.bf16.gmra.mrb[0].mxu0 %v3861
    %v4300 = vpop.f32.mrb[0].mxu0
    %v4301 = vadd.f32 %v3944, %v4300
    %v4302 = vpop.f32.mrb[0].mxu0
    %v4303 = vpop.f32.mrb[0].mxu0
    %v4304 = vadd.f32 %v3944, %v4303
    %v4305 = vpop.f32.mrb[0].mxu0
    %4306 = vmatprep.mubr.bf16.mxu0 %v3865
    %4307 = vmatmul.mubr.bf16.gmra.mrb[0].mxu0 %v3864
    %v4308 = vpop.f32.mrb[0].mxu0
    %v4309 = vadd.f32 %v3944, %v4308
    %v4310 = vpop.f32.mrb[0].mxu0
    %v4311 = vpop.f32.mrb[0].mxu0
    %v4312 = vadd.f32 %v3944, %v4311
    %v4313 = vpop.f32.mrb[0].mxu0
    %4314 = vmatprep.mubr.bf16.mxu0 %v3868
    %4315 = vmatmul.mubr.bf16.gmra.mrb[0].mxu0 %v3867
    %v4316 = vpop.f32.mrb[0].mxu0
    %v4317 = vadd.f32 %v3944, %v4316
    %v4318 = vpop.f32.mrb[0].mxu0
    %v4319 = vpop.f32.mrb[0].mxu0
    %v4320 = vadd.f32 %v3944, %v4319
    %v4321 = vpop.f32.mrb[0].mxu0
    %4322 = vmatprep.mubr.bf16.mxu0 %v3871
    %4323 = vmatmul.mubr.bf16.gmra.mrb[0].mxu0 %v3870
    %v4324 = vpop.f32.mrb[0].mxu0
    %v4325 = vadd.f32 %v3944, %v4324
    %v4326 = vpop.f32.mrb[0].mxu0
    %v4327 = vpop.f32.mrb[0].mxu0
    %v4328 = vadd.f32 %v3944, %v4327
    %v4329 = vpop.f32.mrb[0].mxu0
    %4330 = vmatprep.mubr.bf16.mxu0 %v3874
    %4331 = vmatmul.mubr.bf16.gmra.mrb[0].mxu0 %v3873
    %v4332 = vpop.f32.mrb[0].mxu0
    %v4333 = vadd.f32 %v3944, %v4332
    %v4334 = vpop.f32.mrb[0].mxu0
    %v4335 = vpop.f32.mrb[0].mxu0
    %v4336 = vadd.f32 %v3944, %v4335
    %v4337 = vpop.f32.mrb[0].mxu0
    %4338 = vmatprep.mubr.bf16.mxu0 %v3877
    %4339 = vmatmul.mubr.bf16.gmra.mrb[0].mxu0 %v3876
    %v4340 = vpop.f32.mrb[0].mxu0
    %v4341 = vadd.f32 %v3944, %v4340
    %v4342 = vpop.f32.mrb[0].mxu0
    %v4343 = vpop.f32.mrb[0].mxu0
    %v4344 = vadd.f32 %v3944, %v4343
    %v4345 = vpop.f32.mrb[0].mxu0
    %4346 = vmatprep.mubr.bf16.mxu0 %v3880
    %4347 = vmatmul.mubr.bf16.gmra.mrb[0].mxu0 %v3879
    %v4348 = vpop.f32.mrb[0].mxu0
    %v4349 = vadd.f32 %v3944, %v4348
    %v4350 = vpop.f32.mrb[0].mxu0
    %v4351 = vpop.f32.mrb[0].mxu0
    %v4352 = vadd.f32 %v3944, %v4351
    %v4353 = vpop.f32.mrb[0].mxu0
    %4354 = vmatprep.mubr.bf16.mxu0 %v3883
    %4355 = vmatmul.mubr.bf16.gmra.mrb[0].mxu0 %v3882
    %v4356 = vpop.f32.mrb[0].mxu0
    %v4357 = vadd.f32 %v3944, %v4356
    %v4358 = vpop.f32.mrb[0].mxu0
    %v4359 = vpop.f32.mrb[0].mxu0
    %v4360 = vadd.f32 %v3944, %v4359
    %v4361 = vpop.f32.mrb[0].mxu0
    %4362 = vmatprep.mubr.bf16.mxu0 %v3886
    %4363 = vmatmul.mubr.bf16.gmra.mrb[0].mxu0 %v3885
    %v4364 = vpop.f32.mrb[0].mxu0
    %v4365 = vadd.f32 %v3944, %v4364
    %v4366 = vpop.f32.mrb[0].mxu0
    %v4367 = vpop.f32.mrb[0].mxu0
    %v4368 = vadd.f32 %v3944, %v4367
    %v4369 = vpop.f32.mrb[0].mxu0
    %4370 = vmatprep.mubr.bf16.mxu0 %v3889
    %4371 = vmatmul.mubr.bf16.gmra.mrb[0].mxu0 %v3888
    %v4372 = vpop.f32.mrb[0].mxu0
    %v4373 = vadd.f32 %v3944, %v4372
    %v4374 = vpop.f32.mrb[0].mxu0
    %v4375 = vpop.f32.mrb[0].mxu0
    %v4376 = vadd.f32 %v3944, %v4375
    %v4377 = vpop.f32.mrb[0].mxu0
    %4378 = vdwg.mxu0
    %4379 = vmatprep.subr.bf16.mxu0 0
    %4380 = vmatpush1.bf16.msra.mxu0 %v4058
    %4381 = vmatprep.subr.bf16.mxu0 0
    %4382 = vmatpush1.bf16.msra.mxu0 %v4059
    %4383 = vmatprep.subr.bf16.mxu0 0
    %4384 = vmatpush1.bf16.msra.mxu0 %v4060
    %4385 = vmatprep.subr.bf16.mxu0 0
    %4386 = vmatpush1.bf16.msra.mxu0 %v4061
    %4387 = vmatprep.subr.bf16.mxu0 0
    %4388 = vmatpush1.bf16.msra.mxu0 %v4062
    %4389 = vmatprep.subr.bf16.mxu0 0
    %4390 = vmatpush1.bf16.msra.mxu0 %v4063
    %4391 = vmatprep.subr.bf16.mxu0 0
    %4392 = vmatpush1.bf16.msra.mxu0 %v4064
    %4393 = vmatprep.subr.bf16.mxu0 0
    %4394 = vmatpush1.bf16.msra.mxu0 %v4065
    %4395 = vmatprep.subr.bf16.mxu0 0
    %4396 = vmatpush1.bf16.msra.mxu0 0
    %4397 = vmatprep.subr.bf16.mxu0 0
    %4398 = vmatpush1.bf16.msra.mxu0 0
    %4399 = vmatprep.subr.bf16.mxu0 0
    %4400 = vmatpush1.bf16.msra.mxu0 0
    %4401 = vmatprep.subr.bf16.mxu0 0
    %4402 = vmatpush1.bf16.msra.mxu0 0
    %4403 = vmatprep.subr.bf16.mxu0 0
    %4404 = vmatpush1.bf16.msra.mxu0 0
    %4405 = vmatprep.subr.bf16.mxu0 0
    %4406 = vmatpush1.bf16.msra.mxu0 0
    %4407 = vmatprep.subr.bf16.mxu0 0
    %4408 = vmatpush1.bf16.msra.mxu0 0
    %4409 = vmatprep.subr.bf16.mxu0 0
    %4410 = vmatpush1.bf16.msra.mxu0 0
    %4411 = vmatprep.mubr.bf16.mxu0 0
    %4412 = vmatmul.mubr.bf16.gmra.mrb[0].mxu0 %v3797
    %v4413 = vpop.f32.mrb[0].mxu0
    %v4414 = vadd.f32 %v4125, %v4413
    %v4415 = vpop.f32.mrb[0].mxu0
    %v4416 = vpop.f32.mrb[0].mxu0
    %v4417 = vadd.f32 %v4128, %v4416
    %v4418 = vpop.f32.mrb[0].mxu0
    %4419 = vmatprep.mubr.bf16.mxu0 0
    %4420 = vmatmul.mubr.bf16.gmra.mrb[0].mxu0 %v3800
    %v4421 = vpop.f32.mrb[0].mxu0
    %v4422 = vadd.f32 %v4133, %v4421
    %v4423 = vpop.f32.mrb[0].mxu0
    %v4424 = vpop.f32.mrb[0].mxu0
    %v4425 = vadd.f32 %v4136, %v4424
    %v4426 = vpop.f32.mrb[0].mxu0
    %4427 = vmatprep.mubr.bf16.mxu0 0
    %4428 = vmatmul.mubr.bf16.gmra.mrb[0].mxu0 %v3803
    %v4429 = vpop.f32.mrb[0].mxu0
    %v4430 = vadd.f32 %v4141, %v4429
    %v4431 = vpop.f32.mrb[0].mxu0
    %v4432 = vpop.f32.mrb[0].mxu0
    %v4433 = vadd.f32 %v4144, %v4432
    %v4434 = vpop.f32.mrb[0].mxu0
    %4435 = vmatprep.mubr.bf16.mxu0 0
    %4436 = vmatmul.mubr.bf16.gmra.mrb[0].mxu0 %v3806
    %v4437 = vpop.f32.mrb[0].mxu0
    %v4438 = vadd.f32 %v4149, %v4437
    %v4439 = vpop.f32.mrb[0].mxu0
    %v4440 = vpop.f32.mrb[0].mxu0
    %v4441 = vadd.f32 %v4152, %v4440
    %v4442 = vpop.f32.mrb[0].mxu0
    %4443 = vmatprep.mubr.bf16.mxu0 0
    %4444 = vmatmul.mubr.bf16.gmra.mrb[0].mxu0 %v3809
    %v4445 = vpop.f32.mrb[0].mxu0
    %v4446 = vadd.f32 %v4157, %v4445
    %v4447 = vpop.f32.mrb[0].mxu0
    %v4448 = vpop.f32.mrb[0].mxu0
    %v4449 = vadd.f32 %v4160, %v4448
    %v4450 = vpop.f32.mrb[0].mxu0
    %4451 = vmatprep.mubr.bf16.mxu0 0
    %4452 = vmatmul.mubr.bf16.gmra.mrb[0].mxu0 %v3812
    %v4453 = vpop.f32.mrb[0].mxu0
    %v4454 = vadd.f32 %v4165, %v4453
    %v4455 = vpop.f32.mrb[0].mxu0
    %v4456 = vpop.f32.mrb[0].mxu0
    %v4457 = vadd.f32 %v4168, %v4456
    %v4458 = vpop.f32.mrb[0].mxu0
    %4459 = vmatprep.mubr.bf16.mxu0 0
    %4460 = vmatmul.mubr.bf16.gmra.mrb[0].mxu0 %v3815
    %v4461 = vpop.f32.mrb[0].mxu0
    %v4462 = vadd.f32 %v4173, %v4461
    %v4463 = vpop.f32.mrb[0].mxu0
    %v4464 = vpop.f32.mrb[0].mxu0
    %v4465 = vadd.f32 %v4176, %v4464
    %v4466 = vpop.f32.mrb[0].mxu0
    %4467 = vmatprep.mubr.bf16.mxu0 0
    %4468 = vmatmul.mubr.bf16.gmra.mrb[0].mxu0 %v3818
    %v4469 = vpop.f32.mrb[0].mxu0
    %v4470 = vadd.f32 %v4181, %v4469
    %v4471 = vpop.f32.mrb[0].mxu0
    %v4472 = vpop.f32.mrb[0].mxu0
    %v4473 = vadd.f32 %v4184, %v4472
    %v4474 = vpop.f32.mrb[0].mxu0
    %4475 = vmatprep.mubr.bf16.mxu0 0
    %4476 = vmatmul.mubr.bf16.gmra.mrb[0].mxu0 %v3821
    %v4477 = vpop.f32.mrb[0].mxu0
    %v4478 = vadd.f32 %v4189, %v4477
    %v4479 = vpop.f32.mrb[0].mxu0
    %v4480 = vpop.f32.mrb[0].mxu0
    %v4481 = vadd.f32 %v4192, %v4480
    %v4482 = vpop.f32.mrb[0].mxu0
    %4483 = vmatprep.mubr.bf16.mxu0 0
    %4484 = vmatmul.mubr.bf16.gmra.mrb[0].mxu0 %v3824
    %v4485 = vpop.f32.mrb[0].mxu0
    %v4486 = vadd.f32 %v4197, %v4485
    %v4487 = vpop.f32.mrb[0].mxu0
    %v4488 = vpop.f32.mrb[0].mxu0
    %v4489 = vadd.f32 %v4200, %v4488
    %v4490 = vpop.f32.mrb[0].mxu0
    %4491 = vmatprep.mubr.bf16.mxu0 0
    %4492 = vmatmul.mubr.bf16.gmra.mrb[0].mxu0 %v3827
    %v4493 = vpop.f32.mrb[0].mxu0
    %v4494 = vadd.f32 %v4205, %v4493
    %v4495 = vpop.f32.mrb[0].mxu0
    %v4496 = vpop.f32.mrb[0].mxu0
    %v4497 = vadd.f32 %v4208, %v4496
    %v4498 = vpop.f32.mrb[0].mxu0
    %4499 = vmatprep.mubr.bf16.mxu0 0
    %4500 = vmatmul.mubr.bf16.gmra.mrb[0].mxu0 %v3830
    %v4501 = vpop.f32.mrb[0].mxu0
    %v4502 = vadd.f32 %v4213, %v4501
    %v4503 = vpop.f32.mrb[0].mxu0
    %v4504 = vpop.f32.mrb[0].mxu0
    %v4505 = vadd.f32 %v4216, %v4504
    %v4506 = vpop.f32.mrb[0].mxu0
    %4507 = vmatprep.mubr.bf16.mxu0 0
    %4508 = vmatmul.mubr.bf16.gmra.mrb[0].mxu0 %v3833
    %v4509 = vpop.f32.mrb[0].mxu0
    %v4510 = vadd.f32 %v4221, %v4509
    %v4511 = vpop.f32.mrb[0].mxu0
    %v4512 = vpop.f32.mrb[0].mxu0
    %v4513 = vadd.f32 %v4224, %v4512
    %v4514 = vpop.f32.mrb[0].mxu0
    %4515 = vmatprep.mubr.bf16.mxu0 0
    %4516 = vmatmul.mubr.bf16.gmra.mrb[0].mxu0 %v3836
    %v4517 = vpop.f32.mrb[0].mxu0
    %v4518 = vadd.f32 %v4229, %v4517
    %v4519 = vpop.f32.mrb[0].mxu0
    %v4520 = vpop.f32.mrb[0].mxu0
    %v4521 = vadd.f32 %v4232, %v4520
    %v4522 = vpop.f32.mrb[0].mxu0
    %4523 = vmatprep.mubr.bf16.mxu0 0
    %4524 = vmatmul.mubr.bf16.gmra.mrb[0].mxu0 %v3839
    %v4525 = vpop.f32.mrb[0].mxu0
    %v4526 = vadd.f32 %v4237, %v4525
    %v4527 = vpop.f32.mrb[0].mxu0
    %v4528 = vpop.f32.mrb[0].mxu0
    %v4529 = vadd.f32 %v4240, %v4528
    %v4530 = vpop.f32.mrb[0].mxu0
    %4531 = vmatprep.mubr.bf16.mxu0 0
    %4532 = vmatmul.mubr.bf16.gmra.mrb[0].mxu0 %v3842
    %v4533 = vpop.f32.mrb[0].mxu0
    %v4534 = vadd.f32 %v4245, %v4533
    %v4535 = vpop.f32.mrb[0].mxu0
    %v4536 = vpop.f32.mrb[0].mxu0
    %v4537 = vadd.f32 %v4248, %v4536
    %v4538 = vpop.f32.mrb[0].mxu0
    %4539 = vmatprep.mubr.bf16.mxu0 0
    %4540 = vmatmul.mubr.bf16.gmra.mrb[0].mxu0 %v3845
    %v4541 = vpop.f32.mrb[0].mxu0
    %v4542 = vadd.f32 %v4253, %v4541
    %v4543 = vpop.f32.mrb[0].mxu0
    %v4544 = vpop.f32.mrb[0].mxu0
    %v4545 = vadd.f32 %v4256, %v4544
    %v4546 = vpop.f32.mrb[0].mxu0
    %4547 = vmatprep.mubr.bf16.mxu0 0
    %4548 = vmatmul.mubr.bf16.gmra.mrb[0].mxu0 %v3848
    %v4549 = vpop.f32.mrb[0].mxu0
    %v4550 = vadd.f32 %v4261, %v4549
    %v4551 = vpop.f32.mrb[0].mxu0
    %v4552 = vpop.f32.mrb[0].mxu0
    %v4553 = vadd.f32 %v4264, %v4552
    %v4554 = vpop.f32.mrb[0].mxu0
    %4555 = vmatprep.mubr.bf16.mxu0 0
    %4556 = vmatmul.mubr.bf16.gmra.mrb[0].mxu0 %v3851
    %v4557 = vpop.f32.mrb[0].mxu0
    %v4558 = vadd.f32 %v4269, %v4557
    %v4559 = vpop.f32.mrb[0].mxu0
    %v4560 = vpop.f32.mrb[0].mxu0
    %v4561 = vadd.f32 %v4272, %v4560
    %v4562 = vpop.f32.mrb[0].mxu0
    %4563 = vmatprep.mubr.bf16.mxu0 0
    %4564 = vmatmul.mubr.bf16.gmra.mrb[0].mxu0 %v3854
    %v4565 = vpop.f32.mrb[0].mxu0
    %v4566 = vadd.f32 %v4277, %v4565
    %v4567 = vpop.f32.mrb[0].mxu0
    %v4568 = vpop.f32.mrb[0].mxu0
    %v4569 = vadd.f32 %v4280, %v4568
    %v4570 = vpop.f32.mrb[0].mxu0
    %4571 = vmatprep.mubr.bf16.mxu0 0
    %4572 = vmatmul.mubr.bf16.gmra.mrb[0].mxu0 %v3857
    %v4573 = vpop.f32.mrb[0].mxu0
    %v4574 = vadd.f32 %v4285, %v4573
    %v4575 = vpop.f32.mrb[0].mxu0
    %v4576 = vpop.f32.mrb[0].mxu0
    %v4577 = vadd.f32 %v4288, %v4576
    %v4578 = vpop.f32.mrb[0].mxu0
    %4579 = vmatprep.mubr.bf16.mxu0 0
    %4580 = vmatmul.mubr.bf16.gmra.mrb[0].mxu0 %v3860
    %v4581 = vpop.f32.mrb[0].mxu0
    %v4582 = vadd.f32 %v4293, %v4581
    %v4583 = vpop.f32.mrb[0].mxu0
    %v4584 = vpop.f32.mrb[0].mxu0
    %v4585 = vadd.f32 %v4296, %v4584
    %v4586 = vpop.f32.mrb[0].mxu0
    %4587 = vmatprep.mubr.bf16.mxu0 0
    %4588 = vmatmul.mubr.bf16.gmra.mrb[0].mxu0 %v3863
    %v4589 = vpop.f32.mrb[0].mxu0
    %v4590 = vadd.f32 %v4301, %v4589
    %v4591 = vpop.f32.mrb[0].mxu0
    %v4592 = vpop.f32.mrb[0].mxu0
    %v4593 = vadd.f32 %v4304, %v4592
    %v4594 = vpop.f32.mrb[0].mxu0
    %4595 = vmatprep.mubr.bf16.mxu0 0
    %4596 = vmatmul.mubr.bf16.gmra.mrb[0].mxu0 %v3866
    %v4597 = vpop.f32.mrb[0].mxu0
    %v4598 = vadd.f32 %v4309, %v4597
    %v4599 = vpop.f32.mrb[0].mxu0
    %v4600 = vpop.f32.mrb[0].mxu0
    %v4601 = vadd.f32 %v4312, %v4600
    %v4602 = vpop.f32.mrb[0].mxu0
    %4603 = vmatprep.mubr.bf16.mxu0 0
    %4604 = vmatmul.mubr.bf16.gmra.mrb[0].mxu0 %v3869
    %v4605 = vpop.f32.mrb[0].mxu0
    %v4606 = vadd.f32 %v4317, %v4605
    %v4607 = vpop.f32.mrb[0].mxu0
    %v4608 = vpop.f32.mrb[0].mxu0
    %v4609 = vadd.f32 %v4320, %v4608
    %v4610 = vpop.f32.mrb[0].mxu0
    %4611 = vmatprep.mubr.bf16.mxu0 0
    %4612 = vmatmul.mubr.bf16.gmra.mrb[0].mxu0 %v3872
    %v4613 = vpop.f32.mrb[0].mxu0
    %v4614 = vadd.f32 %v4325, %v4613
    %v4615 = vpop.f32.mrb[0].mxu0
    %v4616 = vpop.f32.mrb[0].mxu0
    %v4617 = vadd.f32 %v4328, %v4616
    %v4618 = vpop.f32.mrb[0].mxu0
    %4619 = vmatprep.mubr.bf16.mxu0 0
    %4620 = vmatmul.mubr.bf16.gmra.mrb[0].mxu0 %v3875
    %v4621 = vpop.f32.mrb[0].mxu0
    %v4622 = vadd.f32 %v4333, %v4621
    %v4623 = vpop.f32.mrb[0].mxu0
    %v4624 = vpop.f32.mrb[0].mxu0
    %v4625 = vadd.f32 %v4336, %v4624
    %v4626 = vpop.f32.mrb[0].mxu0
    %4627 = vmatprep.mubr.bf16.mxu0 0
    %4628 = vmatmul.mubr.bf16.gmra.mrb[0].mxu0 %v3878
    %v4629 = vpop.f32.mrb[0].mxu0
    %v4630 = vadd.f32 %v4341, %v4629
    %v4631 = vpop.f32.mrb[0].mxu0
    %v4632 = vpop.f32.mrb[0].mxu0
    %v4633 = vadd.f32 %v4344, %v4632
    %v4634 = vpop.f32.mrb[0].mxu0
    %4635 = vmatprep.mubr.bf16.mxu0 0
    %4636 = vmatmul.mubr.bf16.gmra.mrb[0].mxu0 %v3881
    %v4637 = vpop.f32.mrb[0].mxu0
    %v4638 = vadd.f32 %v4349, %v4637
    %v4639 = vpop.f32.mrb[0].mxu0
    %v4640 = vpop.f32.mrb[0].mxu0
    %v4641 = vadd.f32 %v4352, %v4640
    %v4642 = vpop.f32.mrb[0].mxu0
    %4643 = vmatprep.mubr.bf16.mxu0 0
    %4644 = vmatmul.mubr.bf16.gmra.mrb[0].mxu0 %v3884
    %v4645 = vpop.f32.mrb[0].mxu0
    %v4646 = vadd.f32 %v4357, %v4645
    %v4647 = vpop.f32.mrb[0].mxu0
    %v4648 = vpop.f32.mrb[0].mxu0
    %v4649 = vadd.f32 %v4360, %v4648
    %v4650 = vpop.f32.mrb[0].mxu0
    %4651 = vmatprep.mubr.bf16.mxu0 0
    %4652 = vmatmul.mubr.bf16.gmra.mrb[0].mxu0 %v3887
    %v4653 = vpop.f32.mrb[0].mxu0
    %v4654 = vadd.f32 %v4365, %v4653
    %v4655 = vpop.f32.mrb[0].mxu0
    %v4656 = vpop.f32.mrb[0].mxu0
    %v4657 = vadd.f32 %v4368, %v4656
    %v4658 = vpop.f32.mrb[0].mxu0
    %4659 = vmatprep.mubr.bf16.mxu0 0
    %4660 = vmatmul.mubr.bf16.gmra.mrb[0].mxu0 %v3890
    %v4661 = vpop.f32.mrb[0].mxu0
    %v4662 = vadd.f32 %v4373, %v4661
    %v4663 = vpop.f32.mrb[0].mxu0
    %v4664 = vpop.f32.mrb[0].mxu0
    %v4665 = vadd.f32 %v4376, %v4664
    %v4666 = vpop.f32.mrb[0].mxu0
    %4667 = vdwg.mxu0
    %v4668 = vmax.f32 %v4414, 0.0
    %v4669 = vmax.f32 %v4417, 0.0
    %v4670 = vmax.f32 %v4422, 0.0
    %v4671 = vmax.f32 %v4425, 0.0
    %v4672 = vmax.f32 %v4430, 0.0
    %v4673 = vmax.f32 %v4433, 0.0
    %v4674 = vmax.f32 %v4438, 0.0
    %v4675 = vmax.f32 %v4441, 0.0
    %v4676 = vmax.f32 %v4446, 0.0
    %v4677 = vmax.f32 %v4449, 0.0
    %v4678 = vmax.f32 %v4454, 0.0
    %v4679 = vmax.f32 %v4457, 0.0
    %v4680 = vmax.f32 %v4462, 0.0
    %v4681 = vmax.f32 %v4465, 0.0
    %v4682 = vmax.f32 %v4470, 0.0
    %v4683 = vmax.f32 %v4473, 0.0
    %v4684 = vmax.f32 %v4478, 0.0
    %v4685 = vmax.f32 %v4481, 0.0
    %v4686 = vmax.f32 %v4486, 0.0
    %v4687 = vmax.f32 %v4489, 0.0
    %v4688 = vmax.f32 %v4494, 0.0
    %v4689 = vmax.f32 %v4497, 0.0
    %v4690 = vmax.f32 %v4502, 0.0
    %v4691 = vmax.f32 %v4505, 0.0
    %v4692 = vmax.f32 %v4510, 0.0
    %v4693 = vmax.f32 %v4513, 0.0
    %v4694 = vmax.f32 %v4518, 0.0
    %v4695 = vmax.f32 %v4521, 0.0
    %v4696 = vmax.f32 %v4526, 0.0
    %v4697 = vmax.f32 %v4529, 0.0
    %v4698 = vmax.f32 %v4534, 0.0
    %v4699 = vmax.f32 %v4537, 0.0
    %v4700 = vmax.f32 %v4542, 0.0
    %v4701 = vmax.f32 %v4545, 0.0
    %v4702 = vmax.f32 %v4550, 0.0
    %v4703 = vmax.f32 %v4553, 0.0
    %v4704 = vmax.f32 %v4558, 0.0
    %v4705 = vmax.f32 %v4561, 0.0
    %v4706 = vmax.f32 %v4566, 0.0
    %v4707 = vmax.f32 %v4569, 0.0
    %v4708 = vmax.f32 %v4574, 0.0
    %v4709 = vmax.f32 %v4577, 0.0
    %v4710 = vmax.f32 %v4582, 0.0
    %v4711 = vmax.f32 %v4585, 0.0
    %v4712 = vmax.f32 %v4590, 0.0
    %v4713 = vmax.f32 %v4593, 0.0
    %v4714 = vmax.f32 %v4598, 0.0
    %v4715 = vmax.f32 %v4601, 0.0
    %v4716 = vmax.f32 %v4606, 0.0
    %v4717 = vmax.f32 %v4609, 0.0
    %v4718 = vmax.f32 %v4614, 0.0
    %v4719 = vmax.f32 %v4617, 0.0
    %v4720 = vmax.f32 %v4622, 0.0
    %v4721 = vmax.f32 %v4625, 0.0
    %v4722 = vmax.f32 %v4630, 0.0
    %v4723 = vmax.f32 %v4633, 0.0
    %v4724 = vmax.f32 %v4638, 0.0
    %v4725 = vmax.f32 %v4641, 0.0
    %v4726 = vmax.f32 %v4646, 0.0
    %v4727 = vmax.f32 %v4649, 0.0
    %v4728 = vmax.f32 %v4654, 0.0
    %v4729 = vmax.f32 %v4657, 0.0
    %v4730 = vmax.f32 %v4662, 0.0
    %v4731 = vmax.f32 %v4665, 0.0
    %v4732 = vpack.c.bf16 %v4669, %v4668
    %v4733 = vpack.c.bf16 %v4671, %v4670
    %v4734 = vpack.c.bf16 %v4673, %v4672
    %v4735 = vpack.c.bf16 %v4675, %v4674
    %v4736 = vpack.c.bf16 %v4677, %v4676
    %v4737 = vpack.c.bf16 %v4679, %v4678
    %v4738 = vpack.c.bf16 %v4681, %v4680
    %v4739 = vpack.c.bf16 %v4683, %v4682
    %v4740 = vpack.c.bf16 %v4685, %v4684
    %v4741 = vpack.c.bf16 %v4687, %v4686
    %v4742 = vpack.c.bf16 %v4689, %v4688
    %v4743 = vpack.c.bf16 %v4691, %v4690
    %v4744 = vpack.c.bf16 %v4693, %v4692
    %v4745 = vpack.c.bf16 %v4695, %v4694
    %v4746 = vpack.c.bf16 %v4697, %v4696
    %v4747 = vpack.c.bf16 %v4699, %v4698
    %v4748 = vpack.c.bf16 %v4701, %v4700
    %v4749 = vpack.c.bf16 %v4703, %v4702
    %v4750 = vpack.c.bf16 %v4705, %v4704
    %v4751 = vpack.c.bf16 %v4707, %v4706
    %v4752 = vpack.c.bf16 %v4709, %v4708
    %v4753 = vpack.c.bf16 %v4711, %v4710
    %v4754 = vpack.c.bf16 %v4713, %v4712
    %v4755 = vpack.c.bf16 %v4715, %v4714
    %v4756 = vpack.c.bf16 %v4717, %v4716
    %v4757 = vpack.c.bf16 %v4719, %v4718
    %v4758 = vpack.c.bf16 %v4721, %v4720
    %v4759 = vpack.c.bf16 %v4723, %v4722
    %v4760 = vpack.c.bf16 %v4725, %v4724
    %v4761 = vpack.c.bf16 %v4727, %v4726
    %v4762 = vpack.c.bf16 %v4729, %v4728
    %v4763 = vpack.c.bf16 %v4731, %v4730
    %v4764 = vld [vmem:[#allocation10] sm:$0xf]
    %v4765 = vld [vmem:[#allocation10 + $0x4] sm:$0xf]
    %v4766 = vld [vmem:[#allocation10 + $0x8] sm:$0xf]
    %v4767 = vld [vmem:[#allocation10 + $0xc] sm:$0xf]
    %v4768 = vld [vmem:[#allocation10 + $0x10] sm:$0xf]
    %v4769 = vld [vmem:[#allocation10 + $0x14] sm:$0xf]
    %v4770 = vld [vmem:[#allocation10 + $0x18] sm:$0xf]
    %v4771 = vld [vmem:[#allocation10 + $0x1c] sm:$0xf]
    %v4772 = vld [vmem:[#allocation10 + $0x20] sm:$0xf]
    %v4773 = vld [vmem:[#allocation10 + $0x24] sm:$0xf]
    %v4774 = vld [vmem:[#allocation10 + $0x28] sm:$0xf]
    %v4775 = vld [vmem:[#allocation10 + $0x2c] sm:$0xf]
    %v4776 = vld [vmem:[#allocation10 + $0x30] sm:$0xf]
    %v4777 = vld [vmem:[#allocation10 + $0x34] sm:$0xf]
    %v4778 = vld [vmem:[#allocation10 + $0x38] sm:$0xf]
    %v4779 = vld [vmem:[#allocation10 + $0x3c] sm:$0xf]
    %v4780 = vld [vmem:[%s8] sm:$0x1]
    %v4782 = vlaneseq
    %v4783 = vshrl.u32 %v4782, 7
    %v4784 = vsub.s32 0, %v4783
    %v4785 = vrot.slane %v4780, %v4784
    %v4803 = vunpack.c.l.b16 %v4764
    %v4804 = vunpack.c.l.b16 %v4765
    %v4805 = vunpack.c.l.b16 %v4766
    %v4806 = vunpack.c.l.b16 %v4767
    %v4807 = vunpack.c.l.b16 %v4768
    %v4808 = vunpack.c.l.b16 %v4769
    %v4809 = vunpack.c.l.b16 %v4770
    %v4810 = vunpack.c.l.b16 %v4771
    %v4811 = vunpack.c.l.b16 %v4772
    %v4812 = vunpack.c.l.b16 %v4773
    %v4813 = vunpack.c.l.b16 %v4774
    %v4814 = vunpack.c.l.b16 %v4775
    %v4815 = vunpack.c.l.b16 %v4776
    %v4816 = vunpack.c.l.b16 %v4777
    %v4817 = vunpack.c.l.b16 %v4778
    %v4818 = vunpack.c.l.b16 %v4779
    %v4819 = vpack.c.b16 %v4804, %v4803
    %v4820 = vpack.c.b16 %v4806, %v4805
    %v4821 = vpack.c.b16 %v4808, %v4807
    %v4822 = vpack.c.b16 %v4810, %v4809
    %v4823 = vpack.c.b16 %v4812, %v4811
    %v4824 = vpack.c.b16 %v4814, %v4813
    %v4825 = vpack.c.b16 %v4816, %v4815
    %v4826 = vpack.c.b16 %v4818, %v4817
    %4835 = vmatprep.subr.bf16.mxu0 0
    %4836 = vmatpush1.bf16.msra.mxu0 %v4819
    %4837 = vmatprep.subr.bf16.mxu0 0
    %4838 = vmatpush1.bf16.msra.mxu0 %v4820
    %4839 = vmatprep.subr.bf16.mxu0 0
    %4840 = vmatpush1.bf16.msra.mxu0 %v4821
    %4841 = vmatprep.subr.bf16.mxu0 0
    %4842 = vmatpush1.bf16.msra.mxu0 %v4822
    %4843 = vmatprep.subr.bf16.mxu0 0
    %4844 = vmatpush1.bf16.msra.mxu0 %v4823
    %4845 = vmatprep.subr.bf16.mxu0 0
    %4846 = vmatpush1.bf16.msra.mxu0 %v4824
    %4847 = vmatprep.subr.bf16.mxu0 0
    %4848 = vmatpush1.bf16.msra.mxu0 %v4825
    %4849 = vmatprep.subr.bf16.mxu0 0
    %4850 = vmatpush1.bf16.msra.mxu0 %v4826
    %4851 = vmatprep.subr.bf16.mxu0 0
    %4852 = vmatpush1.bf16.msra.mxu0 0
    %4853 = vmatprep.subr.bf16.mxu0 0
    %4854 = vmatpush1.bf16.msra.mxu0 0
    %4855 = vmatprep.subr.bf16.mxu0 0
    %4856 = vmatpush1.bf16.msra.mxu0 0
    %4857 = vmatprep.subr.bf16.mxu0 0
    %4858 = vmatpush1.bf16.msra.mxu0 0
    %4859 = vmatprep.subr.bf16.mxu0 0
    %4860 = vmatpush1.bf16.msra.mxu0 0
    %4861 = vmatprep.subr.bf16.mxu0 0
    %4862 = vmatpush1.bf16.msra.mxu0 0
    %4863 = vmatprep.subr.bf16.mxu0 0
    %4864 = vmatpush1.bf16.msra.mxu0 0
    %4865 = vmatprep.subr.bf16.mxu0 0
    %4866 = vmatpush1.bf16.msra.mxu0 0
    %4867 = vmatprep.mubr.bf16.mxu0 0
    %4868 = vmatmul.mubr.bf16.gmra.mrb[0].mxu0 %v4732
    %v4869 = vpop.f32.mrb[0].mxu0
    %v4870 = vadd.f32 %v4785, %v4869
    %v4871 = vpop.f32.mrb[0].mxu0
    %v4872 = vpop.f32.mrb[0].mxu0
    %v4873 = vadd.f32 %v4785, %v4872
    %v4874 = vpop.f32.mrb[0].mxu0
    %4875 = vmatprep.mubr.bf16.mxu0 0
    %4876 = vmatmul.mubr.bf16.gmra.mrb[0].mxu0 %v4733
    %v4877 = vpop.f32.mrb[0].mxu0
    %v4878 = vadd.f32 %v4785, %v4877
    %v4879 = vpop.f32.mrb[0].mxu0
    %v4880 = vpop.f32.mrb[0].mxu0
    %v4881 = vadd.f32 %v4785, %v4880
    %v4882 = vpop.f32.mrb[0].mxu0
    %4883 = vmatprep.mubr.bf16.mxu0 0
    %4884 = vmatmul.mubr.bf16.gmra.mrb[0].mxu0 %v4734
    %v4885 = vpop.f32.mrb[0].mxu0
    %v4886 = vadd.f32 %v4785, %v4885
    %v4887 = vpop.f32.mrb[0].mxu0
    %v4888 = vpop.f32.mrb[0].mxu0
    %v4889 = vadd.f32 %v4785, %v4888
    %v4890 = vpop.f32.mrb[0].mxu0
    %4891 = vmatprep.mubr.bf16.mxu0 0
    %4892 = vmatmul.mubr.bf16.gmra.mrb[0].mxu0 %v4735
    %v4893 = vpop.f32.mrb[0].mxu0
    %v4894 = vadd.f32 %v4785, %v4893
    %v4895 = vpop.f32.mrb[0].mxu0
    %v4896 = vpop.f32.mrb[0].mxu0
    %v4897 = vadd.f32 %v4785, %v4896
    %v4898 = vpop.f32.mrb[0].mxu0
    %4899 = vmatprep.mubr.bf16.mxu0 0
    %4900 = vmatmul.mubr.bf16.gmra.mrb[0].mxu0 %v4736
    %v4901 = vpop.f32.mrb[0].mxu0
    %v4902 = vadd.f32 %v4785, %v4901
    %v4903 = vpop.f32.mrb[0].mxu0
    %v4904 = vpop.f32.mrb[0].mxu0
    %v4905 = vadd.f32 %v4785, %v4904
    %v4906 = vpop.f32.mrb[0].mxu0
    %4907 = vmatprep.mubr.bf16.mxu0 0
    %4908 = vmatmul.mubr.bf16.gmra.mrb[0].mxu0 %v4737
    %v4909 = vpop.f32.mrb[0].mxu0
    %v4910 = vadd.f32 %v4785, %v4909
    %v4911 = vpop.f32.mrb[0].mxu0
    %v4912 = vpop.f32.mrb[0].mxu0
    %v4913 = vadd.f32 %v4785, %v4912
    %v4914 = vpop.f32.mrb[0].mxu0
    %4915 = vmatprep.mubr.bf16.mxu0 0
    %4916 = vmatmul.mubr.bf16.gmra.mrb[0].mxu0 %v4738
    %v4917 = vpop.f32.mrb[0].mxu0
    %v4918 = vadd.f32 %v4785, %v4917
    %v4919 = vpop.f32.mrb[0].mxu0
    %v4920 = vpop.f32.mrb[0].mxu0
    %v4921 = vadd.f32 %v4785, %v4920
    %v4922 = vpop.f32.mrb[0].mxu0
    %4923 = vmatprep.mubr.bf16.mxu0 0
    %4924 = vmatmul.mubr.bf16.gmra.mrb[0].mxu0 %v4739
    %v4925 = vpop.f32.mrb[0].mxu0
    %v4926 = vadd.f32 %v4785, %v4925
    %v4927 = vpop.f32.mrb[0].mxu0
    %v4928 = vpop.f32.mrb[0].mxu0
    %v4929 = vadd.f32 %v4785, %v4928
    %v4930 = vpop.f32.mrb[0].mxu0
    %4931 = vmatprep.mubr.bf16.mxu0 0
    %4932 = vmatmul.mubr.bf16.gmra.mrb[0].mxu0 %v4740
    %v4933 = vpop.f32.mrb[0].mxu0
    %v4934 = vadd.f32 %v4785, %v4933
    %v4935 = vpop.f32.mrb[0].mxu0
    %v4936 = vpop.f32.mrb[0].mxu0
    %v4937 = vadd.f32 %v4785, %v4936
    %v4938 = vpop.f32.mrb[0].mxu0
    %4939 = vmatprep.mubr.bf16.mxu0 0
    %4940 = vmatmul.mubr.bf16.gmra.mrb[0].mxu0 %v4741
    %v4941 = vpop.f32.mrb[0].mxu0
    %v4942 = vadd.f32 %v4785, %v4941
    %v4943 = vpop.f32.mrb[0].mxu0
    %v4944 = vpop.f32.mrb[0].mxu0
    %v4945 = vadd.f32 %v4785, %v4944
    %v4946 = vpop.f32.mrb[0].mxu0
    %4947 = vmatprep.mubr.bf16.mxu0 0
    %4948 = vmatmul.mubr.bf16.gmra.mrb[0].mxu0 %v4742
    %v4949 = vpop.f32.mrb[0].mxu0
    %v4950 = vadd.f32 %v4785, %v4949
    %v4951 = vpop.f32.mrb[0].mxu0
    %v4952 = vpop.f32.mrb[0].mxu0
    %v4953 = vadd.f32 %v4785, %v4952
    %v4954 = vpop.f32.mrb[0].mxu0
    %4955 = vmatprep.mubr.bf16.mxu0 0
    %4956 = vmatmul.mubr.bf16.gmra.mrb[0].mxu0 %v4743
    %v4957 = vpop.f32.mrb[0].mxu0
    %v4958 = vadd.f32 %v4785, %v4957
    %v4959 = vpop.f32.mrb[0].mxu0
    %v4960 = vpop.f32.mrb[0].mxu0
    %v4961 = vadd.f32 %v4785, %v4960
    %v4962 = vpop.f32.mrb[0].mxu0
    %4963 = vmatprep.mubr.bf16.mxu0 0
    %4964 = vmatmul.mubr.bf16.gmra.mrb[0].mxu0 %v4744
    %v4965 = vpop.f32.mrb[0].mxu0
    %v4966 = vadd.f32 %v4785, %v4965
    %v4967 = vpop.f32.mrb[0].mxu0
    %v4968 = vpop.f32.mrb[0].mxu0
    %v4969 = vadd.f32 %v4785, %v4968
    %v4970 = vpop.f32.mrb[0].mxu0
    %4971 = vmatprep.mubr.bf16.mxu0 0
    %4972 = vmatmul.mubr.bf16.gmra.mrb[0].mxu0 %v4745
    %v4973 = vpop.f32.mrb[0].mxu0
    %v4974 = vadd.f32 %v4785, %v4973
    %v4975 = vpop.f32.mrb[0].mxu0
    %v4976 = vpop.f32.mrb[0].mxu0
    %v4977 = vadd.f32 %v4785, %v4976
    %v4978 = vpop.f32.mrb[0].mxu0
    %4979 = vmatprep.mubr.bf16.mxu0 0
    %4980 = vmatmul.mubr.bf16.gmra.mrb[0].mxu0 %v4746
    %v4981 = vpop.f32.mrb[0].mxu0
    %v4982 = vadd.f32 %v4785, %v4981
    %v4983 = vpop.f32.mrb[0].mxu0
    %v4984 = vpop.f32.mrb[0].mxu0
    %v4985 = vadd.f32 %v4785, %v4984
    %v4986 = vpop.f32.mrb[0].mxu0
    %4987 = vmatprep.mubr.bf16.mxu0 0
    %4988 = vmatmul.mubr.bf16.gmra.mrb[0].mxu0 %v4747
    %v4989 = vpop.f32.mrb[0].mxu0
    %v4990 = vadd.f32 %v4785, %v4989
    %v4991 = vpop.f32.mrb[0].mxu0
    %v4992 = vpop.f32.mrb[0].mxu0
    %v4993 = vadd.f32 %v4785, %v4992
    %v4994 = vpop.f32.mrb[0].mxu0
    %4995 = vmatprep.mubr.bf16.mxu0 0
    %4996 = vmatmul.mubr.bf16.gmra.mrb[0].mxu0 %v4748
    %v4997 = vpop.f32.mrb[0].mxu0
    %v4998 = vadd.f32 %v4785, %v4997
    %v4999 = vpop.f32.mrb[0].mxu0
    %v5000 = vpop.f32.mrb[0].mxu0
    %v5001 = vadd.f32 %v4785, %v5000
    %v5002 = vpop.f32.mrb[0].mxu0
    %5003 = vmatprep.mubr.bf16.mxu0 0
    %5004 = vmatmul.mubr.bf16.gmra.mrb[0].mxu0 %v4749
    %v5005 = vpop.f32.mrb[0].mxu0
    %v5006 = vadd.f32 %v4785, %v5005
    %v5007 = vpop.f32.mrb[0].mxu0
    %v5008 = vpop.f32.mrb[0].mxu0
    %v5009 = vadd.f32 %v4785, %v5008
    %v5010 = vpop.f32.mrb[0].mxu0
    %5011 = vmatprep.mubr.bf16.mxu0 0
    %5012 = vmatmul.mubr.bf16.gmra.mrb[0].mxu0 %v4750
    %v5013 = vpop.f32.mrb[0].mxu0
    %v5014 = vadd.f32 %v4785, %v5013
    %v5015 = vpop.f32.mrb[0].mxu0
    %v5016 = vpop.f32.mrb[0].mxu0
    %v5017 = vadd.f32 %v4785, %v5016
    %v5018 = vpop.f32.mrb[0].mxu0
    %5019 = vmatprep.mubr.bf16.mxu0 0
    %5020 = vmatmul.mubr.bf16.gmra.mrb[0].mxu0 %v4751
    %v5021 = vpop.f32.mrb[0].mxu0
    %v5022 = vadd.f32 %v4785, %v5021
    %v5023 = vpop.f32.mrb[0].mxu0
    %v5024 = vpop.f32.mrb[0].mxu0
    %v5025 = vadd.f32 %v4785, %v5024
    %v5026 = vpop.f32.mrb[0].mxu0
    %5027 = vmatprep.mubr.bf16.mxu0 0
    %5028 = vmatmul.mubr.bf16.gmra.mrb[0].mxu0 %v4752
    %v5029 = vpop.f32.mrb[0].mxu0
    %v5030 = vadd.f32 %v4785, %v5029
    %v5031 = vpop.f32.mrb[0].mxu0
    %v5032 = vpop.f32.mrb[0].mxu0
    %v5033 = vadd.f32 %v4785, %v5032
    %v5034 = vpop.f32.mrb[0].mxu0
    %5035 = vmatprep.mubr.bf16.mxu0 0
    %5036 = vmatmul.mubr.bf16.gmra.mrb[0].mxu0 %v4753
    %v5037 = vpop.f32.mrb[0].mxu0
    %v5038 = vadd.f32 %v4785, %v5037
    %v5039 = vpop.f32.mrb[0].mxu0
    %v5040 = vpop.f32.mrb[0].mxu0
    %v5041 = vadd.f32 %v4785, %v5040
    %v5042 = vpop.f32.mrb[0].mxu0
    %5043 = vmatprep.mubr.bf16.mxu0 0
    %5044 = vmatmul.mubr.bf16.gmra.mrb[0].mxu0 %v4754
    %v5045 = vpop.f32.mrb[0].mxu0
    %v5046 = vadd.f32 %v4785, %v5045
    %v5047 = vpop.f32.mrb[0].mxu0
    %v5048 = vpop.f32.mrb[0].mxu0
    %v5049 = vadd.f32 %v4785, %v5048
    %v5050 = vpop.f32.mrb[0].mxu0
    %5051 = vmatprep.mubr.bf16.mxu0 0
    %5052 = vmatmul.mubr.bf16.gmra.mrb[0].mxu0 %v4755
    %v5053 = vpop.f32.mrb[0].mxu0
    %v5054 = vadd.f32 %v4785, %v5053
    %v5055 = vpop.f32.mrb[0].mxu0
    %v5056 = vpop.f32.mrb[0].mxu0
    %v5057 = vadd.f32 %v4785, %v5056
    %v5058 = vpop.f32.mrb[0].mxu0
    %5059 = vmatprep.mubr.bf16.mxu0 0
    %5060 = vmatmul.mubr.bf16.gmra.mrb[0].mxu0 %v4756
    %v5061 = vpop.f32.mrb[0].mxu0
    %v5062 = vadd.f32 %v4785, %v5061
    %v5063 = vpop.f32.mrb[0].mxu0
    %v5064 = vpop.f32.mrb[0].mxu0
    %v5065 = vadd.f32 %v4785, %v5064
    %v5066 = vpop.f32.mrb[0].mxu0
    %5067 = vmatprep.mubr.bf16.mxu0 0
    %5068 = vmatmul.mubr.bf16.gmra.mrb[0].mxu0 %v4757
    %v5069 = vpop.f32.mrb[0].mxu0
    %v5070 = vadd.f32 %v4785, %v5069
    %v5071 = vpop.f32.mrb[0].mxu0
    %v5072 = vpop.f32.mrb[0].mxu0
    %v5073 = vadd.f32 %v4785, %v5072
    %v5074 = vpop.f32.mrb[0].mxu0
    %5075 = vmatprep.mubr.bf16.mxu0 0
    %5076 = vmatmul.mubr.bf16.gmra.mrb[0].mxu0 %v4758
    %v5077 = vpop.f32.mrb[0].mxu0
    %v5078 = vadd.f32 %v4785, %v5077
    %v5079 = vpop.f32.mrb[0].mxu0
    %v5080 = vpop.f32.mrb[0].mxu0
    %v5081 = vadd.f32 %v4785, %v5080
    %v5082 = vpop.f32.mrb[0].mxu0
    %5083 = vmatprep.mubr.bf16.mxu0 0
    %5084 = vmatmul.mubr.bf16.gmra.mrb[0].mxu0 %v4759
    %v5085 = vpop.f32.mrb[0].mxu0
    %v5086 = vadd.f32 %v4785, %v5085
    %v5087 = vpop.f32.mrb[0].mxu0
    %v5088 = vpop.f32.mrb[0].mxu0
    %v5089 = vadd.f32 %v4785, %v5088
    %v5090 = vpop.f32.mrb[0].mxu0
    %5091 = vmatprep.mubr.bf16.mxu0 0
    %5092 = vmatmul.mubr.bf16.gmra.mrb[0].mxu0 %v4760
    %v5093 = vpop.f32.mrb[0].mxu0
    %v5094 = vadd.f32 %v4785, %v5093
    %v5095 = vpop.f32.mrb[0].mxu0
    %v5096 = vpop.f32.mrb[0].mxu0
    %v5097 = vadd.f32 %v4785, %v5096
    %v5098 = vpop.f32.mrb[0].mxu0
    %5099 = vmatprep.mubr.bf16.mxu0 0
    %5100 = vmatmul.mubr.bf16.gmra.mrb[0].mxu0 %v4761
    %v5101 = vpop.f32.mrb[0].mxu0
    %v5102 = vadd.f32 %v4785, %v5101
    %v5103 = vpop.f32.mrb[0].mxu0
    %v5104 = vpop.f32.mrb[0].mxu0
    %v5105 = vadd.f32 %v4785, %v5104
    %v5106 = vpop.f32.mrb[0].mxu0
    %5107 = vmatprep.mubr.bf16.mxu0 0
    %5108 = vmatmul.mubr.bf16.gmra.mrb[0].mxu0 %v4762
    %v5109 = vpop.f32.mrb[0].mxu0
    %v5110 = vadd.f32 %v4785, %v5109
    %v5111 = vpop.f32.mrb[0].mxu0
    %v5112 = vpop.f32.mrb[0].mxu0
    %v5113 = vadd.f32 %v4785, %v5112
    %v5114 = vpop.f32.mrb[0].mxu0
    %5115 = vmatprep.mubr.bf16.mxu0 0
    %5116 = vmatmul.mubr.bf16.gmra.mrb[0].mxu0 %v4763
    %v5117 = vpop.f32.mrb[0].mxu0
    %v5118 = vadd.f32 %v4785, %v5117
    %v5119 = vpop.f32.mrb[0].mxu0
    %v5120 = vpop.f32.mrb[0].mxu0
    %v5121 = vadd.f32 %v4785, %v5120
    %v5122 = vpop.f32.mrb[0].mxu0
    %5123 = vdwg.mxu0
    %5124 = vst [vmem:[#allocation11] sm:$0xff] %v4870
    %5125 = vst [vmem:[#allocation11 + $0x8] sm:$0xff] %v4873
    %5126 = vst [vmem:[#allocation11 + $0x10] sm:$0xff] %v4878
    %5127 = vst [vmem:[#allocation11 + $0x18] sm:$0xff] %v4881
    %5128 = vst [vmem:[#allocation11 + $0x20] sm:$0xff] %v4886
    %5129 = vst [vmem:[#allocation11 + $0x28] sm:$0xff] %v4889
    %5130 = vst [vmem:[#allocation11 + $0x30] sm:$0xff] %v4894
    %5131 = vst [vmem:[#allocation11 + $0x38] sm:$0xff] %v4897
    %5132 = vst [vmem:[#allocation11 + $0x40] sm:$0xff] %v4902
    %5133 = vst [vmem:[#allocation11 + $0x48] sm:$0xff] %v4905
    %5134 = vst [vmem:[#allocation11 + $0x50] sm:$0xff] %v4910
    %5135 = vst [vmem:[#allocation11 + $0x58] sm:$0xff] %v4913
    %5136 = vst [vmem:[#allocation11 + $0x60] sm:$0xff] %v4918
    %5137 = vst [vmem:[#allocation11 + $0x68] sm:$0xff] %v4921
    %5138 = vst [vmem:[#allocation11 + $0x70] sm:$0xff] %v4926
    %5139 = vst [vmem:[#allocation11 + $0x78] sm:$0xff] %v4929
    %5140 = vst [vmem:[#allocation11 + $0x80] sm:$0xff] %v4934
    %5141 = vst [vmem:[#allocation11 + $0x88] sm:$0xff] %v4937
    %5142 = vst [vmem:[#allocation11 + $0x90] sm:$0xff] %v4942
    %5143 = vst [vmem:[#allocation11 + $0x98] sm:$0xff] %v4945
    %5144 = vst [vmem:[#allocation11 + $0xa0] sm:$0xff] %v4950
    %5145 = vst [vmem:[#allocation11 + $0xa8] sm:$0xff] %v4953
    %5146 = vst [vmem:[#allocation11 + $0xb0] sm:$0xff] %v4958
    %5147 = vst [vmem:[#allocation11 + $0xb8] sm:$0xff] %v4961
    %5148 = vst [vmem:[#allocation11 + $0xc0] sm:$0xff] %v4966
    %5149 = vst [vmem:[#allocation11 + $0xc8] sm:$0xff] %v4969
    %5150 = vst [vmem:[#allocation11 + $0xd0] sm:$0xff] %v4974
    %5151 = vst [vmem:[#allocation11 + $0xd8] sm:$0xff] %v4977
    %5152 = vst [vmem:[#allocation11 + $0xe0] sm:$0xff] %v4982
    %5153 = vst [vmem:[#allocation11 + $0xe8] sm:$0xff] %v4985
    %5154 = vst [vmem:[#allocation11 + $0xf0] sm:$0xff] %v4990
    %5155 = vst [vmem:[#allocation11 + $0xf8] sm:$0xff] %v4993
    %5156 = vst [vmem:[#allocation11 + $0x100] sm:$0xff] %v4998
    %5157 = vst [vmem:[#allocation11 + $0x108] sm:$0xff] %v5001
    %5158 = vst [vmem:[#allocation11 + $0x110] sm:$0xff] %v5006
    %5159 = vst [vmem:[#allocation11 + $0x118] sm:$0xff] %v5009
    %5160 = vst [vmem:[#allocation11 + $0x120] sm:$0xff] %v5014
    %5161 = vst [vmem:[#allocation11 + $0x128] sm:$0xff] %v5017
    %5162 = vst [vmem:[#allocation11 + $0x130] sm:$0xff] %v5022
    %5163 = vst [vmem:[#allocation11 + $0x138] sm:$0xff] %v5025
    %5164 = vst [vmem:[#allocation11 + $0x140] sm:$0xff] %v5030
    %5165 = vst [vmem:[#allocation11 + $0x148] sm:$0xff] %v5033
    %5166 = vst [vmem:[#allocation11 + $0x150] sm:$0xff] %v5038
    %5167 = vst [vmem:[#allocation11 + $0x158] sm:$0xff] %v5041
    %5168 = vst [vmem:[#allocation11 + $0x160] sm:$0xff] %v5046
    %5169 = vst [vmem:[#allocation11 + $0x168] sm:$0xff] %v5049
    %5170 = vst [vmem:[#allocation11 + $0x170] sm:$0xff] %v5054
    %5171 = vst [vmem:[#allocation11 + $0x178] sm:$0xff] %v5057
    %5172 = vst [vmem:[#allocation11 + $0x180] sm:$0xff] %v5062
    %5173 = vst [vmem:[#allocation11 + $0x188] sm:$0xff] %v5065
    %5174 = vst [vmem:[#allocation11 + $0x190] sm:$0xff] %v5070
    %5175 = vst [vmem:[#allocation11 + $0x198] sm:$0xff] %v5073
    %5176 = vst [vmem:[#allocation11 + $0x1a0] sm:$0xff] %v5078
    %5177 = vst [vmem:[#allocation11 + $0x1a8] sm:$0xff] %v5081
    %5178 = vst [vmem:[#allocation11 + $0x1b0] sm:$0xff] %v5086
    %5179 = vst [vmem:[#allocation11 + $0x1b8] sm:$0xff] %v5089
    %5180 = vst [vmem:[#allocation11 + $0x1c0] sm:$0xff] %v5094
    %5181 = vst [vmem:[#allocation11 + $0x1c8] sm:$0xff] %v5097
    %5182 = vst [vmem:[#allocation11 + $0x1d0] sm:$0xff] %v5102
    %5183 = vst [vmem:[#allocation11 + $0x1d8] sm:$0xff] %v5105
    %5184 = vst [vmem:[#allocation11 + $0x1e0] sm:$0xff] %v5110
    %5185 = vst [vmem:[#allocation11 + $0x1e8] sm:$0xff] %v5113
    %5186 = vst [vmem:[#allocation11 + $0x1f0] sm:$0xff] %v5118
    %5187 = vst [vmem:[#allocation11 + $0x1f8] sm:$0xff] %v5121
    // Predicated region
    $region58: #{tpu_custom_call.1} parent=1 // pred_check
      _
    $region59: #{tpu_custom_call.1} parent=1 // pred_check_branch
      %5189 = sbr.rel (0) target = $region61
    $region60: #{tpu_custom_call.1} parent=1 // pred_region
      %s5191 = ssub.s32 8192, 8192
      %5192 = vsyncadd [#allocation4], %s5191
      %s5193 = sshll.u32 [#allocation11], 4
      %s5194 = int_to_ptr.vmem [resolvable:$true] %s5193
      %5199 = dma.vmem_to_hbm [thread:$0]  %s5194, 8192, %s9, [#allocation4], 128, 128, 8
    $region61: #{tpu_custom_call.1} parent=1 // pred_fallthru
      _
    // Predicated region
    $region62: #{tpu_custom_call.1} parent=1 // pred_check
      _
    $region63: #{tpu_custom_call.1} parent=1 // pred_check_branch
      %5201 = sbr.rel (0) target = $region65
    $region64: #{tpu_custom_call.1} parent=1 // pred_region
      %5202 = dma.done [#allocation4], 8192
    $region65: #{tpu_custom_call.1} parent=1 // pred_fallthru
      _
    %5203 = vsyncpa [#allocation3], 1
    %5204 = vsyncpa [#allocation6], 1
    %5205 = vsyncpa [#allocation9], 1
    %5206 = vsyncpa [#allocation4], 1

</llo_original>
